<compile_context>
chip_gen: v5e
topology: v5e:2x2
jax: 0.10.0
libtpu: 0.0.40
codegen_flags: <defaults>
</compile_context>

<pallas_src>
import math
import functools

import jax
import jax.numpy as jnp
from jax.experimental import pallas as pl
from jax.experimental.pallas import tpu as pltpu

# ---------------- model hyper-parameters (small, consistent w/ module) ------
D_MODEL = 32
NHEAD = 4
DIM_FF = 64
SEQ = 8
BATCH = 2
EPS = 1e-5
HEAD_DIM = D_MODEL // NHEAD


# ---------------------------- Pallas kernel ---------------------------------
def _layer_kernel(nhead, eps,
                  x_ref,          # (S, D)            one batch of tokens
                  wqkv_ref,       # (3*nhead, D, hd)  head-major in_proj (Q pre-scaled)
                  bqkv_ref,       # (3*nhead, 1, hd)  head-major in_proj bias
                  w_out_ref,      # (D, D)            out_proj
                  w1_ref,         # (D, F)            linear1
                  w2_ref,         # (F, D)            linear2
                  vec_ref,        # (8, 128) packed rows:
                                  #   0: b_out  1: b1  2: b2  3: g1  4: beta1  5: g2  6: beta2
                  o_ref):         # (S, D)
    x = x_ref[...]                              # (S, D) f32
    s_len, d = x.shape
    f = w1_ref.shape[1]

    vec = vec_ref[...]                          # single (8,128) load
    b_out = vec[0:1, :d]
    b1    = vec[1:2, :f]
    b2    = vec[2:3, :d]
    g1    = vec[3:4, :d]
    beta1 = vec[4:5, :d]
    g2    = vec[5:6, :d]
    beta2 = vec[6:7, :d]

    # --- head-major QKV projection: one batched matmul, no lane slicing -----
    # (softmax scale 1/sqrt(hd) is pre-folded into the Q weight/bias groups)
    xb = jnp.broadcast_to(x[None], (3 * nhead, s_len, d))          # hoisted once
    qkv = jnp.einsum('gsd,gde->gse', xb, wqkv_ref[...],
                     preferred_element_type=jnp.float32) + bqkv_ref[...]
    q = qkv[:nhead]                              # (nhead, S, hd)  leading-dim views
    k = qkv[nhead:2 * nhead]
    v = qkv[2 * nhead:]

    # --- exact per-batch attention, all heads batched ------------------------
    s = jnp.einsum('hqe,hke->hqk', q, k, preferred_element_type=jnp.float32)
    s = s - jnp.max(s, axis=-1, keepdims=True)
    p = jnp.exp(s)
    p = p / jnp.sum(p, axis=-1, keepdims=True)   # exact division (PyTorch parity)
    o = jnp.einsum('hqk,hke->hqe', p, v, preferred_element_type=jnp.float32)

    # --- single K=D out-projection (lane concat uses the idle XLU slot) -----
    o_cat = jnp.concatenate([o[h] for h in range(nhead)], axis=-1)   # (S, D)
    attn = jnp.dot(o_cat, w_out_ref[...],
                   preferred_element_type=jnp.float32) + b_out
    # dropout1 -> identity (inference)

    # --- residual + layernorm 1 ----------------------------------------------
    h1 = x + attn
    mu1 = jnp.mean(h1, axis=-1, keepdims=True)
    var1 = jnp.mean((h1 - mu1) ** 2, axis=-1, keepdims=True)
    y1 = (h1 - mu1) * jax.lax.rsqrt(var1 + eps) * g1 + beta1

    # --- feed-forward ---------------------------------------------------------
    a = jnp.dot(y1, w1_ref[...], preferred_element_type=jnp.float32) + b1
    a = jnp.maximum(a, 0.0)                      # ReLU (module default activation)
    # dropout -> identity (inference)
    ffn = jnp.dot(a, w2_ref[...], preferred_element_type=jnp.float32) + b2
    # dropout2 -> identity (inference)

    # --- residual + layernorm 2 ----------------------------------------------
    h2 = y1 + ffn
    mu2 = jnp.mean(h2, axis=-1, keepdims=True)
    var2 = jnp.mean((h2 - mu2) ** 2, axis=-1, keepdims=True)
    y2 = (h2 - mu2) * jax.lax.rsqrt(var2 + eps) * g2 + beta2

    o_ref[...] = y2.astype(o_ref.dtype)


# ------------------------------ wrapper --------------------------------------
def decoder_only_layer(x_sbd, params):
    """x_sbd: (S, B, D) float32, matching PyTorch batch_first=False layout."""
    S, B, D = x_sbd.shape
    F_ = params["w1"].shape[1]
    HD = D // NHEAD

    # One tiny host-side transpose so rows are batch-major; each grid step then
    # sees one contiguous (S, D) batch and computes exact (S, S) attention.
    x2d = jnp.transpose(x_sbd, (1, 0, 2)).reshape(B * S, D)

    # ---- host-side parameter repacking (layout plumbing, one-off) -----------
    scale = 1.0 / math.sqrt(HD)
    col_scale = jnp.concatenate(
        [jnp.full((1, D), scale, jnp.float32), jnp.ones((1, 2 * D), jnp.float32)],
        axis=1)
    w_in = params["w_in"] * col_scale            # (D, 3D) — Q columns pre-scaled
    b_in = params["b_in"] * col_scale            # (1, 3D)

    # Head-major in_proj: group g in [0, 3*nhead) = (Q heads..., K heads..., V heads...)
    wqkv = jnp.transpose(w_in.reshape(D, 3 * NHEAD, HD), (1, 0, 2))   # (12, D, hd)
    bqkv = b_in.reshape(3 * NHEAD, HD)[:, None, :]                    # (12, 1, hd)

    # All row parameters packed into a single lane-padded (8, 128) slab.
    vec = jnp.zeros((8, 128), jnp.float32)
    vec = vec.at[0, :D].set(params["b_out"][0])
    vec = vec.at[1, :F_].set(params["b1"][0])
    vec = vec.at[2, :D].set(params["b2"][0])
    vec = vec.at[3, :D].set(params["g1"][0])
    vec = vec.at[4, :D].set(params["beta1"][0])
    vec = vec.at[5, :D].set(params["g2"][0])
    vec = vec.at[6, :D].set(params["beta2"][0])

    kernel = functools.partial(_layer_kernel, NHEAD, EPS)

    # Advisory cost estimate so XLA can schedule around the custom call.
    flops = B * (2 * S * D * 3 * D               # QKV projection
                 + NHEAD * (2 * S * S * HD) * 2  # q.k^T and p.v
                 + 2 * S * D * D                 # out_proj (single K=D dot)
                 + 2 * 2 * S * D * F_)           # FFN (two matmuls)
    transcendentals = B * (NHEAD * S * S + 2 * S)
    bytes_accessed = 4 * (x2d.size + wqkv.size + bqkv.size
                          + params["w_out"].size + params["w1"].size
                          + params["w2"].size + vec.size + B * S * D)

    def full(shape):
        return pl.BlockSpec(shape, lambda b: (0,) * len(shape))

    out2d = pl.pallas_call(
        kernel,
        out_shape=jax.ShapeDtypeStruct((B * S, D), jnp.float32),
        grid_spec=pltpu.PrefetchScalarGridSpec(
            num_scalar_prefetch=0,
            grid=(B,),
            in_specs=[
                pl.BlockSpec((S, D), lambda b: (b, 0)),   # one batch per grid step
                full(wqkv.shape),
                full(bqkv.shape),
                full(params["w_out"].shape),
                full(params["w1"].shape),
                full(params["w2"].shape),
                full(vec.shape),
            ],
            out_specs=pl.BlockSpec((S, D), lambda b: (b, 0)),
        ),
        compiler_params=pltpu.CompilerParams(
            dimension_semantics=("parallel",)),           # v7x: 2nd TC takes batch 1
        cost_estimate=pl.CostEstimate(flops=flops,
                                      transcendentals=transcendentals,
                                      bytes_accessed=bytes_accessed),
    )(x2d, wqkv, bqkv, params["w_out"], params["w1"], params["w2"], vec)

    # Un-flatten back to the module's (S, B, D) layout.
    return jnp.transpose(out2d.reshape(B, S, D), (1, 0, 2))


# --------------------------- pure-JAX reference -------------------------------
def _reference(x_sbd, p):
    x = jnp.transpose(x_sbd, (1, 0, 2))        # (B, S, D); reference only

    def ln(h, g, b):
        mu = jnp.mean(h, -1, keepdims=True)
        var = jnp.mean((h - mu) ** 2, -1, keepdims=True)
        return (h - mu) * jax.lax.rsqrt(var + EPS) * g + b

    qkv = x @ p["w_in"] + p["b_in"]
    q, k, v = jnp.split(qkv, 3, axis=-1)
    B, S, D = x.shape
    qh = q.reshape(B, S, NHEAD, HEAD_DIM)
    kh = k.reshape(B, S, NHEAD, HEAD_DIM)
    vh = v.reshape(B, S, NHEAD, HEAD_DIM)
    scores = jnp.einsum("bqhd,bkhd->bhqk", qh, kh) / math.sqrt(HEAD_DIM)
    probs = jax.nn.softmax(scores, axis=-1)
    o = jnp.einsum("bhqk,bkhd->bqhd", probs, vh).reshape(B, S, D)
    attn = o @ p["w_out"] + p["b_out"]
    y1 = ln(x + attn, p["g1"], p["beta1"])
    f = jnp.maximum(y1 @ p["w1"] + p["b1"], 0.0) @ p["w2"] + p["b2"]
    y2 = ln(y1 + f, p["g2"], p["beta2"])
    return jnp.transpose(y2, (1, 0, 2))


# ------------------------------- main -----------------------------------------
if __name__ == "__main__":
    key = jax.random.PRNGKey(0)
    keys = jax.random.split(key, 8)

    def xavier(k, shape):
        fan_in, fan_out = shape
        a = math.sqrt(6.0 / (fan_in + fan_out))
        return jax.random.uniform(k, shape, jnp.float32, -a, a)

    # Deterministic parameter init (shapes per the module's __init__).
    # Weights are stored pre-transposed so the math is x @ W.
    params = {
        "w_in":  xavier(keys[0], (D_MODEL, 3 * D_MODEL)),                 # in_proj_weight.T
        "b_in":  0.01 * jax.random.normal(keys[1], (1, 3 * D_MODEL), jnp.float32),
        "w_out": xavier(keys[2], (D_MODEL, D_MODEL)),                      # out_proj.weight.T
        "b_out": jnp.zeros((1, D_MODEL), jnp.float32),
        "w1":    xavier(keys[3], (D_MODEL, DIM_FF)),                       # linear1.weight.T
        "b1":    0.01 * jax.random.normal(keys[4], (1, DIM_FF), jnp.float32),
        "w2":    xavier(keys[5], (DIM_FF, D_MODEL)),                       # linear2.weight.T
        "b2":    0.01 * jax.random.normal(keys[6], (1, D_MODEL), jnp.float32),
        "g1":    jnp.ones((1, D_MODEL), jnp.float32),
        "beta1": jnp.zeros((1, D_MODEL), jnp.float32),
        "g2":    jnp.ones((1, D_MODEL), jnp.float32),
        "beta2": jnp.zeros((1, D_MODEL), jnp.float32),
    }

    x = jax.random.normal(keys[7], (SEQ, BATCH, D_MODEL), jnp.float32)

    # Pin matmul precision so the pure-JAX reference and the kernel agree to
    # f32 accuracy on every backend (the kernel already accumulates in f32 via
    # preferred_element_type).
    with jax.default_matmul_precision("float32"):
        out = jax.block_until_ready(decoder_only_layer(x, params))
        ref = jax.block_until_ready(_reference(x, params))

    assert out.shape == (SEQ, BATCH, D_MODEL)
    assert jnp.allclose(out, ref, atol=2e-4, rtol=2e-4), "mismatch vs reference"

    print("KERNEL_OK")
</pallas_src>

<mosaic_0001>
module attributes {stable_mosaic.version = 11 : i64} {
  func.func @_layer_kernel(%arg0: i32, %arg1: memref<8x32xf32, #tpu.memory_space<vmem>>, %arg2: memref<12x32x8xf32, #tpu.memory_space<vmem>>, %arg3: memref<12x1x8xf32, #tpu.memory_space<vmem>>, %arg4: memref<32x32xf32, #tpu.memory_space<vmem>>, %arg5: memref<32x64xf32, #tpu.memory_space<vmem>>, %arg6: memref<64x32xf32, #tpu.memory_space<vmem>>, %arg7: memref<8x128xf32, #tpu.memory_space<vmem>>, %arg8: memref<8x32xf32, #tpu.memory_space<vmem>>) attributes {dimension_semantics = [#tpu.dimension_semantics<parallel>], iteration_bounds = array<i64: 2>, scalar_prefetch = 0 : i64, scratch_operands = 0 : i64, tpu.core_type = #tpu.core_type<tc>, window_params = [{transform_indices = @transform_0, window_bounds = array<i64: 8, 32>}, {pipeline_mode = #tpu.pipeline_mode<synchronous>, transform_indices = @transform_1, window_bounds = array<i64: 12, 32, 8>}, {pipeline_mode = #tpu.pipeline_mode<synchronous>, transform_indices = @transform_2, window_bounds = array<i64: 12, 1, 8>}, {pipeline_mode = #tpu.pipeline_mode<synchronous>, transform_indices = @transform_3, window_bounds = array<i64: 32, 32>}, {pipeline_mode = #tpu.pipeline_mode<synchronous>, transform_indices = @transform_4, window_bounds = array<i64: 32, 64>}, {pipeline_mode = #tpu.pipeline_mode<synchronous>, transform_indices = @transform_5, window_bounds = array<i64: 64, 32>}, {pipeline_mode = #tpu.pipeline_mode<synchronous>, transform_indices = @transform_6, window_bounds = array<i64: 8, 128>}, {transform_indices = @transform_7, window_bounds = array<i64: 8, 32>}]} {
    %c0 = arith.constant 0 : index
    %c0_0 = arith.constant 0 : index
    %0 = vector.load %arg1[%c0, %c0_0] : memref<8x32xf32, #tpu.memory_space<vmem>>, vector<8x32xf32>
    %c0_1 = arith.constant 0 : index
    %c0_2 = arith.constant 0 : index
    %1 = vector.load %arg7[%c0_1, %c0_2] : memref<8x128xf32, #tpu.memory_space<vmem>>, vector<8x128xf32>
    %2 = vector.extract_strided_slice %1 {offsets = [0, 0], sizes = [1, 32], strides = [1, 1]} : vector<8x128xf32> to vector<1x32xf32>
    %3 = vector.extract_strided_slice %1 {offsets = [1, 0], sizes = [1, 64], strides = [1, 1]} : vector<8x128xf32> to vector<1x64xf32>
    %4 = vector.extract_strided_slice %1 {offsets = [2, 0], sizes = [1, 32], strides = [1, 1]} : vector<8x128xf32> to vector<1x32xf32>
    %5 = vector.extract_strided_slice %1 {offsets = [3, 0], sizes = [1, 32], strides = [1, 1]} : vector<8x128xf32> to vector<1x32xf32>
    %6 = vector.extract_strided_slice %1 {offsets = [4, 0], sizes = [1, 32], strides = [1, 1]} : vector<8x128xf32> to vector<1x32xf32>
    %7 = vector.extract_strided_slice %1 {offsets = [5, 0], sizes = [1, 32], strides = [1, 1]} : vector<8x128xf32> to vector<1x32xf32>
    %8 = vector.extract_strided_slice %1 {offsets = [6, 0], sizes = [1, 32], strides = [1, 1]} : vector<8x128xf32> to vector<1x32xf32>
    %9 = vector.shape_cast %0 : vector<8x32xf32> to vector<1x8x32xf32>
    %10 = vector.shape_cast %9 : vector<1x8x32xf32> to vector<1x8x32xf32>
    %11 = vector.broadcast %10 : vector<1x8x32xf32> to vector<12x8x32xf32>
    %c0_3 = arith.constant 0 : index
    %c0_4 = arith.constant 0 : index
    %c0_5 = arith.constant 0 : index
    %12 = vector.load %arg2[%c0_3, %c0_4, %c0_5] : memref<12x32x8xf32, #tpu.memory_space<vmem>>, vector<12x32x8xf32>
    "tpu.trace_start"() <{level = 10 : i32, message = "gsd,gde->gse"}> : () -> ()
    %cst = arith.constant dense<0.000000e+00> : vector<12x8x8xf32>
    %13 = tpu.matmul %11, %12, %cst {dimension_numbers = #tpu.dot_dimension_numbers<[2], [1], [1], [2], [0, 0, 0, 1, 1, 2], [0], [0]>, precision = #tpu.contract_precision<fp32>} : vector<12x8x32xf32>, vector<12x32x8xf32>, vector<12x8x8xf32> -> vector<12x8x8xf32>
    "tpu.trace_stop"() : () -> ()
    %c0_6 = arith.constant 0 : index
    %c0_7 = arith.constant 0 : index
    %c0_8 = arith.constant 0 : index
    %14 = vector.load %arg3[%c0_6, %c0_7, %c0_8] : memref<12x1x8xf32, #tpu.memory_space<vmem>>, vector<12x1x8xf32>
    %15 = vector.broadcast %14 : vector<12x1x8xf32> to vector<12x8x8xf32>
    %16 = arith.addf %13, %15 : vector<12x8x8xf32>
    %17 = vector.extract_strided_slice %16 {offsets = [0, 0, 0], sizes = [4, 8, 8], strides = [1, 1, 1]} : vector<12x8x8xf32> to vector<4x8x8xf32>
    %18 = vector.extract_strided_slice %16 {offsets = [4, 0, 0], sizes = [4, 8, 8], strides = [1, 1, 1]} : vector<12x8x8xf32> to vector<4x8x8xf32>
    %19 = vector.extract_strided_slice %16 {offsets = [8, 0, 0], sizes = [4, 8, 8], strides = [1, 1, 1]} : vector<12x8x8xf32> to vector<4x8x8xf32>
    "tpu.trace_start"() <{level = 10 : i32, message = "hqe,hke->hqk"}> : () -> ()
    %cst_9 = arith.constant dense<0.000000e+00> : vector<4x8x8xf32>
    %20 = tpu.matmul %17, %18, %cst_9 {dimension_numbers = #tpu.dot_dimension_numbers<[2], [2], [1], [1], [0, 0, 0, 1, 1, 1], [0], [0]>, precision = #tpu.contract_precision<fp32>} : vector<4x8x8xf32>, vector<4x8x8xf32>, vector<4x8x8xf32> -> vector<4x8x8xf32>
    "tpu.trace_stop"() : () -> ()
    %cst_10 = arith.constant dense<0xFF800000> : vector<4x8xf32>
    %21 = vector.multi_reduction <maximumf>, %20, %cst_10 [2] : vector<4x8x8xf32> to vector<4x8xf32>
    %22 = vector.shape_cast %21 : vector<4x8xf32> to vector<4x8x1xf32>
    %23 = vector.broadcast %22 : vector<4x8x1xf32> to vector<4x8x8xf32>
    %24 = arith.subf %20, %23 : vector<4x8x8xf32>
    %25 = math.exp %24 : vector<4x8x8xf32>
    %cst_11 = arith.constant dense<0.000000e+00> : vector<4x8xf32>
    %26 = vector.multi_reduction <add>, %25, %cst_11 [2] : vector<4x8x8xf32> to vector<4x8xf32>
    %27 = vector.shape_cast %26 : vector<4x8xf32> to vector<4x8x1xf32>
    %28 = vector.broadcast %27 : vector<4x8x1xf32> to vector<4x8x8xf32>
    %29 = arith.divf %25, %28 : vector<4x8x8xf32>
    "tpu.trace_start"() <{level = 10 : i32, message = "hqk,hke->hqe"}> : () -> ()
    %cst_12 = arith.constant dense<0.000000e+00> : vector<4x8x8xf32>
    %30 = tpu.matmul %29, %19, %cst_12 {dimension_numbers = #tpu.dot_dimension_numbers<[2], [1], [1], [2], [0, 0, 0, 1, 1, 2], [0], [0]>, precision = #tpu.contract_precision<fp32>} : vector<4x8x8xf32>, vector<4x8x8xf32>, vector<4x8x8xf32> -> vector<4x8x8xf32>
    "tpu.trace_stop"() : () -> ()
    %31 = vector.extract_strided_slice %30 {offsets = [0, 0, 0], sizes = [1, 8, 8], strides = [1, 1, 1]} : vector<4x8x8xf32> to vector<1x8x8xf32>
    %32 = vector.shape_cast %31 : vector<1x8x8xf32> to vector<8x8xf32>
    %33 = vector.extract_strided_slice %30 {offsets = [1, 0, 0], sizes = [1, 8, 8], strides = [1, 1, 1]} : vector<4x8x8xf32> to vector<1x8x8xf32>
    %34 = vector.shape_cast %33 : vector<1x8x8xf32> to vector<8x8xf32>
    %35 = vector.extract_strided_slice %30 {offsets = [2, 0, 0], sizes = [1, 8, 8], strides = [1, 1, 1]} : vector<4x8x8xf32> to vector<1x8x8xf32>
    %36 = vector.shape_cast %35 : vector<1x8x8xf32> to vector<8x8xf32>
    %37 = vector.extract_strided_slice %30 {offsets = [3, 0, 0], sizes = [1, 8, 8], strides = [1, 1, 1]} : vector<4x8x8xf32> to vector<1x8x8xf32>
    %38 = vector.shape_cast %37 : vector<1x8x8xf32> to vector<8x8xf32>
    %39 = tpu.concatenate %32, %34, %36, %38 in 1 : vector<8x8xf32>, vector<8x8xf32>, vector<8x8xf32>, vector<8x8xf32> -> vector<8x32xf32>
    %c0_13 = arith.constant 0 : index
    %c0_14 = arith.constant 0 : index
    %40 = vector.load %arg4[%c0_13, %c0_14] : memref<32x32xf32, #tpu.memory_space<vmem>>, vector<32x32xf32>
    %cst_15 = arith.constant dense<0.000000e+00> : vector<8x32xf32>
    %41 = tpu.matmul %39, %40, %cst_15 {dimension_numbers = #tpu.dot_dimension_numbers<[1], [0], [0], [1], [0, 0, 1, 1], [], []>, precision = #tpu.contract_precision<fp32>} : vector<8x32xf32>, vector<32x32xf32>, vector<8x32xf32> -> vector<8x32xf32>
    %42 = vector.broadcast %2 : vector<1x32xf32> to vector<8x32xf32>
    %43 = arith.addf %41, %42 : vector<8x32xf32>
    %44 = arith.addf %0, %43 : vector<8x32xf32>
    %cst_16 = arith.constant dense<0.000000e+00> : vector<8xf32>
    %45 = vector.multi_reduction <add>, %44, %cst_16 [1] : vector<8x32xf32> to vector<8xf32>
    %46 = vector.shape_cast %45 : vector<8xf32> to vector<8x1xf32>
    %cst_17 = arith.constant 3.200000e+01 : f32
    %47 = vector.broadcast %cst_17 : f32 to vector<8x1xf32>
    %48 = arith.divf %46, %47 : vector<8x1xf32>
    %49 = vector.broadcast %48 : vector<8x1xf32> to vector<8x32xf32>
    %50 = arith.subf %44, %49 : vector<8x32xf32>
    %51 = arith.mulf %50, %50 : vector<8x32xf32>
    %cst_18 = arith.constant dense<0.000000e+00> : vector<8xf32>
    %52 = vector.multi_reduction <add>, %51, %cst_18 [1] : vector<8x32xf32> to vector<8xf32>
    %53 = vector.shape_cast %52 : vector<8xf32> to vector<8x1xf32>
    %cst_19 = arith.constant 3.200000e+01 : f32
    %54 = vector.broadcast %cst_19 : f32 to vector<8x1xf32>
    %55 = arith.divf %53, %54 : vector<8x1xf32>
    %56 = vector.broadcast %48 : vector<8x1xf32> to vector<8x32xf32>
    %57 = arith.subf %44, %56 : vector<8x32xf32>
    %cst_20 = arith.constant 9.99999974E-6 : f32
    %58 = vector.broadcast %cst_20 : f32 to vector<8x1xf32>
    %59 = arith.addf %55, %58 : vector<8x1xf32>
    %60 = math.rsqrt %59 : vector<8x1xf32>
    %61 = vector.broadcast %60 : vector<8x1xf32> to vector<8x32xf32>
    %62 = arith.mulf %57, %61 : vector<8x32xf32>
    %63 = vector.broadcast %5 : vector<1x32xf32> to vector<8x32xf32>
    %64 = arith.mulf %62, %63 : vector<8x32xf32>
    %65 = vector.broadcast %6 : vector<1x32xf32> to vector<8x32xf32>
    %66 = arith.addf %64, %65 : vector<8x32xf32>
    %c0_21 = arith.constant 0 : index
    %c0_22 = arith.constant 0 : index
    %67 = vector.load %arg5[%c0_21, %c0_22] : memref<32x64xf32, #tpu.memory_space<vmem>>, vector<32x64xf32>
    %cst_23 = arith.constant dense<0.000000e+00> : vector<8x64xf32>
    %68 = tpu.matmul %66, %67, %cst_23 {dimension_numbers = #tpu.dot_dimension_numbers<[1], [0], [0], [1], [0, 0, 1, 1], [], []>, precision = #tpu.contract_precision<fp32>} : vector<8x32xf32>, vector<32x64xf32>, vector<8x64xf32> -> vector<8x64xf32>
    %69 = vector.broadcast %3 : vector<1x64xf32> to vector<8x64xf32>
    %70 = arith.addf %68, %69 : vector<8x64xf32>
    %cst_24 = arith.constant 0.000000e+00 : f32
    %71 = vector.broadcast %cst_24 : f32 to vector<8x64xf32>
    %72 = arith.maximumf %70, %71 : vector<8x64xf32>
    %c0_25 = arith.constant 0 : index
    %c0_26 = arith.constant 0 : index
    %73 = vector.load %arg6[%c0_25, %c0_26] : memref<64x32xf32, #tpu.memory_space<vmem>>, vector<64x32xf32>
    %cst_27 = arith.constant dense<0.000000e+00> : vector<8x32xf32>
    %74 = tpu.matmul %72, %73, %cst_27 {dimension_numbers = #tpu.dot_dimension_numbers<[1], [0], [0], [1], [0, 0, 1, 1], [], []>, precision = #tpu.contract_precision<fp32>} : vector<8x64xf32>, vector<64x32xf32>, vector<8x32xf32> -> vector<8x32xf32>
    %75 = vector.broadcast %4 : vector<1x32xf32> to vector<8x32xf32>
    %76 = arith.addf %74, %75 : vector<8x32xf32>
    %77 = arith.addf %66, %76 : vector<8x32xf32>
    %cst_28 = arith.constant dense<0.000000e+00> : vector<8xf32>
    %78 = vector.multi_reduction <add>, %77, %cst_28 [1] : vector<8x32xf32> to vector<8xf32>
    %79 = vector.shape_cast %78 : vector<8xf32> to vector<8x1xf32>
    %cst_29 = arith.constant 3.200000e+01 : f32
    %80 = vector.broadcast %cst_29 : f32 to vector<8x1xf32>
    %81 = arith.divf %79, %80 : vector<8x1xf32>
    %82 = vector.broadcast %81 : vector<8x1xf32> to vector<8x32xf32>
    %83 = arith.subf %77, %82 : vector<8x32xf32>
    %84 = arith.mulf %83, %83 : vector<8x32xf32>
    %cst_30 = arith.constant dense<0.000000e+00> : vector<8xf32>
    %85 = vector.multi_reduction <add>, %84, %cst_30 [1] : vector<8x32xf32> to vector<8xf32>
    %86 = vector.shape_cast %85 : vector<8xf32> to vector<8x1xf32>
    %cst_31 = arith.constant 3.200000e+01 : f32
    %87 = vector.broadcast %cst_31 : f32 to vector<8x1xf32>
    %88 = arith.divf %86, %87 : vector<8x1xf32>
    %89 = vector.broadcast %81 : vector<8x1xf32> to vector<8x32xf32>
    %90 = arith.subf %77, %89 : vector<8x32xf32>
    %cst_32 = arith.constant 9.99999974E-6 : f32
    %91 = vector.broadcast %cst_32 : f32 to vector<8x1xf32>
    %92 = arith.addf %88, %91 : vector<8x1xf32>
    %93 = math.rsqrt %92 : vector<8x1xf32>
    %94 = vector.broadcast %93 : vector<8x1xf32> to vector<8x32xf32>
    %95 = arith.mulf %90, %94 : vector<8x32xf32>
    %96 = vector.broadcast %7 : vector<1x32xf32> to vector<8x32xf32>
    %97 = arith.mulf %95, %96 : vector<8x32xf32>
    %98 = vector.broadcast %8 : vector<1x32xf32> to vector<8x32xf32>
    %99 = arith.addf %97, %98 : vector<8x32xf32>
    %c0_33 = arith.constant 0 : index
    %c0_34 = arith.constant 0 : index
    %100 = vector.load %arg8[%c0_33, %c0_34] : memref<8x32xf32, #tpu.memory_space<vmem>>, vector<8x32xf32>
    tpu.vector_store %arg8[%c0_33, %c0_34], %99 {strides = array<i32>} : memref<8x32xf32, #tpu.memory_space<vmem>>, vector<8x32xf32>,
    return
  }
  func.func @transform_0(%arg0: i32) -> (i32, i32) {
    %c0_i32 = arith.constant 0 : i32
    %c0_i32_0 = arith.constant 0 : i32
    return %arg0, %c0_i32 : i32, i32
  }
  func.func @transform_1(%arg0: i32) -> (i32, i32, i32) {
    %c0_i32 = arith.constant 0 : i32
    %c0_i32_0 = arith.constant 0 : i32
    %c0_i32_1 = arith.constant 0 : i32
    %c0_i32_2 = arith.constant 0 : i32
    return %c0_i32, %c0_i32_0, %c0_i32_1 : i32, i32, i32
  }
  func.func @transform_2(%arg0: i32) -> (i32, i32, i32) {
    %c0_i32 = arith.constant 0 : i32
    %c0_i32_0 = arith.constant 0 : i32
    %c0_i32_1 = arith.constant 0 : i32
    %c0_i32_2 = arith.constant 0 : i32
    return %c0_i32, %c0_i32_0, %c0_i32_1 : i32, i32, i32
  }
  func.func @transform_3(%arg0: i32) -> (i32, i32) {
    %c0_i32 = arith.constant 0 : i32
    %c0_i32_0 = arith.constant 0 : i32
    %c0_i32_1 = arith.constant 0 : i32
    return %c0_i32, %c0_i32_0 : i32, i32
  }
  func.func @transform_4(%arg0: i32) -> (i32, i32) {
    %c0_i32 = arith.constant 0 : i32
    %c0_i32_0 = arith.constant 0 : i32
    %c0_i32_1 = arith.constant 0 : i32
    return %c0_i32, %c0_i32_0 : i32, i32
  }
  func.func @transform_5(%arg0: i32) -> (i32, i32) {
    %c0_i32 = arith.constant 0 : i32
    %c0_i32_0 = arith.constant 0 : i32
    %c0_i32_1 = arith.constant 0 : i32
    return %c0_i32, %c0_i32_0 : i32, i32
  }
  func.func @transform_6(%arg0: i32) -> (i32, i32) {
    %c0_i32 = arith.constant 0 : i32
    %c0_i32_0 = arith.constant 0 : i32
    %c0_i32_1 = arith.constant 0 : i32
    return %c0_i32, %c0_i32_0 : i32, i32
  }
  func.func @transform_7(%arg0: i32) -> (i32, i32) {
    %c0_i32 = arith.constant 0 : i32
    %c0_i32_0 = arith.constant 0 : i32
    return %arg0, %c0_i32 : i32, i32
  }
}

</mosaic_0001>

<llo_original>
// kernel: tpu_custom_call.1
$region0: #{tpu_custom_call.1}
  #allocation0 [shape = 'u32[]', space=smem, size = 0x4, offset = 0x4, fixed_abs, tag = 'smem constant byte address 0x4 - core index']
  #allocation1 [shape = 'u32[72,128]{1,0:T(1,128)}', space=vmem, size = 0x9000, scoped, tag = 'internal scratch']
  %s0 = inlined_call_operand.vmem [shape: f32[16,32], index: 0, kind: input, shape index: {}]
  %s1 = inlined_call_operand.vmem [shape: f32[12,32,8], index: 1, kind: input, shape index: {}]
  %s2 = inlined_call_operand.vmem [shape: f32[12,1,8], index: 2, kind: input, shape index: {}]
  %s3 = inlined_call_operand.vmem [shape: f32[32,32], index: 3, kind: input, shape index: {}]
  %s4 = inlined_call_operand.vmem [shape: f32[32,64], index: 4, kind: input, shape index: {}]
  %s5 = inlined_call_operand.vmem [shape: f32[64,32], index: 5, kind: input, shape index: {}]
  %s6 = inlined_call_operand.vmem [shape: f32[8,128], index: 6, kind: input, shape index: {}]
  %s7 = inlined_call_operand.hbm [shape: f32[16,32], index: 7, kind: output, shape index: {}]
  %s8 = sld [smem:[#allocation0]]
  $region61: #{tpu_custom_call.1} parent=0
    _
  %s10 = ssub.s32 1, %s8
  %s11 = scalar_select 0, %s10, %s8
  $region1: #{tpu_custom_call.1} parent=0
    #allocation2 [shape = 'u8[8192]{0}', space=vmem, size = 0x2000, scoped, tag = 'output window, operand 0']
    #allocation3 [shape = 's32[2]{0}', space=sflag, size = 0x8, scoped, tag = 'scoped memory for tpu_custom_call.1']
    %12 = vsyncpa [#allocation3], 0
    %s13 = scalar_lea.sflag [#allocation3], 1
    %14 = vsyncpa %s13, 0
    loop: start=0, step=1, limit=4
    $region2: #{tpu_custom_call.1} parent=1 // loop_pre_header
      _
    $region3: #{tpu_custom_call.1} parent=1 // loop_header
      %s16 = sphi 0, %s20
      %p17 = scmp.ge.s32.totalorder %s16, 4
      %s26 = sphi 0, %s28
      %s29 = sphi 0, %s26
      %s30 = sphi 0, %s29
      %s46 = sphi 0, %s30
      %s50 = sphi 0, %s50
      %s52 = sphi 0, %s50
      %s53 = sphi 0, %s52
      %s67 = sphi 0, %s53
      %s71 = sphi 0, %s71
      %s73 = sphi 0, %s71
      %s74 = sphi 0, %s73
      %s88 = sphi 0, %s74
      %s92 = sphi 0, %s92
      %s94 = sphi 0, %s92
      %s95 = sphi 0, %s94
      %s109 = sphi 0, %s95
      %s113 = sphi 0, %s113
      %s115 = sphi 0, %s113
      %s116 = sphi 0, %s115
      %s130 = sphi 0, %s116
      %s134 = sphi 0, %s134
      %s136 = sphi 0, %s134
      %s137 = sphi 0, %s136
      %s151 = sphi 0, %s137
      %s155 = sphi 0, %s155
      %s157 = sphi 0, %s155
      %s158 = sphi 0, %s157
      %s172 = sphi 0, %s158
      %s178 = sphi 0, %s180
      %s181 = sphi 0, %s178
      %s182 = sphi 0, %s181
      %s198 = sphi 0, %s182
    $region4: #{tpu_custom_call.1} parent=1 // loop_header_branch
      %19 = sbr.rel (%p17) target = $region8
    $region5: #{tpu_custom_call.1} parent=1 // loop_body
      %s21 = ssub.s32 %s16, 1
      %s22 = ssub.s32 %s16, 2
      %s23 = sadd.s32 %s16, 1
      %s24 = ssub.s32 %s16, %s23
      %p25 = scmp.eq.s32.totalorder %s24, 0
      %s27 = sadd.s32 %s26, 1
      %s28 = scalar_select %p25, %s26, %s27
      %p31 = pneg %p25
      %p32 = scmp.eq.s32.totalorder %s16, 1
      %p33 = por %p31, %p32
      %p34 = scmp.ne.s32.totalorder %s26, %s29
      %p35 = scmp.eq.s32.totalorder %s16, 0
      %p36 = por %p34, %p35
      %p37 = scmp.ne.s32.totalorder %s26, %s29
      %p38 = scmp.eq.s32.totalorder %s21, 1
      %p39 = por %p37, %p38
      %p40 = scmp.ne.s32.totalorder %s29, %s30
      %p41 = scmp.eq.s32.totalorder %s21, 0
      %p42 = por %p40, %p41
      %p43 = scmp.ne.s32.totalorder %s29, %s30
      %p44 = scmp.eq.s32.totalorder %s22, 1
      %p45 = por %p43, %p44
      %p47 = scmp.ne.s32.totalorder %s30, %s46
      %p48 = scmp.eq.s32.totalorder %s22, 0
      %p49 = por %p47, %p48
      %s51 = sadd.s32 %s50, 1
      %p54 = scmp.eq.s32.totalorder %s16, 1
      %p55 = scmp.ne.s32.totalorder %s50, %s52
      %p56 = scmp.eq.s32.totalorder %s16, 0
      %p57 = por %p55, %p56
      %p58 = scmp.ne.s32.totalorder %s50, %s52
      %p59 = scmp.eq.s32.totalorder %s21, 1
      %p60 = por %p58, %p59
      %p61 = scmp.ne.s32.totalorder %s52, %s53
      %p62 = scmp.eq.s32.totalorder %s21, 0
      %p63 = por %p61, %p62
      %p64 = scmp.ne.s32.totalorder %s52, %s53
      %p65 = scmp.eq.s32.totalorder %s22, 1
      %p66 = por %p64, %p65
      %p68 = scmp.ne.s32.totalorder %s53, %s67
      %p69 = scmp.eq.s32.totalorder %s22, 0
      %p70 = por %p68, %p69
      %s72 = sadd.s32 %s71, 1
      %p75 = scmp.eq.s32.totalorder %s16, 1
      %p76 = scmp.ne.s32.totalorder %s71, %s73
      %p77 = scmp.eq.s32.totalorder %s16, 0
      %p78 = por %p76, %p77
      %p79 = scmp.ne.s32.totalorder %s71, %s73
      %p80 = scmp.eq.s32.totalorder %s21, 1
      %p81 = por %p79, %p80
      %p82 = scmp.ne.s32.totalorder %s73, %s74
      %p83 = scmp.eq.s32.totalorder %s21, 0
      %p84 = por %p82, %p83
      %p85 = scmp.ne.s32.totalorder %s73, %s74
      %p86 = scmp.eq.s32.totalorder %s22, 1
      %p87 = por %p85, %p86
      %p89 = scmp.ne.s32.totalorder %s74, %s88
      %p90 = scmp.eq.s32.totalorder %s22, 0
      %p91 = por %p89, %p90
      %s93 = sadd.s32 %s92, 1
      %p96 = scmp.eq.s32.totalorder %s16, 1
      %p97 = scmp.ne.s32.totalorder %s92, %s94
      %p98 = scmp.eq.s32.totalorder %s16, 0
      %p99 = por %p97, %p98
      %p100 = scmp.ne.s32.totalorder %s92, %s94
      %p101 = scmp.eq.s32.totalorder %s21, 1
      %p102 = por %p100, %p101
      %p103 = scmp.ne.s32.totalorder %s94, %s95
      %p104 = scmp.eq.s32.totalorder %s21, 0
      %p105 = por %p103, %p104
      %p106 = scmp.ne.s32.totalorder %s94, %s95
      %p107 = scmp.eq.s32.totalorder %s22, 1
      %p108 = por %p106, %p107
      %p110 = scmp.ne.s32.totalorder %s95, %s109
      %p111 = scmp.eq.s32.totalorder %s22, 0
      %p112 = por %p110, %p111
      %s114 = sadd.s32 %s113, 1
      %p117 = scmp.eq.s32.totalorder %s16, 1
      %p118 = scmp.ne.s32.totalorder %s113, %s115
      %p119 = scmp.eq.s32.totalorder %s16, 0
      %p120 = por %p118, %p119
      %p121 = scmp.ne.s32.totalorder %s113, %s115
      %p122 = scmp.eq.s32.totalorder %s21, 1
      %p123 = por %p121, %p122
      %p124 = scmp.ne.s32.totalorder %s115, %s116
      %p125 = scmp.eq.s32.totalorder %s21, 0
      %p126 = por %p124, %p125
      %p127 = scmp.ne.s32.totalorder %s115, %s116
      %p128 = scmp.eq.s32.totalorder %s22, 1
      %p129 = por %p127, %p128
      %p131 = scmp.ne.s32.totalorder %s116, %s130
      %p132 = scmp.eq.s32.totalorder %s22, 0
      %p133 = por %p131, %p132
      %s135 = sadd.s32 %s134, 1
      %p138 = scmp.eq.s32.totalorder %s16, 1
      %p139 = scmp.ne.s32.totalorder %s134, %s136
      %p140 = scmp.eq.s32.totalorder %s16, 0
      %p141 = por %p139, %p140
      %p142 = scmp.ne.s32.totalorder %s134, %s136
      %p143 = scmp.eq.s32.totalorder %s21, 1
      %p144 = por %p142, %p143
      %p145 = scmp.ne.s32.totalorder %s136, %s137
      %p146 = scmp.eq.s32.totalorder %s21, 0
      %p147 = por %p145, %p146
      %p148 = scmp.ne.s32.totalorder %s136, %s137
      %p149 = scmp.eq.s32.totalorder %s22, 1
      %p150 = por %p148, %p149
      %p152 = scmp.ne.s32.totalorder %s137, %s151
      %p153 = scmp.eq.s32.totalorder %s22, 0
      %p154 = por %p152, %p153
      %s156 = sadd.s32 %s155, 1
      %p159 = scmp.eq.s32.totalorder %s16, 1
      %p160 = scmp.ne.s32.totalorder %s155, %s157
      %p161 = scmp.eq.s32.totalorder %s16, 0
      %p162 = por %p160, %p161
      %p163 = scmp.ne.s32.totalorder %s155, %s157
      %p164 = scmp.eq.s32.totalorder %s21, 1
      %p165 = por %p163, %p164
      %p166 = scmp.ne.s32.totalorder %s157, %s158
      %p167 = scmp.eq.s32.totalorder %s21, 0
      %p168 = por %p166, %p167
      %p169 = scmp.ne.s32.totalorder %s157, %s158
      %p170 = scmp.eq.s32.totalorder %s22, 1
      %p171 = por %p169, %p170
      %p173 = scmp.ne.s32.totalorder %s158, %s172
      %p174 = scmp.eq.s32.totalorder %s22, 0
      %p175 = por %p173, %p174
      %s176 = ssub.s32 %s16, %s23
      %p177 = scmp.eq.s32.totalorder %s176, 0
      %s179 = sadd.s32 %s178, 1
      %s180 = scalar_select %p177, %s178, %s179
      %p183 = pneg %p177
      %p184 = scmp.eq.s32.totalorder %s16, 1
      %p185 = por %p183, %p184
      %p186 = scmp.ne.s32.totalorder %s178, %s181
      %p187 = scmp.eq.s32.totalorder %s16, 0
      %p188 = por %p186, %p187
      %p189 = scmp.ne.s32.totalorder %s178, %s181
      %p190 = scmp.eq.s32.totalorder %s21, 1
      %p191 = por %p189, %p190
      %p192 = scmp.ne.s32.totalorder %s181, %s182
      %p193 = scmp.eq.s32.totalorder %s21, 0
      %p194 = por %p192, %p193
      %p195 = scmp.ne.s32.totalorder %s181, %s182
      %p196 = scmp.eq.s32.totalorder %s22, 1
      %p197 = por %p195, %p196
      %p199 = scmp.ne.s32.totalorder %s182, %s198
      %p200 = scmp.eq.s32.totalorder %s22, 0
      %p201 = por %p199, %p200
      %p202 = scmp.le.s32.totalorder 1, %s16
      %p203 = scmp.lt.s32.totalorder %s16, 3
      %p204 = pnand %p202, %p203
      %p205 = pneg %p204
      // Predicated region
      $region9: #{tpu_custom_call.1} parent=5 // pred_check
        _
      $region10: #{tpu_custom_call.1} parent=5 // pred_check_branch
        %207 = sbr.rel (%p204) target = $region12
      $region11: #{tpu_custom_call.1} parent=5 // pred_region
        %s208 = ssub.s32 %s16, 1
        // Predicated region
        $region13: #{tpu_custom_call.1} parent=11 // pred_check
          %p209 = pneg %p63
        $region14: #{tpu_custom_call.1} parent=11 // pred_check_branch
          %211 = sbr.rel (%p209) target = $region16
        $region15: #{tpu_custom_call.1} parent=11 // pred_region
          _
        $region16: #{tpu_custom_call.1} parent=11 // pred_fallthru
          _
        // Predicated region
        $region17: #{tpu_custom_call.1} parent=11 // pred_check
          %p212 = pneg %p84
        $region18: #{tpu_custom_call.1} parent=11 // pred_check_branch
          %214 = sbr.rel (%p212) target = $region20
        $region19: #{tpu_custom_call.1} parent=11 // pred_region
          _
        $region20: #{tpu_custom_call.1} parent=11 // pred_fallthru
          _
        // Predicated region
        $region21: #{tpu_custom_call.1} parent=11 // pred_check
          %p215 = pneg %p105
        $region22: #{tpu_custom_call.1} parent=11 // pred_check_branch
          %217 = sbr.rel (%p215) target = $region24
        $region23: #{tpu_custom_call.1} parent=11 // pred_region
          _
        $region24: #{tpu_custom_call.1} parent=11 // pred_fallthru
          _
        // Predicated region
        $region25: #{tpu_custom_call.1} parent=11 // pred_check
          %p218 = pneg %p126
        $region26: #{tpu_custom_call.1} parent=11 // pred_check_branch
          %220 = sbr.rel (%p218) target = $region28
        $region27: #{tpu_custom_call.1} parent=11 // pred_region
          _
        $region28: #{tpu_custom_call.1} parent=11 // pred_fallthru
          _
        // Predicated region
        $region29: #{tpu_custom_call.1} parent=11 // pred_check
          %p221 = pneg %p147
        $region30: #{tpu_custom_call.1} parent=11 // pred_check_branch
          %223 = sbr.rel (%p221) target = $region32
        $region31: #{tpu_custom_call.1} parent=11 // pred_region
          _
        $region32: #{tpu_custom_call.1} parent=11 // pred_fallthru
          _
        // Predicated region
        $region33: #{tpu_custom_call.1} parent=11 // pred_check
          %p224 = pneg %p168
        $region34: #{tpu_custom_call.1} parent=11 // pred_check_branch
          %226 = sbr.rel (%p224) target = $region36
        $region35: #{tpu_custom_call.1} parent=11 // pred_region
          _
        $region36: #{tpu_custom_call.1} parent=11 // pred_fallthru
          _
      $region12: #{tpu_custom_call.1} parent=5 // pred_fallthru
        _
      %p227 = scmp.lt.s32.totalorder %s16, 2
      // Predicated region
      $region37: #{tpu_custom_call.1} parent=5 // pred_check
        %p228 = pneg %p227
      $region38: #{tpu_custom_call.1} parent=5 // pred_check_branch
        %230 = sbr.rel (%p228) target = $region40
      $region39: #{tpu_custom_call.1} parent=5 // pred_region
        // Predicated region
        $region41: #{tpu_custom_call.1} parent=39 // pred_check
          %p231 = pneg %p36
        $region42: #{tpu_custom_call.1} parent=39 // pred_check_branch
          %233 = sbr.rel (%p231) target = $region44
        $region43: #{tpu_custom_call.1} parent=39 // pred_region
          %p234 = scmp.lt.s32.totalorder %s16, 1
          %s235 = scalar_select %p234, %s16, 1
          %s236 = smul.addr %s235, 8
          %s237 = scalar_lea.vmem %s0, %s236
        $region44: #{tpu_custom_call.1} parent=39 // pred_fallthru
          _
      $region40: #{tpu_custom_call.1} parent=5 // pred_fallthru
        _
      %p238 = scmp.le.s32.totalorder 1, %s16
      %p239 = scmp.lt.s32.totalorder %s16, 3
      %p240 = pnand %p238, %p239
      %p241 = pneg %p240
      // Predicated region
      $region45: #{tpu_custom_call.1} parent=5 // pred_check
        _
      $region46: #{tpu_custom_call.1} parent=5 // pred_check_branch
        %243 = sbr.rel (%p240) target = $region48
      $region47: #{tpu_custom_call.1} parent=5 // pred_region
        %s244 = ssub.s32 %s16, 1
        %p245 = scmp.lt.s32.totalorder %s21, 1
        %s246 = scalar_select %p245, %s21, 1
        %s247 = smul.addr %s246, 8
        %s248 = scalar_lea.vmem %s0, %s247
        %p249 = pneg %p42
        %p250 = pneg %p39
        %p251 = pneg %p63
        %p252 = pneg %p60
        %p253 = pneg %p84
        %p254 = pneg %p81
        %p255 = pneg %p105
        %p256 = pneg %p102
        %p257 = pneg %p126
        %p258 = pneg %p123
        %p259 = pneg %p147
        %p260 = pneg %p144
        %p261 = pneg %p168
        %p262 = pneg %p165
        %p263 = pneg %p194
        %p264 = pneg %p191
        %s265 = sand.u32 %s181, 1
        %s266 = scalar_lea.sflag [#allocation3], %s265
        %s267 = sand.u32 %s181, 1
        %s268 = smul.addr %s267, 8
        %s269 = scalar_lea.vmem [#allocation2], %s268
        %p270 = scmp.lt.s32.totalorder %s21, 1
        %s271 = scalar_select %p270, %s21, 1
        %s272 = smul.addr %s271, 8
        %s273 = scalar_lea.vmem %s0, %s272
        %v274 = vld [vmem:[%s273] sm:$0xff]
        %v275 = vld [vmem:[%s6] sm:$0xff]
        %v276 = vld [vmem:[%s1] sm:$0xff]
        %v277 = vld [vmem:[%s1 + $0x8] sm:$0xff]
        %v278 = vld [vmem:[%s1 + $0x10] sm:$0xff]
        %v279 = vld [vmem:[%s1 + $0x18] sm:$0xff]
        %v280 = vld [vmem:[%s1 + $0x20] sm:$0xff]
        %v281 = vld [vmem:[%s1 + $0x28] sm:$0xff]
        %v282 = vld [vmem:[%s1 + $0x30] sm:$0xff]
        %v283 = vld [vmem:[%s1 + $0x38] sm:$0xff]
        %v284 = vld [vmem:[%s1 + $0x40] sm:$0xff]
        %v285 = vld [vmem:[%s1 + $0x48] sm:$0xff]
        %v286 = vld [vmem:[%s1 + $0x50] sm:$0xff]
        %v287 = vld [vmem:[%s1 + $0x58] sm:$0xff]
        %v288 = vld [vmem:[%s1 + $0x60] sm:$0xff]
        %v289 = vld [vmem:[%s1 + $0x68] sm:$0xff]
        %v290 = vld [vmem:[%s1 + $0x70] sm:$0xff]
        %v291 = vld [vmem:[%s1 + $0x78] sm:$0xff]
        %v292 = vld [vmem:[%s1 + $0x80] sm:$0xff]
        %v293 = vld [vmem:[%s1 + $0x88] sm:$0xff]
        %v294 = vld [vmem:[%s1 + $0x90] sm:$0xff]
        %v295 = vld [vmem:[%s1 + $0x98] sm:$0xff]
        %v296 = vld [vmem:[%s1 + $0xa0] sm:$0xff]
        %v297 = vld [vmem:[%s1 + $0xa8] sm:$0xff]
        %v298 = vld [vmem:[%s1 + $0xb0] sm:$0xff]
        %v299 = vld [vmem:[%s1 + $0xb8] sm:$0xff]
        %v300 = vld [vmem:[%s1 + $0xc0] sm:$0xff]
        %v301 = vld [vmem:[%s1 + $0xc8] sm:$0xff]
        %v302 = vld [vmem:[%s1 + $0xd0] sm:$0xff]
        %v303 = vld [vmem:[%s1 + $0xd8] sm:$0xff]
        %v304 = vld [vmem:[%s1 + $0xe0] sm:$0xff]
        %v305 = vld [vmem:[%s1 + $0xe8] sm:$0xff]
        %v306 = vld [vmem:[%s1 + $0xf0] sm:$0xff]
        %v307 = vld [vmem:[%s1 + $0xf8] sm:$0xff]
        %v308 = vld [vmem:[%s1 + $0x100] sm:$0xff]
        %v309 = vld [vmem:[%s1 + $0x108] sm:$0xff]
        %v310 = vld [vmem:[%s1 + $0x110] sm:$0xff]
        %v311 = vld [vmem:[%s1 + $0x118] sm:$0xff]
        %v312 = vld [vmem:[%s1 + $0x120] sm:$0xff]
        %v313 = vld [vmem:[%s1 + $0x128] sm:$0xff]
        %v314 = vld [vmem:[%s1 + $0x130] sm:$0xff]
        %v315 = vld [vmem:[%s1 + $0x138] sm:$0xff]
        %v316 = vld [vmem:[%s1 + $0x140] sm:$0xff]
        %v317 = vld [vmem:[%s1 + $0x148] sm:$0xff]
        %v318 = vld [vmem:[%s1 + $0x150] sm:$0xff]
        %v319 = vld [vmem:[%s1 + $0x158] sm:$0xff]
        %v320 = vld [vmem:[%s1 + $0x160] sm:$0xff]
        %v321 = vld [vmem:[%s1 + $0x168] sm:$0xff]
        %v322 = vld [vmem:[%s1 + $0x170] sm:$0xff]
        %v323 = vld [vmem:[%s1 + $0x178] sm:$0xff]
        %v324 = vld [vmem:[%s2] sm:$0x1]
        %v325 = vld [vmem:[%s2 + $0x1] sm:$0x1]
        %v326 = vld [vmem:[%s2 + $0x2] sm:$0x1]
        %v327 = vld [vmem:[%s2 + $0x3] sm:$0x1]
        %v328 = vld [vmem:[%s2 + $0x4] sm:$0x1]
        %v329 = vld [vmem:[%s2 + $0x5] sm:$0x1]
        %v330 = vld [vmem:[%s2 + $0x6] sm:$0x1]
        %v331 = vld [vmem:[%s2 + $0x7] sm:$0x1]
        %v332 = vld [vmem:[%s2 + $0x8] sm:$0x1]
        %v333 = vld [vmem:[%s2 + $0x9] sm:$0x1]
        %v334 = vld [vmem:[%s2 + $0xa] sm:$0x1]
        %v335 = vld [vmem:[%s2 + $0xb] sm:$0x1]
        %v348 = vperm.slane %v324, 0
        %v349 = vperm.slane %v325, 0
        %v350 = vperm.slane %v326, 0
        %v351 = vperm.slane %v327, 0
        %v352 = vperm.slane %v328, 0
        %v353 = vperm.slane %v329, 0
        %v354 = vperm.slane %v330, 0
        %v355 = vperm.slane %v331, 0
        %v356 = vperm.slane %v332, 0
        %v357 = vperm.slane %v333, 0
        %v358 = vperm.slane %v334, 0
        %v359 = vperm.slane %v335, 0
        %vm372 = vcmask 261120
        %v374 = vsel %vm372, %v274, 0
        %376 = vmatpush.msra.mxu0 0.0
        %377 = vmatpush.msra.mxu0 0.0
        %378 = vmatpush.msra.mxu0 0.0
        %379 = vmatpush.msra.mxu0 0.0
        %380 = vmatpush.msra.mxu0 0.0
        %381 = vmatpush.msra.mxu0 0.0
        %382 = vmatpush.msra.mxu0 0.0
        %383 = vmatpush.msra.mxu0 0.0
        %384 = vmatpush.msra.mxu0 0.0
        %385 = vmatpush.msra.mxu0 0.0
        %386 = vmatpush.msra.mxu0 0.0
        %387 = vmatpush.msra.mxu0 0.0
        %v388 = vand.u32 %v279, 4294901760
        %389 = vmatpush.msra.mxu0 %v388
        %v390 = vand.u32 %v278, 4294901760
        %391 = vmatpush.msra.mxu0 %v390
        %v392 = vand.u32 %v277, 4294901760
        %393 = vmatpush.msra.mxu0 %v392
        %v394 = vand.u32 %v276, 4294901760
        %395 = vmatpush.msra.mxu0 %v394
        %v396 = vand.u32 %v374, 4294901760
        %v397 = vsub.f32 %v374, %v396
        %v398 = vand.u32 %v397, 4294901760
        %v399 = vsub.f32 %v397, %v398
        %v400 = vand.u32 %v399, 4294901760
        %401 = vmatmul.f32.gmra.mxu0 %v400
        %v402 = vpop.f32.mrf.mxu0
        %v403 = vadd.f32 %v348, %v402
        %404 = vdwg.mxu0
        %405 = vmatpush.msra.mxu0 0.0
        %406 = vmatpush.msra.mxu0 0.0
        %407 = vmatpush.msra.mxu0 0.0
        %408 = vmatpush.msra.mxu0 0.0
        %409 = vmatpush.msra.mxu0 0.0
        %410 = vmatpush.msra.mxu0 0.0
        %411 = vmatpush.msra.mxu0 0.0
        %412 = vmatpush.msra.mxu0 0.0
        %413 = vmatpush.msra.mxu0 0.0
        %414 = vmatpush.msra.mxu0 0.0
        %415 = vmatpush.msra.mxu0 0.0
        %416 = vmatpush.msra.mxu0 0.0
        %v417 = vand.u32 %v279, 4294901760
        %v418 = vsub.f32 %v279, %v417
        %v419 = vand.u32 %v418, 4294901760
        %v420 = vsub.f32 %v418, %v419
        %v421 = vand.u32 %v420, 4294901760
        %422 = vmatpush.msra.mxu0 %v421
        %v423 = vand.u32 %v278, 4294901760
        %v424 = vsub.f32 %v278, %v423
        %v425 = vand.u32 %v424, 4294901760
        %v426 = vsub.f32 %v424, %v425
        %v427 = vand.u32 %v426, 4294901760
        %428 = vmatpush.msra.mxu0 %v427
        %v429 = vand.u32 %v277, 4294901760
        %v430 = vsub.f32 %v277, %v429
        %v431 = vand.u32 %v430, 4294901760
        %v432 = vsub.f32 %v430, %v431
        %v433 = vand.u32 %v432, 4294901760
        %434 = vmatpush.msra.mxu0 %v433
        %v435 = vand.u32 %v276, 4294901760
        %v436 = vsub.f32 %v276, %v435
        %v437 = vand.u32 %v436, 4294901760
        %v438 = vsub.f32 %v436, %v437
        %v439 = vand.u32 %v438, 4294901760
        %440 = vmatpush.msra.mxu0 %v439
        %v441 = vand.u32 %v374, 4294901760
        %442 = vmatmul.f32.gmra.mxu0 %v441
        %v443 = vpop.f32.mrf.mxu0
        %v444 = vadd.f32 %v403, %v443
        %445 = vdwg.mxu0
        %446 = vmatpush.msra.mxu0 0.0
        %447 = vmatpush.msra.mxu0 0.0
        %448 = vmatpush.msra.mxu0 0.0
        %449 = vmatpush.msra.mxu0 0.0
        %450 = vmatpush.msra.mxu0 0.0
        %451 = vmatpush.msra.mxu0 0.0
        %452 = vmatpush.msra.mxu0 0.0
        %453 = vmatpush.msra.mxu0 0.0
        %454 = vmatpush.msra.mxu0 0.0
        %455 = vmatpush.msra.mxu0 0.0
        %456 = vmatpush.msra.mxu0 0.0
        %457 = vmatpush.msra.mxu0 0.0
        %v458 = vand.u32 %v279, 4294901760
        %v459 = vsub.f32 %v279, %v458
        %460 = vmatpush.msra.mxu0 %v459
        %v461 = vand.u32 %v278, 4294901760
        %v462 = vsub.f32 %v278, %v461
        %463 = vmatpush.msra.mxu0 %v462
        %v464 = vand.u32 %v277, 4294901760
        %v465 = vsub.f32 %v277, %v464
        %466 = vmatpush.msra.mxu0 %v465
        %v467 = vand.u32 %v276, 4294901760
        %v468 = vsub.f32 %v276, %v467
        %469 = vmatpush.msra.mxu0 %v468
        %v470 = vand.u32 %v374, 4294901760
        %v471 = vsub.f32 %v374, %v470
        %472 = vmatmul.f32.gmra.mxu0 %v471
        %v473 = vpop.f32.mrf.mxu0
        %v474 = vadd.f32 %v444, %v473
        %475 = vdwg.mxu0
        %476 = vmatpush.msra.mxu0 0.0
        %477 = vmatpush.msra.mxu0 0.0
        %478 = vmatpush.msra.mxu0 0.0
        %479 = vmatpush.msra.mxu0 0.0
        %480 = vmatpush.msra.mxu0 0.0
        %481 = vmatpush.msra.mxu0 0.0
        %482 = vmatpush.msra.mxu0 0.0
        %483 = vmatpush.msra.mxu0 0.0
        %484 = vmatpush.msra.mxu0 0.0
        %485 = vmatpush.msra.mxu0 0.0
        %486 = vmatpush.msra.mxu0 0.0
        %487 = vmatpush.msra.mxu0 0.0
        %v488 = vand.u32 %v279, 4294901760
        %489 = vmatpush.msra.mxu0 %v488
        %v490 = vand.u32 %v278, 4294901760
        %491 = vmatpush.msra.mxu0 %v490
        %v492 = vand.u32 %v277, 4294901760
        %493 = vmatpush.msra.mxu0 %v492
        %v494 = vand.u32 %v276, 4294901760
        %495 = vmatpush.msra.mxu0 %v494
        %v496 = vand.u32 %v374, 4294901760
        %v497 = vsub.f32 %v374, %v496
        %v498 = vand.u32 %v497, 4294901760
        %499 = vmatmul.f32.gmra.mxu0 %v498
        %v500 = vpop.f32.mrf.mxu0
        %v501 = vadd.f32 %v474, %v500
        %502 = vdwg.mxu0
        %503 = vmatpush.msra.mxu0 0.0
        %504 = vmatpush.msra.mxu0 0.0
        %505 = vmatpush.msra.mxu0 0.0
        %506 = vmatpush.msra.mxu0 0.0
        %507 = vmatpush.msra.mxu0 0.0
        %508 = vmatpush.msra.mxu0 0.0
        %509 = vmatpush.msra.mxu0 0.0
        %510 = vmatpush.msra.mxu0 0.0
        %511 = vmatpush.msra.mxu0 0.0
        %512 = vmatpush.msra.mxu0 0.0
        %513 = vmatpush.msra.mxu0 0.0
        %514 = vmatpush.msra.mxu0 0.0
        %v515 = vand.u32 %v279, 4294901760
        %v516 = vsub.f32 %v279, %v515
        %v517 = vand.u32 %v516, 4294901760
        %518 = vmatpush.msra.mxu0 %v517
        %v519 = vand.u32 %v278, 4294901760
        %v520 = vsub.f32 %v278, %v519
        %v521 = vand.u32 %v520, 4294901760
        %522 = vmatpush.msra.mxu0 %v521
        %v523 = vand.u32 %v277, 4294901760
        %v524 = vsub.f32 %v277, %v523
        %v525 = vand.u32 %v524, 4294901760
        %526 = vmatpush.msra.mxu0 %v525
        %v527 = vand.u32 %v276, 4294901760
        %v528 = vsub.f32 %v276, %v527
        %v529 = vand.u32 %v528, 4294901760
        %530 = vmatpush.msra.mxu0 %v529
        %v531 = vand.u32 %v374, 4294901760
        %532 = vmatmul.f32.gmra.mxu0 %v531
        %v533 = vpop.f32.mrf.mxu0
        %v534 = vadd.f32 %v501, %v533
        %535 = vdwg.mxu0
        %536 = vmatpush.msra.mxu0 0.0
        %537 = vmatpush.msra.mxu0 0.0
        %538 = vmatpush.msra.mxu0 0.0
        %539 = vmatpush.msra.mxu0 0.0
        %540 = vmatpush.msra.mxu0 0.0
        %541 = vmatpush.msra.mxu0 0.0
        %542 = vmatpush.msra.mxu0 0.0
        %543 = vmatpush.msra.mxu0 0.0
        %544 = vmatpush.msra.mxu0 0.0
        %545 = vmatpush.msra.mxu0 0.0
        %546 = vmatpush.msra.mxu0 0.0
        %547 = vmatpush.msra.mxu0 0.0
        %v548 = vand.u32 %v279, 4294901760
        %549 = vmatpush.msra.mxu0 %v548
        %v550 = vand.u32 %v278, 4294901760
        %551 = vmatpush.msra.mxu0 %v550
        %v552 = vand.u32 %v277, 4294901760
        %553 = vmatpush.msra.mxu0 %v552
        %v554 = vand.u32 %v276, 4294901760
        %555 = vmatpush.msra.mxu0 %v554
        %v556 = vand.u32 %v374, 4294901760
        %557 = vmatmul.f32.gmra.mxu0 %v556
        %v558 = vpop.f32.mrf.mxu0
        %v559 = vadd.f32 %v534, %v558
        %560 = vdwg.mxu0
        %561 = vmatpush.msra.mxu0 0.0
        %562 = vmatpush.msra.mxu0 0.0
        %563 = vmatpush.msra.mxu0 0.0
        %564 = vmatpush.msra.mxu0 0.0
        %565 = vmatpush.msra.mxu0 0.0
        %566 = vmatpush.msra.mxu0 0.0
        %567 = vmatpush.msra.mxu0 0.0
        %568 = vmatpush.msra.mxu0 0.0
        %569 = vmatpush.msra.mxu0 0.0
        %570 = vmatpush.msra.mxu0 0.0
        %571 = vmatpush.msra.mxu0 0.0
        %572 = vmatpush.msra.mxu0 0.0
        %v573 = vand.u32 %v283, 4294901760
        %574 = vmatpush.msra.mxu0 %v573
        %v575 = vand.u32 %v282, 4294901760
        %576 = vmatpush.msra.mxu0 %v575
        %v577 = vand.u32 %v281, 4294901760
        %578 = vmatpush.msra.mxu0 %v577
        %v579 = vand.u32 %v280, 4294901760
        %580 = vmatpush.msra.mxu0 %v579
        %v581 = vand.u32 %v374, 4294901760
        %v582 = vsub.f32 %v374, %v581
        %v583 = vand.u32 %v582, 4294901760
        %v584 = vsub.f32 %v582, %v583
        %v585 = vand.u32 %v584, 4294901760
        %586 = vmatmul.f32.gmra.mxu0 %v585
        %v587 = vpop.f32.mrf.mxu0
        %v588 = vadd.f32 %v349, %v587
        %589 = vdwg.mxu0
        %590 = vmatpush.msra.mxu0 0.0
        %591 = vmatpush.msra.mxu0 0.0
        %592 = vmatpush.msra.mxu0 0.0
        %593 = vmatpush.msra.mxu0 0.0
        %594 = vmatpush.msra.mxu0 0.0
        %595 = vmatpush.msra.mxu0 0.0
        %596 = vmatpush.msra.mxu0 0.0
        %597 = vmatpush.msra.mxu0 0.0
        %598 = vmatpush.msra.mxu0 0.0
        %599 = vmatpush.msra.mxu0 0.0
        %600 = vmatpush.msra.mxu0 0.0
        %601 = vmatpush.msra.mxu0 0.0
        %v602 = vand.u32 %v283, 4294901760
        %v603 = vsub.f32 %v283, %v602
        %v604 = vand.u32 %v603, 4294901760
        %v605 = vsub.f32 %v603, %v604
        %v606 = vand.u32 %v605, 4294901760
        %607 = vmatpush.msra.mxu0 %v606
        %v608 = vand.u32 %v282, 4294901760
        %v609 = vsub.f32 %v282, %v608
        %v610 = vand.u32 %v609, 4294901760
        %v611 = vsub.f32 %v609, %v610
        %v612 = vand.u32 %v611, 4294901760
        %613 = vmatpush.msra.mxu0 %v612
        %v614 = vand.u32 %v281, 4294901760
        %v615 = vsub.f32 %v281, %v614
        %v616 = vand.u32 %v615, 4294901760
        %v617 = vsub.f32 %v615, %v616
        %v618 = vand.u32 %v617, 4294901760
        %619 = vmatpush.msra.mxu0 %v618
        %v620 = vand.u32 %v280, 4294901760
        %v621 = vsub.f32 %v280, %v620
        %v622 = vand.u32 %v621, 4294901760
        %v623 = vsub.f32 %v621, %v622
        %v624 = vand.u32 %v623, 4294901760
        %625 = vmatpush.msra.mxu0 %v624
        %v626 = vand.u32 %v374, 4294901760
        %627 = vmatmul.f32.gmra.mxu0 %v626
        %v628 = vpop.f32.mrf.mxu0
        %v629 = vadd.f32 %v588, %v628
        %630 = vdwg.mxu0
        %631 = vmatpush.msra.mxu0 0.0
        %632 = vmatpush.msra.mxu0 0.0
        %633 = vmatpush.msra.mxu0 0.0
        %634 = vmatpush.msra.mxu0 0.0
        %635 = vmatpush.msra.mxu0 0.0
        %636 = vmatpush.msra.mxu0 0.0
        %637 = vmatpush.msra.mxu0 0.0
        %638 = vmatpush.msra.mxu0 0.0
        %639 = vmatpush.msra.mxu0 0.0
        %640 = vmatpush.msra.mxu0 0.0
        %641 = vmatpush.msra.mxu0 0.0
        %642 = vmatpush.msra.mxu0 0.0
        %v643 = vand.u32 %v283, 4294901760
        %v644 = vsub.f32 %v283, %v643
        %645 = vmatpush.msra.mxu0 %v644
        %v646 = vand.u32 %v282, 4294901760
        %v647 = vsub.f32 %v282, %v646
        %648 = vmatpush.msra.mxu0 %v647
        %v649 = vand.u32 %v281, 4294901760
        %v650 = vsub.f32 %v281, %v649
        %651 = vmatpush.msra.mxu0 %v650
        %v652 = vand.u32 %v280, 4294901760
        %v653 = vsub.f32 %v280, %v652
        %654 = vmatpush.msra.mxu0 %v653
        %v655 = vand.u32 %v374, 4294901760
        %v656 = vsub.f32 %v374, %v655
        %657 = vmatmul.f32.gmra.mxu0 %v656
        %v658 = vpop.f32.mrf.mxu0
        %v659 = vadd.f32 %v629, %v658
        %660 = vdwg.mxu0
        %661 = vmatpush.msra.mxu0 0.0
        %662 = vmatpush.msra.mxu0 0.0
        %663 = vmatpush.msra.mxu0 0.0
        %664 = vmatpush.msra.mxu0 0.0
        %665 = vmatpush.msra.mxu0 0.0
        %666 = vmatpush.msra.mxu0 0.0
        %667 = vmatpush.msra.mxu0 0.0
        %668 = vmatpush.msra.mxu0 0.0
        %669 = vmatpush.msra.mxu0 0.0
        %670 = vmatpush.msra.mxu0 0.0
        %671 = vmatpush.msra.mxu0 0.0
        %672 = vmatpush.msra.mxu0 0.0
        %v673 = vand.u32 %v283, 4294901760
        %674 = vmatpush.msra.mxu0 %v673
        %v675 = vand.u32 %v282, 4294901760
        %676 = vmatpush.msra.mxu0 %v675
        %v677 = vand.u32 %v281, 4294901760
        %678 = vmatpush.msra.mxu0 %v677
        %v679 = vand.u32 %v280, 4294901760
        %680 = vmatpush.msra.mxu0 %v679
        %v681 = vand.u32 %v374, 4294901760
        %v682 = vsub.f32 %v374, %v681
        %v683 = vand.u32 %v682, 4294901760
        %684 = vmatmul.f32.gmra.mxu0 %v683
        %v685 = vpop.f32.mrf.mxu0
        %v686 = vadd.f32 %v659, %v685
        %687 = vdwg.mxu0
        %688 = vmatpush.msra.mxu0 0.0
        %689 = vmatpush.msra.mxu0 0.0
        %690 = vmatpush.msra.mxu0 0.0
        %691 = vmatpush.msra.mxu0 0.0
        %692 = vmatpush.msra.mxu0 0.0
        %693 = vmatpush.msra.mxu0 0.0
        %694 = vmatpush.msra.mxu0 0.0
        %695 = vmatpush.msra.mxu0 0.0
        %696 = vmatpush.msra.mxu0 0.0
        %697 = vmatpush.msra.mxu0 0.0
        %698 = vmatpush.msra.mxu0 0.0
        %699 = vmatpush.msra.mxu0 0.0
        %v700 = vand.u32 %v283, 4294901760
        %v701 = vsub.f32 %v283, %v700
        %v702 = vand.u32 %v701, 4294901760
        %703 = vmatpush.msra.mxu0 %v702
        %v704 = vand.u32 %v282, 4294901760
        %v705 = vsub.f32 %v282, %v704
        %v706 = vand.u32 %v705, 4294901760
        %707 = vmatpush.msra.mxu0 %v706
        %v708 = vand.u32 %v281, 4294901760
        %v709 = vsub.f32 %v281, %v708
        %v710 = vand.u32 %v709, 4294901760
        %711 = vmatpush.msra.mxu0 %v710
        %v712 = vand.u32 %v280, 4294901760
        %v713 = vsub.f32 %v280, %v712
        %v714 = vand.u32 %v713, 4294901760
        %715 = vmatpush.msra.mxu0 %v714
        %v716 = vand.u32 %v374, 4294901760
        %717 = vmatmul.f32.gmra.mxu0 %v716
        %v718 = vpop.f32.mrf.mxu0
        %v719 = vadd.f32 %v686, %v718
        %720 = vdwg.mxu0
        %721 = vmatpush.msra.mxu0 0.0
        %722 = vmatpush.msra.mxu0 0.0
        %723 = vmatpush.msra.mxu0 0.0
        %724 = vmatpush.msra.mxu0 0.0
        %725 = vmatpush.msra.mxu0 0.0
        %726 = vmatpush.msra.mxu0 0.0
        %727 = vmatpush.msra.mxu0 0.0
        %728 = vmatpush.msra.mxu0 0.0
        %729 = vmatpush.msra.mxu0 0.0
        %730 = vmatpush.msra.mxu0 0.0
        %731 = vmatpush.msra.mxu0 0.0
        %732 = vmatpush.msra.mxu0 0.0
        %v733 = vand.u32 %v283, 4294901760
        %734 = vmatpush.msra.mxu0 %v733
        %v735 = vand.u32 %v282, 4294901760
        %736 = vmatpush.msra.mxu0 %v735
        %v737 = vand.u32 %v281, 4294901760
        %738 = vmatpush.msra.mxu0 %v737
        %v739 = vand.u32 %v280, 4294901760
        %740 = vmatpush.msra.mxu0 %v739
        %v741 = vand.u32 %v374, 4294901760
        %742 = vmatmul.f32.gmra.mxu0 %v741
        %v743 = vpop.f32.mrf.mxu0
        %v744 = vadd.f32 %v719, %v743
        %745 = vdwg.mxu0
        %746 = vmatpush.msra.mxu0 0.0
        %747 = vmatpush.msra.mxu0 0.0
        %748 = vmatpush.msra.mxu0 0.0
        %749 = vmatpush.msra.mxu0 0.0
        %750 = vmatpush.msra.mxu0 0.0
        %751 = vmatpush.msra.mxu0 0.0
        %752 = vmatpush.msra.mxu0 0.0
        %753 = vmatpush.msra.mxu0 0.0
        %754 = vmatpush.msra.mxu0 0.0
        %755 = vmatpush.msra.mxu0 0.0
        %756 = vmatpush.msra.mxu0 0.0
        %757 = vmatpush.msra.mxu0 0.0
        %v758 = vand.u32 %v287, 4294901760
        %759 = vmatpush.msra.mxu0 %v758
        %v760 = vand.u32 %v286, 4294901760
        %761 = vmatpush.msra.mxu0 %v760
        %v762 = vand.u32 %v285, 4294901760
        %763 = vmatpush.msra.mxu0 %v762
        %v764 = vand.u32 %v284, 4294901760
        %765 = vmatpush.msra.mxu0 %v764
        %v766 = vand.u32 %v374, 4294901760
        %v767 = vsub.f32 %v374, %v766
        %v768 = vand.u32 %v767, 4294901760
        %v769 = vsub.f32 %v767, %v768
        %v770 = vand.u32 %v769, 4294901760
        %771 = vmatmul.f32.gmra.mxu0 %v770
        %v772 = vpop.f32.mrf.mxu0
        %v773 = vadd.f32 %v350, %v772
        %774 = vdwg.mxu0
        %775 = vmatpush.msra.mxu0 0.0
        %776 = vmatpush.msra.mxu0 0.0
        %777 = vmatpush.msra.mxu0 0.0
        %778 = vmatpush.msra.mxu0 0.0
        %779 = vmatpush.msra.mxu0 0.0
        %780 = vmatpush.msra.mxu0 0.0
        %781 = vmatpush.msra.mxu0 0.0
        %782 = vmatpush.msra.mxu0 0.0
        %783 = vmatpush.msra.mxu0 0.0
        %784 = vmatpush.msra.mxu0 0.0
        %785 = vmatpush.msra.mxu0 0.0
        %786 = vmatpush.msra.mxu0 0.0
        %v787 = vand.u32 %v287, 4294901760
        %v788 = vsub.f32 %v287, %v787
        %v789 = vand.u32 %v788, 4294901760
        %v790 = vsub.f32 %v788, %v789
        %v791 = vand.u32 %v790, 4294901760
        %792 = vmatpush.msra.mxu0 %v791
        %v793 = vand.u32 %v286, 4294901760
        %v794 = vsub.f32 %v286, %v793
        %v795 = vand.u32 %v794, 4294901760
        %v796 = vsub.f32 %v794, %v795
        %v797 = vand.u32 %v796, 4294901760
        %798 = vmatpush.msra.mxu0 %v797
        %v799 = vand.u32 %v285, 4294901760
        %v800 = vsub.f32 %v285, %v799
        %v801 = vand.u32 %v800, 4294901760
        %v802 = vsub.f32 %v800, %v801
        %v803 = vand.u32 %v802, 4294901760
        %804 = vmatpush.msra.mxu0 %v803
        %v805 = vand.u32 %v284, 4294901760
        %v806 = vsub.f32 %v284, %v805
        %v807 = vand.u32 %v806, 4294901760
        %v808 = vsub.f32 %v806, %v807
        %v809 = vand.u32 %v808, 4294901760
        %810 = vmatpush.msra.mxu0 %v809
        %v811 = vand.u32 %v374, 4294901760
        %812 = vmatmul.f32.gmra.mxu0 %v811
        %v813 = vpop.f32.mrf.mxu0
        %v814 = vadd.f32 %v773, %v813
        %815 = vdwg.mxu0
        %816 = vmatpush.msra.mxu0 0.0
        %817 = vmatpush.msra.mxu0 0.0
        %818 = vmatpush.msra.mxu0 0.0
        %819 = vmatpush.msra.mxu0 0.0
        %820 = vmatpush.msra.mxu0 0.0
        %821 = vmatpush.msra.mxu0 0.0
        %822 = vmatpush.msra.mxu0 0.0
        %823 = vmatpush.msra.mxu0 0.0
        %824 = vmatpush.msra.mxu0 0.0
        %825 = vmatpush.msra.mxu0 0.0
        %826 = vmatpush.msra.mxu0 0.0
        %827 = vmatpush.msra.mxu0 0.0
        %v828 = vand.u32 %v287, 4294901760
        %v829 = vsub.f32 %v287, %v828
        %830 = vmatpush.msra.mxu0 %v829
        %v831 = vand.u32 %v286, 4294901760
        %v832 = vsub.f32 %v286, %v831
        %833 = vmatpush.msra.mxu0 %v832
        %v834 = vand.u32 %v285, 4294901760
        %v835 = vsub.f32 %v285, %v834
        %836 = vmatpush.msra.mxu0 %v835
        %v837 = vand.u32 %v284, 4294901760
        %v838 = vsub.f32 %v284, %v837
        %839 = vmatpush.msra.mxu0 %v838
        %v840 = vand.u32 %v374, 4294901760
        %v841 = vsub.f32 %v374, %v840
        %842 = vmatmul.f32.gmra.mxu0 %v841
        %v843 = vpop.f32.mrf.mxu0
        %v844 = vadd.f32 %v814, %v843
        %845 = vdwg.mxu0
        %846 = vmatpush.msra.mxu0 0.0
        %847 = vmatpush.msra.mxu0 0.0
        %848 = vmatpush.msra.mxu0 0.0
        %849 = vmatpush.msra.mxu0 0.0
        %850 = vmatpush.msra.mxu0 0.0
        %851 = vmatpush.msra.mxu0 0.0
        %852 = vmatpush.msra.mxu0 0.0
        %853 = vmatpush.msra.mxu0 0.0
        %854 = vmatpush.msra.mxu0 0.0
        %855 = vmatpush.msra.mxu0 0.0
        %856 = vmatpush.msra.mxu0 0.0
        %857 = vmatpush.msra.mxu0 0.0
        %v858 = vand.u32 %v287, 4294901760
        %859 = vmatpush.msra.mxu0 %v858
        %v860 = vand.u32 %v286, 4294901760
        %861 = vmatpush.msra.mxu0 %v860
        %v862 = vand.u32 %v285, 4294901760
        %863 = vmatpush.msra.mxu0 %v862
        %v864 = vand.u32 %v284, 4294901760
        %865 = vmatpush.msra.mxu0 %v864
        %v866 = vand.u32 %v374, 4294901760
        %v867 = vsub.f32 %v374, %v866
        %v868 = vand.u32 %v867, 4294901760
        %869 = vmatmul.f32.gmra.mxu0 %v868
        %v870 = vpop.f32.mrf.mxu0
        %v871 = vadd.f32 %v844, %v870
        %872 = vdwg.mxu0
        %873 = vmatpush.msra.mxu0 0.0
        %874 = vmatpush.msra.mxu0 0.0
        %875 = vmatpush.msra.mxu0 0.0
        %876 = vmatpush.msra.mxu0 0.0
        %877 = vmatpush.msra.mxu0 0.0
        %878 = vmatpush.msra.mxu0 0.0
        %879 = vmatpush.msra.mxu0 0.0
        %880 = vmatpush.msra.mxu0 0.0
        %881 = vmatpush.msra.mxu0 0.0
        %882 = vmatpush.msra.mxu0 0.0
        %883 = vmatpush.msra.mxu0 0.0
        %884 = vmatpush.msra.mxu0 0.0
        %v885 = vand.u32 %v287, 4294901760
        %v886 = vsub.f32 %v287, %v885
        %v887 = vand.u32 %v886, 4294901760
        %888 = vmatpush.msra.mxu0 %v887
        %v889 = vand.u32 %v286, 4294901760
        %v890 = vsub.f32 %v286, %v889
        %v891 = vand.u32 %v890, 4294901760
        %892 = vmatpush.msra.mxu0 %v891
        %v893 = vand.u32 %v285, 4294901760
        %v894 = vsub.f32 %v285, %v893
        %v895 = vand.u32 %v894, 4294901760
        %896 = vmatpush.msra.mxu0 %v895
        %v897 = vand.u32 %v284, 4294901760
        %v898 = vsub.f32 %v284, %v897
        %v899 = vand.u32 %v898, 4294901760
        %900 = vmatpush.msra.mxu0 %v899
        %v901 = vand.u32 %v374, 4294901760
        %902 = vmatmul.f32.gmra.mxu0 %v901
        %v903 = vpop.f32.mrf.mxu0
        %v904 = vadd.f32 %v871, %v903
        %905 = vdwg.mxu0
        %906 = vmatpush.msra.mxu0 0.0
        %907 = vmatpush.msra.mxu0 0.0
        %908 = vmatpush.msra.mxu0 0.0
        %909 = vmatpush.msra.mxu0 0.0
        %910 = vmatpush.msra.mxu0 0.0
        %911 = vmatpush.msra.mxu0 0.0
        %912 = vmatpush.msra.mxu0 0.0
        %913 = vmatpush.msra.mxu0 0.0
        %914 = vmatpush.msra.mxu0 0.0
        %915 = vmatpush.msra.mxu0 0.0
        %916 = vmatpush.msra.mxu0 0.0
        %917 = vmatpush.msra.mxu0 0.0
        %v918 = vand.u32 %v287, 4294901760
        %919 = vmatpush.msra.mxu0 %v918
        %v920 = vand.u32 %v286, 4294901760
        %921 = vmatpush.msra.mxu0 %v920
        %v922 = vand.u32 %v285, 4294901760
        %923 = vmatpush.msra.mxu0 %v922
        %v924 = vand.u32 %v284, 4294901760
        %925 = vmatpush.msra.mxu0 %v924
        %v926 = vand.u32 %v374, 4294901760
        %927 = vmatmul.f32.gmra.mxu0 %v926
        %v928 = vpop.f32.mrf.mxu0
        %v929 = vadd.f32 %v904, %v928
        %930 = vdwg.mxu0
        %931 = vmatpush.msra.mxu0 0.0
        %932 = vmatpush.msra.mxu0 0.0
        %933 = vmatpush.msra.mxu0 0.0
        %934 = vmatpush.msra.mxu0 0.0
        %935 = vmatpush.msra.mxu0 0.0
        %936 = vmatpush.msra.mxu0 0.0
        %937 = vmatpush.msra.mxu0 0.0
        %938 = vmatpush.msra.mxu0 0.0
        %939 = vmatpush.msra.mxu0 0.0
        %940 = vmatpush.msra.mxu0 0.0
        %941 = vmatpush.msra.mxu0 0.0
        %942 = vmatpush.msra.mxu0 0.0
        %v943 = vand.u32 %v291, 4294901760
        %944 = vmatpush.msra.mxu0 %v943
        %v945 = vand.u32 %v290, 4294901760
        %946 = vmatpush.msra.mxu0 %v945
        %v947 = vand.u32 %v289, 4294901760
        %948 = vmatpush.msra.mxu0 %v947
        %v949 = vand.u32 %v288, 4294901760
        %950 = vmatpush.msra.mxu0 %v949
        %v951 = vand.u32 %v374, 4294901760
        %v952 = vsub.f32 %v374, %v951
        %v953 = vand.u32 %v952, 4294901760
        %v954 = vsub.f32 %v952, %v953
        %v955 = vand.u32 %v954, 4294901760
        %956 = vmatmul.f32.gmra.mxu0 %v955
        %v957 = vpop.f32.mrf.mxu0
        %v958 = vadd.f32 %v351, %v957
        %959 = vdwg.mxu0
        %960 = vmatpush.msra.mxu0 0.0
        %961 = vmatpush.msra.mxu0 0.0
        %962 = vmatpush.msra.mxu0 0.0
        %963 = vmatpush.msra.mxu0 0.0
        %964 = vmatpush.msra.mxu0 0.0
        %965 = vmatpush.msra.mxu0 0.0
        %966 = vmatpush.msra.mxu0 0.0
        %967 = vmatpush.msra.mxu0 0.0
        %968 = vmatpush.msra.mxu0 0.0
        %969 = vmatpush.msra.mxu0 0.0
        %970 = vmatpush.msra.mxu0 0.0
        %971 = vmatpush.msra.mxu0 0.0
        %v972 = vand.u32 %v291, 4294901760
        %v973 = vsub.f32 %v291, %v972
        %v974 = vand.u32 %v973, 4294901760
        %v975 = vsub.f32 %v973, %v974
        %v976 = vand.u32 %v975, 4294901760
        %977 = vmatpush.msra.mxu0 %v976
        %v978 = vand.u32 %v290, 4294901760
        %v979 = vsub.f32 %v290, %v978
        %v980 = vand.u32 %v979, 4294901760
        %v981 = vsub.f32 %v979, %v980
        %v982 = vand.u32 %v981, 4294901760
        %983 = vmatpush.msra.mxu0 %v982
        %v984 = vand.u32 %v289, 4294901760
        %v985 = vsub.f32 %v289, %v984
        %v986 = vand.u32 %v985, 4294901760
        %v987 = vsub.f32 %v985, %v986
        %v988 = vand.u32 %v987, 4294901760
        %989 = vmatpush.msra.mxu0 %v988
        %v990 = vand.u32 %v288, 4294901760
        %v991 = vsub.f32 %v288, %v990
        %v992 = vand.u32 %v991, 4294901760
        %v993 = vsub.f32 %v991, %v992
        %v994 = vand.u32 %v993, 4294901760
        %995 = vmatpush.msra.mxu0 %v994
        %v996 = vand.u32 %v374, 4294901760
        %997 = vmatmul.f32.gmra.mxu0 %v996
        %v998 = vpop.f32.mrf.mxu0
        %v999 = vadd.f32 %v958, %v998
        %1000 = vdwg.mxu0
        %1001 = vmatpush.msra.mxu0 0.0
        %1002 = vmatpush.msra.mxu0 0.0
        %1003 = vmatpush.msra.mxu0 0.0
        %1004 = vmatpush.msra.mxu0 0.0
        %1005 = vmatpush.msra.mxu0 0.0
        %1006 = vmatpush.msra.mxu0 0.0
        %1007 = vmatpush.msra.mxu0 0.0
        %1008 = vmatpush.msra.mxu0 0.0
        %1009 = vmatpush.msra.mxu0 0.0
        %1010 = vmatpush.msra.mxu0 0.0
        %1011 = vmatpush.msra.mxu0 0.0
        %1012 = vmatpush.msra.mxu0 0.0
        %v1013 = vand.u32 %v291, 4294901760
        %v1014 = vsub.f32 %v291, %v1013
        %1015 = vmatpush.msra.mxu0 %v1014
        %v1016 = vand.u32 %v290, 4294901760
        %v1017 = vsub.f32 %v290, %v1016
        %1018 = vmatpush.msra.mxu0 %v1017
        %v1019 = vand.u32 %v289, 4294901760
        %v1020 = vsub.f32 %v289, %v1019
        %1021 = vmatpush.msra.mxu0 %v1020
        %v1022 = vand.u32 %v288, 4294901760
        %v1023 = vsub.f32 %v288, %v1022
        %1024 = vmatpush.msra.mxu0 %v1023
        %v1025 = vand.u32 %v374, 4294901760
        %v1026 = vsub.f32 %v374, %v1025
        %1027 = vmatmul.f32.gmra.mxu0 %v1026
        %v1028 = vpop.f32.mrf.mxu0
        %v1029 = vadd.f32 %v999, %v1028
        %1030 = vdwg.mxu0
        %1031 = vmatpush.msra.mxu0 0.0
        %1032 = vmatpush.msra.mxu0 0.0
        %1033 = vmatpush.msra.mxu0 0.0
        %1034 = vmatpush.msra.mxu0 0.0
        %1035 = vmatpush.msra.mxu0 0.0
        %1036 = vmatpush.msra.mxu0 0.0
        %1037 = vmatpush.msra.mxu0 0.0
        %1038 = vmatpush.msra.mxu0 0.0
        %1039 = vmatpush.msra.mxu0 0.0
        %1040 = vmatpush.msra.mxu0 0.0
        %1041 = vmatpush.msra.mxu0 0.0
        %1042 = vmatpush.msra.mxu0 0.0
        %v1043 = vand.u32 %v291, 4294901760
        %1044 = vmatpush.msra.mxu0 %v1043
        %v1045 = vand.u32 %v290, 4294901760
        %1046 = vmatpush.msra.mxu0 %v1045
        %v1047 = vand.u32 %v289, 4294901760
        %1048 = vmatpush.msra.mxu0 %v1047
        %v1049 = vand.u32 %v288, 4294901760
        %1050 = vmatpush.msra.mxu0 %v1049
        %v1051 = vand.u32 %v374, 4294901760
        %v1052 = vsub.f32 %v374, %v1051
        %v1053 = vand.u32 %v1052, 4294901760
        %1054 = vmatmul.f32.gmra.mxu0 %v1053
        %v1055 = vpop.f32.mrf.mxu0
        %v1056 = vadd.f32 %v1029, %v1055
        %1057 = vdwg.mxu0
        %1058 = vmatpush.msra.mxu0 0.0
        %1059 = vmatpush.msra.mxu0 0.0
        %1060 = vmatpush.msra.mxu0 0.0
        %1061 = vmatpush.msra.mxu0 0.0
        %1062 = vmatpush.msra.mxu0 0.0
        %1063 = vmatpush.msra.mxu0 0.0
        %1064 = vmatpush.msra.mxu0 0.0
        %1065 = vmatpush.msra.mxu0 0.0
        %1066 = vmatpush.msra.mxu0 0.0
        %1067 = vmatpush.msra.mxu0 0.0
        %1068 = vmatpush.msra.mxu0 0.0
        %1069 = vmatpush.msra.mxu0 0.0
        %v1070 = vand.u32 %v291, 4294901760
        %v1071 = vsub.f32 %v291, %v1070
        %v1072 = vand.u32 %v1071, 4294901760
        %1073 = vmatpush.msra.mxu0 %v1072
        %v1074 = vand.u32 %v290, 4294901760
        %v1075 = vsub.f32 %v290, %v1074
        %v1076 = vand.u32 %v1075, 4294901760
        %1077 = vmatpush.msra.mxu0 %v1076
        %v1078 = vand.u32 %v289, 4294901760
        %v1079 = vsub.f32 %v289, %v1078
        %v1080 = vand.u32 %v1079, 4294901760
        %1081 = vmatpush.msra.mxu0 %v1080
        %v1082 = vand.u32 %v288, 4294901760
        %v1083 = vsub.f32 %v288, %v1082
        %v1084 = vand.u32 %v1083, 4294901760
        %1085 = vmatpush.msra.mxu0 %v1084
        %v1086 = vand.u32 %v374, 4294901760
        %1087 = vmatmul.f32.gmra.mxu0 %v1086
        %v1088 = vpop.f32.mrf.mxu0
        %v1089 = vadd.f32 %v1056, %v1088
        %1090 = vdwg.mxu0
        %1091 = vmatpush.msra.mxu0 0.0
        %1092 = vmatpush.msra.mxu0 0.0
        %1093 = vmatpush.msra.mxu0 0.0
        %1094 = vmatpush.msra.mxu0 0.0
        %1095 = vmatpush.msra.mxu0 0.0
        %1096 = vmatpush.msra.mxu0 0.0
        %1097 = vmatpush.msra.mxu0 0.0
        %1098 = vmatpush.msra.mxu0 0.0
        %1099 = vmatpush.msra.mxu0 0.0
        %1100 = vmatpush.msra.mxu0 0.0
        %1101 = vmatpush.msra.mxu0 0.0
        %1102 = vmatpush.msra.mxu0 0.0
        %v1103 = vand.u32 %v291, 4294901760
        %1104 = vmatpush.msra.mxu0 %v1103
        %v1105 = vand.u32 %v290, 4294901760
        %1106 = vmatpush.msra.mxu0 %v1105
        %v1107 = vand.u32 %v289, 4294901760
        %1108 = vmatpush.msra.mxu0 %v1107
        %v1109 = vand.u32 %v288, 4294901760
        %1110 = vmatpush.msra.mxu0 %v1109
        %v1111 = vand.u32 %v374, 4294901760
        %1112 = vmatmul.f32.gmra.mxu0 %v1111
        %v1113 = vpop.f32.mrf.mxu0
        %v1114 = vadd.f32 %v1089, %v1113
        %1115 = vdwg.mxu0
        %1116 = vmatpush.msra.mxu0 0.0
        %1117 = vmatpush.msra.mxu0 0.0
        %1118 = vmatpush.msra.mxu0 0.0
        %1119 = vmatpush.msra.mxu0 0.0
        %1120 = vmatpush.msra.mxu0 0.0
        %1121 = vmatpush.msra.mxu0 0.0
        %1122 = vmatpush.msra.mxu0 0.0
        %1123 = vmatpush.msra.mxu0 0.0
        %1124 = vmatpush.msra.mxu0 0.0
        %1125 = vmatpush.msra.mxu0 0.0
        %1126 = vmatpush.msra.mxu0 0.0
        %1127 = vmatpush.msra.mxu0 0.0
        %v1128 = vand.u32 %v295, 4294901760
        %1129 = vmatpush.msra.mxu0 %v1128
        %v1130 = vand.u32 %v294, 4294901760
        %1131 = vmatpush.msra.mxu0 %v1130
        %v1132 = vand.u32 %v293, 4294901760
        %1133 = vmatpush.msra.mxu0 %v1132
        %v1134 = vand.u32 %v292, 4294901760
        %1135 = vmatpush.msra.mxu0 %v1134
        %v1136 = vand.u32 %v374, 4294901760
        %v1137 = vsub.f32 %v374, %v1136
        %v1138 = vand.u32 %v1137, 4294901760
        %v1139 = vsub.f32 %v1137, %v1138
        %v1140 = vand.u32 %v1139, 4294901760
        %1141 = vmatmul.f32.gmra.mxu0 %v1140
        %v1142 = vpop.f32.mrf.mxu0
        %v1143 = vadd.f32 %v352, %v1142
        %1144 = vdwg.mxu0
        %1145 = vmatpush.msra.mxu0 0.0
        %1146 = vmatpush.msra.mxu0 0.0
        %1147 = vmatpush.msra.mxu0 0.0
        %1148 = vmatpush.msra.mxu0 0.0
        %1149 = vmatpush.msra.mxu0 0.0
        %1150 = vmatpush.msra.mxu0 0.0
        %1151 = vmatpush.msra.mxu0 0.0
        %1152 = vmatpush.msra.mxu0 0.0
        %1153 = vmatpush.msra.mxu0 0.0
        %1154 = vmatpush.msra.mxu0 0.0
        %1155 = vmatpush.msra.mxu0 0.0
        %1156 = vmatpush.msra.mxu0 0.0
        %v1157 = vand.u32 %v295, 4294901760
        %v1158 = vsub.f32 %v295, %v1157
        %v1159 = vand.u32 %v1158, 4294901760
        %v1160 = vsub.f32 %v1158, %v1159
        %v1161 = vand.u32 %v1160, 4294901760
        %1162 = vmatpush.msra.mxu0 %v1161
        %v1163 = vand.u32 %v294, 4294901760
        %v1164 = vsub.f32 %v294, %v1163
        %v1165 = vand.u32 %v1164, 4294901760
        %v1166 = vsub.f32 %v1164, %v1165
        %v1167 = vand.u32 %v1166, 4294901760
        %1168 = vmatpush.msra.mxu0 %v1167
        %v1169 = vand.u32 %v293, 4294901760
        %v1170 = vsub.f32 %v293, %v1169
        %v1171 = vand.u32 %v1170, 4294901760
        %v1172 = vsub.f32 %v1170, %v1171
        %v1173 = vand.u32 %v1172, 4294901760
        %1174 = vmatpush.msra.mxu0 %v1173
        %v1175 = vand.u32 %v292, 4294901760
        %v1176 = vsub.f32 %v292, %v1175
        %v1177 = vand.u32 %v1176, 4294901760
        %v1178 = vsub.f32 %v1176, %v1177
        %v1179 = vand.u32 %v1178, 4294901760
        %1180 = vmatpush.msra.mxu0 %v1179
        %v1181 = vand.u32 %v374, 4294901760
        %1182 = vmatmul.f32.gmra.mxu0 %v1181
        %v1183 = vpop.f32.mrf.mxu0
        %v1184 = vadd.f32 %v1143, %v1183
        %1185 = vdwg.mxu0
        %1186 = vmatpush.msra.mxu0 0.0
        %1187 = vmatpush.msra.mxu0 0.0
        %1188 = vmatpush.msra.mxu0 0.0
        %1189 = vmatpush.msra.mxu0 0.0
        %1190 = vmatpush.msra.mxu0 0.0
        %1191 = vmatpush.msra.mxu0 0.0
        %1192 = vmatpush.msra.mxu0 0.0
        %1193 = vmatpush.msra.mxu0 0.0
        %1194 = vmatpush.msra.mxu0 0.0
        %1195 = vmatpush.msra.mxu0 0.0
        %1196 = vmatpush.msra.mxu0 0.0
        %1197 = vmatpush.msra.mxu0 0.0
        %v1198 = vand.u32 %v295, 4294901760
        %v1199 = vsub.f32 %v295, %v1198
        %1200 = vmatpush.msra.mxu0 %v1199
        %v1201 = vand.u32 %v294, 4294901760
        %v1202 = vsub.f32 %v294, %v1201
        %1203 = vmatpush.msra.mxu0 %v1202
        %v1204 = vand.u32 %v293, 4294901760
        %v1205 = vsub.f32 %v293, %v1204
        %1206 = vmatpush.msra.mxu0 %v1205
        %v1207 = vand.u32 %v292, 4294901760
        %v1208 = vsub.f32 %v292, %v1207
        %1209 = vmatpush.msra.mxu0 %v1208
        %v1210 = vand.u32 %v374, 4294901760
        %v1211 = vsub.f32 %v374, %v1210
        %1212 = vmatmul.f32.gmra.mxu0 %v1211
        %v1213 = vpop.f32.mrf.mxu0
        %v1214 = vadd.f32 %v1184, %v1213
        %1215 = vdwg.mxu0
        %1216 = vmatpush.msra.mxu0 0.0
        %1217 = vmatpush.msra.mxu0 0.0
        %1218 = vmatpush.msra.mxu0 0.0
        %1219 = vmatpush.msra.mxu0 0.0
        %1220 = vmatpush.msra.mxu0 0.0
        %1221 = vmatpush.msra.mxu0 0.0
        %1222 = vmatpush.msra.mxu0 0.0
        %1223 = vmatpush.msra.mxu0 0.0
        %1224 = vmatpush.msra.mxu0 0.0
        %1225 = vmatpush.msra.mxu0 0.0
        %1226 = vmatpush.msra.mxu0 0.0
        %1227 = vmatpush.msra.mxu0 0.0
        %v1228 = vand.u32 %v295, 4294901760
        %1229 = vmatpush.msra.mxu0 %v1228
        %v1230 = vand.u32 %v294, 4294901760
        %1231 = vmatpush.msra.mxu0 %v1230
        %v1232 = vand.u32 %v293, 4294901760
        %1233 = vmatpush.msra.mxu0 %v1232
        %v1234 = vand.u32 %v292, 4294901760
        %1235 = vmatpush.msra.mxu0 %v1234
        %v1236 = vand.u32 %v374, 4294901760
        %v1237 = vsub.f32 %v374, %v1236
        %v1238 = vand.u32 %v1237, 4294901760
        %1239 = vmatmul.f32.gmra.mxu0 %v1238
        %v1240 = vpop.f32.mrf.mxu0
        %v1241 = vadd.f32 %v1214, %v1240
        %1242 = vdwg.mxu0
        %1243 = vmatpush.msra.mxu0 0.0
        %1244 = vmatpush.msra.mxu0 0.0
        %1245 = vmatpush.msra.mxu0 0.0
        %1246 = vmatpush.msra.mxu0 0.0
        %1247 = vmatpush.msra.mxu0 0.0
        %1248 = vmatpush.msra.mxu0 0.0
        %1249 = vmatpush.msra.mxu0 0.0
        %1250 = vmatpush.msra.mxu0 0.0
        %1251 = vmatpush.msra.mxu0 0.0
        %1252 = vmatpush.msra.mxu0 0.0
        %1253 = vmatpush.msra.mxu0 0.0
        %1254 = vmatpush.msra.mxu0 0.0
        %v1255 = vand.u32 %v295, 4294901760
        %v1256 = vsub.f32 %v295, %v1255
        %v1257 = vand.u32 %v1256, 4294901760
        %1258 = vmatpush.msra.mxu0 %v1257
        %v1259 = vand.u32 %v294, 4294901760
        %v1260 = vsub.f32 %v294, %v1259
        %v1261 = vand.u32 %v1260, 4294901760
        %1262 = vmatpush.msra.mxu0 %v1261
        %v1263 = vand.u32 %v293, 4294901760
        %v1264 = vsub.f32 %v293, %v1263
        %v1265 = vand.u32 %v1264, 4294901760
        %1266 = vmatpush.msra.mxu0 %v1265
        %v1267 = vand.u32 %v292, 4294901760
        %v1268 = vsub.f32 %v292, %v1267
        %v1269 = vand.u32 %v1268, 4294901760
        %1270 = vmatpush.msra.mxu0 %v1269
        %v1271 = vand.u32 %v374, 4294901760
        %1272 = vmatmul.f32.gmra.mxu0 %v1271
        %v1273 = vpop.f32.mrf.mxu0
        %v1274 = vadd.f32 %v1241, %v1273
        %1275 = vdwg.mxu0
        %1276 = vmatpush.msra.mxu0 0.0
        %1277 = vmatpush.msra.mxu0 0.0
        %1278 = vmatpush.msra.mxu0 0.0
        %1279 = vmatpush.msra.mxu0 0.0
        %1280 = vmatpush.msra.mxu0 0.0
        %1281 = vmatpush.msra.mxu0 0.0
        %1282 = vmatpush.msra.mxu0 0.0
        %1283 = vmatpush.msra.mxu0 0.0
        %1284 = vmatpush.msra.mxu0 0.0
        %1285 = vmatpush.msra.mxu0 0.0
        %1286 = vmatpush.msra.mxu0 0.0
        %1287 = vmatpush.msra.mxu0 0.0
        %v1288 = vand.u32 %v295, 4294901760
        %1289 = vmatpush.msra.mxu0 %v1288
        %v1290 = vand.u32 %v294, 4294901760
        %1291 = vmatpush.msra.mxu0 %v1290
        %v1292 = vand.u32 %v293, 4294901760
        %1293 = vmatpush.msra.mxu0 %v1292
        %v1294 = vand.u32 %v292, 4294901760
        %1295 = vmatpush.msra.mxu0 %v1294
        %v1296 = vand.u32 %v374, 4294901760
        %1297 = vmatmul.f32.gmra.mxu0 %v1296
        %v1298 = vpop.f32.mrf.mxu0
        %v1299 = vadd.f32 %v1274, %v1298
        %1300 = vdwg.mxu0
        %1301 = vmatpush.msra.mxu0 0.0
        %1302 = vmatpush.msra.mxu0 0.0
        %1303 = vmatpush.msra.mxu0 0.0
        %1304 = vmatpush.msra.mxu0 0.0
        %1305 = vmatpush.msra.mxu0 0.0
        %1306 = vmatpush.msra.mxu0 0.0
        %1307 = vmatpush.msra.mxu0 0.0
        %1308 = vmatpush.msra.mxu0 0.0
        %1309 = vmatpush.msra.mxu0 0.0
        %1310 = vmatpush.msra.mxu0 0.0
        %1311 = vmatpush.msra.mxu0 0.0
        %1312 = vmatpush.msra.mxu0 0.0
        %v1313 = vand.u32 %v299, 4294901760
        %1314 = vmatpush.msra.mxu0 %v1313
        %v1315 = vand.u32 %v298, 4294901760
        %1316 = vmatpush.msra.mxu0 %v1315
        %v1317 = vand.u32 %v297, 4294901760
        %1318 = vmatpush.msra.mxu0 %v1317
        %v1319 = vand.u32 %v296, 4294901760
        %1320 = vmatpush.msra.mxu0 %v1319
        %v1321 = vand.u32 %v374, 4294901760
        %v1322 = vsub.f32 %v374, %v1321
        %v1323 = vand.u32 %v1322, 4294901760
        %v1324 = vsub.f32 %v1322, %v1323
        %v1325 = vand.u32 %v1324, 4294901760
        %1326 = vmatmul.f32.gmra.mxu0 %v1325
        %v1327 = vpop.f32.mrf.mxu0
        %v1328 = vadd.f32 %v353, %v1327
        %1329 = vdwg.mxu0
        %1330 = vmatpush.msra.mxu0 0.0
        %1331 = vmatpush.msra.mxu0 0.0
        %1332 = vmatpush.msra.mxu0 0.0
        %1333 = vmatpush.msra.mxu0 0.0
        %1334 = vmatpush.msra.mxu0 0.0
        %1335 = vmatpush.msra.mxu0 0.0
        %1336 = vmatpush.msra.mxu0 0.0
        %1337 = vmatpush.msra.mxu0 0.0
        %1338 = vmatpush.msra.mxu0 0.0
        %1339 = vmatpush.msra.mxu0 0.0
        %1340 = vmatpush.msra.mxu0 0.0
        %1341 = vmatpush.msra.mxu0 0.0
        %v1342 = vand.u32 %v299, 4294901760
        %v1343 = vsub.f32 %v299, %v1342
        %v1344 = vand.u32 %v1343, 4294901760
        %v1345 = vsub.f32 %v1343, %v1344
        %v1346 = vand.u32 %v1345, 4294901760
        %1347 = vmatpush.msra.mxu0 %v1346
        %v1348 = vand.u32 %v298, 4294901760
        %v1349 = vsub.f32 %v298, %v1348
        %v1350 = vand.u32 %v1349, 4294901760
        %v1351 = vsub.f32 %v1349, %v1350
        %v1352 = vand.u32 %v1351, 4294901760
        %1353 = vmatpush.msra.mxu0 %v1352
        %v1354 = vand.u32 %v297, 4294901760
        %v1355 = vsub.f32 %v297, %v1354
        %v1356 = vand.u32 %v1355, 4294901760
        %v1357 = vsub.f32 %v1355, %v1356
        %v1358 = vand.u32 %v1357, 4294901760
        %1359 = vmatpush.msra.mxu0 %v1358
        %v1360 = vand.u32 %v296, 4294901760
        %v1361 = vsub.f32 %v296, %v1360
        %v1362 = vand.u32 %v1361, 4294901760
        %v1363 = vsub.f32 %v1361, %v1362
        %v1364 = vand.u32 %v1363, 4294901760
        %1365 = vmatpush.msra.mxu0 %v1364
        %v1366 = vand.u32 %v374, 4294901760
        %1367 = vmatmul.f32.gmra.mxu0 %v1366
        %v1368 = vpop.f32.mrf.mxu0
        %v1369 = vadd.f32 %v1328, %v1368
        %1370 = vdwg.mxu0
        %1371 = vmatpush.msra.mxu0 0.0
        %1372 = vmatpush.msra.mxu0 0.0
        %1373 = vmatpush.msra.mxu0 0.0
        %1374 = vmatpush.msra.mxu0 0.0
        %1375 = vmatpush.msra.mxu0 0.0
        %1376 = vmatpush.msra.mxu0 0.0
        %1377 = vmatpush.msra.mxu0 0.0
        %1378 = vmatpush.msra.mxu0 0.0
        %1379 = vmatpush.msra.mxu0 0.0
        %1380 = vmatpush.msra.mxu0 0.0
        %1381 = vmatpush.msra.mxu0 0.0
        %1382 = vmatpush.msra.mxu0 0.0
        %v1383 = vand.u32 %v299, 4294901760
        %v1384 = vsub.f32 %v299, %v1383
        %1385 = vmatpush.msra.mxu0 %v1384
        %v1386 = vand.u32 %v298, 4294901760
        %v1387 = vsub.f32 %v298, %v1386
        %1388 = vmatpush.msra.mxu0 %v1387
        %v1389 = vand.u32 %v297, 4294901760
        %v1390 = vsub.f32 %v297, %v1389
        %1391 = vmatpush.msra.mxu0 %v1390
        %v1392 = vand.u32 %v296, 4294901760
        %v1393 = vsub.f32 %v296, %v1392
        %1394 = vmatpush.msra.mxu0 %v1393
        %v1395 = vand.u32 %v374, 4294901760
        %v1396 = vsub.f32 %v374, %v1395
        %1397 = vmatmul.f32.gmra.mxu0 %v1396
        %v1398 = vpop.f32.mrf.mxu0
        %v1399 = vadd.f32 %v1369, %v1398
        %1400 = vdwg.mxu0
        %1401 = vmatpush.msra.mxu0 0.0
        %1402 = vmatpush.msra.mxu0 0.0
        %1403 = vmatpush.msra.mxu0 0.0
        %1404 = vmatpush.msra.mxu0 0.0
        %1405 = vmatpush.msra.mxu0 0.0
        %1406 = vmatpush.msra.mxu0 0.0
        %1407 = vmatpush.msra.mxu0 0.0
        %1408 = vmatpush.msra.mxu0 0.0
        %1409 = vmatpush.msra.mxu0 0.0
        %1410 = vmatpush.msra.mxu0 0.0
        %1411 = vmatpush.msra.mxu0 0.0
        %1412 = vmatpush.msra.mxu0 0.0
        %v1413 = vand.u32 %v299, 4294901760
        %1414 = vmatpush.msra.mxu0 %v1413
        %v1415 = vand.u32 %v298, 4294901760
        %1416 = vmatpush.msra.mxu0 %v1415
        %v1417 = vand.u32 %v297, 4294901760
        %1418 = vmatpush.msra.mxu0 %v1417
        %v1419 = vand.u32 %v296, 4294901760
        %1420 = vmatpush.msra.mxu0 %v1419
        %v1421 = vand.u32 %v374, 4294901760
        %v1422 = vsub.f32 %v374, %v1421
        %v1423 = vand.u32 %v1422, 4294901760
        %1424 = vmatmul.f32.gmra.mxu0 %v1423
        %v1425 = vpop.f32.mrf.mxu0
        %v1426 = vadd.f32 %v1399, %v1425
        %1427 = vdwg.mxu0
        %1428 = vmatpush.msra.mxu0 0.0
        %1429 = vmatpush.msra.mxu0 0.0
        %1430 = vmatpush.msra.mxu0 0.0
        %1431 = vmatpush.msra.mxu0 0.0
        %1432 = vmatpush.msra.mxu0 0.0
        %1433 = vmatpush.msra.mxu0 0.0
        %1434 = vmatpush.msra.mxu0 0.0
        %1435 = vmatpush.msra.mxu0 0.0
        %1436 = vmatpush.msra.mxu0 0.0
        %1437 = vmatpush.msra.mxu0 0.0
        %1438 = vmatpush.msra.mxu0 0.0
        %1439 = vmatpush.msra.mxu0 0.0
        %v1440 = vand.u32 %v299, 4294901760
        %v1441 = vsub.f32 %v299, %v1440
        %v1442 = vand.u32 %v1441, 4294901760
        %1443 = vmatpush.msra.mxu0 %v1442
        %v1444 = vand.u32 %v298, 4294901760
        %v1445 = vsub.f32 %v298, %v1444
        %v1446 = vand.u32 %v1445, 4294901760
        %1447 = vmatpush.msra.mxu0 %v1446
        %v1448 = vand.u32 %v297, 4294901760
        %v1449 = vsub.f32 %v297, %v1448
        %v1450 = vand.u32 %v1449, 4294901760
        %1451 = vmatpush.msra.mxu0 %v1450
        %v1452 = vand.u32 %v296, 4294901760
        %v1453 = vsub.f32 %v296, %v1452
        %v1454 = vand.u32 %v1453, 4294901760
        %1455 = vmatpush.msra.mxu0 %v1454
        %v1456 = vand.u32 %v374, 4294901760
        %1457 = vmatmul.f32.gmra.mxu0 %v1456
        %v1458 = vpop.f32.mrf.mxu0
        %v1459 = vadd.f32 %v1426, %v1458
        %1460 = vdwg.mxu0
        %1461 = vmatpush.msra.mxu0 0.0
        %1462 = vmatpush.msra.mxu0 0.0
        %1463 = vmatpush.msra.mxu0 0.0
        %1464 = vmatpush.msra.mxu0 0.0
        %1465 = vmatpush.msra.mxu0 0.0
        %1466 = vmatpush.msra.mxu0 0.0
        %1467 = vmatpush.msra.mxu0 0.0
        %1468 = vmatpush.msra.mxu0 0.0
        %1469 = vmatpush.msra.mxu0 0.0
        %1470 = vmatpush.msra.mxu0 0.0
        %1471 = vmatpush.msra.mxu0 0.0
        %1472 = vmatpush.msra.mxu0 0.0
        %v1473 = vand.u32 %v299, 4294901760
        %1474 = vmatpush.msra.mxu0 %v1473
        %v1475 = vand.u32 %v298, 4294901760
        %1476 = vmatpush.msra.mxu0 %v1475
        %v1477 = vand.u32 %v297, 4294901760
        %1478 = vmatpush.msra.mxu0 %v1477
        %v1479 = vand.u32 %v296, 4294901760
        %1480 = vmatpush.msra.mxu0 %v1479
        %v1481 = vand.u32 %v374, 4294901760
        %1482 = vmatmul.f32.gmra.mxu0 %v1481
        %v1483 = vpop.f32.mrf.mxu0
        %v1484 = vadd.f32 %v1459, %v1483
        %1485 = vdwg.mxu0
        %1486 = vmatpush.msra.mxu0 0.0
        %1487 = vmatpush.msra.mxu0 0.0
        %1488 = vmatpush.msra.mxu0 0.0
        %1489 = vmatpush.msra.mxu0 0.0
        %1490 = vmatpush.msra.mxu0 0.0
        %1491 = vmatpush.msra.mxu0 0.0
        %1492 = vmatpush.msra.mxu0 0.0
        %1493 = vmatpush.msra.mxu0 0.0
        %1494 = vmatpush.msra.mxu0 0.0
        %1495 = vmatpush.msra.mxu0 0.0
        %1496 = vmatpush.msra.mxu0 0.0
        %1497 = vmatpush.msra.mxu0 0.0
        %v1498 = vand.u32 %v303, 4294901760
        %1499 = vmatpush.msra.mxu0 %v1498
        %v1500 = vand.u32 %v302, 4294901760
        %1501 = vmatpush.msra.mxu0 %v1500
        %v1502 = vand.u32 %v301, 4294901760
        %1503 = vmatpush.msra.mxu0 %v1502
        %v1504 = vand.u32 %v300, 4294901760
        %1505 = vmatpush.msra.mxu0 %v1504
        %v1506 = vand.u32 %v374, 4294901760
        %v1507 = vsub.f32 %v374, %v1506
        %v1508 = vand.u32 %v1507, 4294901760
        %v1509 = vsub.f32 %v1507, %v1508
        %v1510 = vand.u32 %v1509, 4294901760
        %1511 = vmatmul.f32.gmra.mxu0 %v1510
        %v1512 = vpop.f32.mrf.mxu0
        %v1513 = vadd.f32 %v354, %v1512
        %1514 = vdwg.mxu0
        %1515 = vmatpush.msra.mxu0 0.0
        %1516 = vmatpush.msra.mxu0 0.0
        %1517 = vmatpush.msra.mxu0 0.0
        %1518 = vmatpush.msra.mxu0 0.0
        %1519 = vmatpush.msra.mxu0 0.0
        %1520 = vmatpush.msra.mxu0 0.0
        %1521 = vmatpush.msra.mxu0 0.0
        %1522 = vmatpush.msra.mxu0 0.0
        %1523 = vmatpush.msra.mxu0 0.0
        %1524 = vmatpush.msra.mxu0 0.0
        %1525 = vmatpush.msra.mxu0 0.0
        %1526 = vmatpush.msra.mxu0 0.0
        %v1527 = vand.u32 %v303, 4294901760
        %v1528 = vsub.f32 %v303, %v1527
        %v1529 = vand.u32 %v1528, 4294901760
        %v1530 = vsub.f32 %v1528, %v1529
        %v1531 = vand.u32 %v1530, 4294901760
        %1532 = vmatpush.msra.mxu0 %v1531
        %v1533 = vand.u32 %v302, 4294901760
        %v1534 = vsub.f32 %v302, %v1533
        %v1535 = vand.u32 %v1534, 4294901760
        %v1536 = vsub.f32 %v1534, %v1535
        %v1537 = vand.u32 %v1536, 4294901760
        %1538 = vmatpush.msra.mxu0 %v1537
        %v1539 = vand.u32 %v301, 4294901760
        %v1540 = vsub.f32 %v301, %v1539
        %v1541 = vand.u32 %v1540, 4294901760
        %v1542 = vsub.f32 %v1540, %v1541
        %v1543 = vand.u32 %v1542, 4294901760
        %1544 = vmatpush.msra.mxu0 %v1543
        %v1545 = vand.u32 %v300, 4294901760
        %v1546 = vsub.f32 %v300, %v1545
        %v1547 = vand.u32 %v1546, 4294901760
        %v1548 = vsub.f32 %v1546, %v1547
        %v1549 = vand.u32 %v1548, 4294901760
        %1550 = vmatpush.msra.mxu0 %v1549
        %v1551 = vand.u32 %v374, 4294901760
        %1552 = vmatmul.f32.gmra.mxu0 %v1551
        %v1553 = vpop.f32.mrf.mxu0
        %v1554 = vadd.f32 %v1513, %v1553
        %1555 = vdwg.mxu0
        %1556 = vmatpush.msra.mxu0 0.0
        %1557 = vmatpush.msra.mxu0 0.0
        %1558 = vmatpush.msra.mxu0 0.0
        %1559 = vmatpush.msra.mxu0 0.0
        %1560 = vmatpush.msra.mxu0 0.0
        %1561 = vmatpush.msra.mxu0 0.0
        %1562 = vmatpush.msra.mxu0 0.0
        %1563 = vmatpush.msra.mxu0 0.0
        %1564 = vmatpush.msra.mxu0 0.0
        %1565 = vmatpush.msra.mxu0 0.0
        %1566 = vmatpush.msra.mxu0 0.0
        %1567 = vmatpush.msra.mxu0 0.0
        %v1568 = vand.u32 %v303, 4294901760
        %v1569 = vsub.f32 %v303, %v1568
        %1570 = vmatpush.msra.mxu0 %v1569
        %v1571 = vand.u32 %v302, 4294901760
        %v1572 = vsub.f32 %v302, %v1571
        %1573 = vmatpush.msra.mxu0 %v1572
        %v1574 = vand.u32 %v301, 4294901760
        %v1575 = vsub.f32 %v301, %v1574
        %1576 = vmatpush.msra.mxu0 %v1575
        %v1577 = vand.u32 %v300, 4294901760
        %v1578 = vsub.f32 %v300, %v1577
        %1579 = vmatpush.msra.mxu0 %v1578
        %v1580 = vand.u32 %v374, 4294901760
        %v1581 = vsub.f32 %v374, %v1580
        %1582 = vmatmul.f32.gmra.mxu0 %v1581
        %v1583 = vpop.f32.mrf.mxu0
        %v1584 = vadd.f32 %v1554, %v1583
        %1585 = vdwg.mxu0
        %1586 = vmatpush.msra.mxu0 0.0
        %1587 = vmatpush.msra.mxu0 0.0
        %1588 = vmatpush.msra.mxu0 0.0
        %1589 = vmatpush.msra.mxu0 0.0
        %1590 = vmatpush.msra.mxu0 0.0
        %1591 = vmatpush.msra.mxu0 0.0
        %1592 = vmatpush.msra.mxu0 0.0
        %1593 = vmatpush.msra.mxu0 0.0
        %1594 = vmatpush.msra.mxu0 0.0
        %1595 = vmatpush.msra.mxu0 0.0
        %1596 = vmatpush.msra.mxu0 0.0
        %1597 = vmatpush.msra.mxu0 0.0
        %v1598 = vand.u32 %v303, 4294901760
        %1599 = vmatpush.msra.mxu0 %v1598
        %v1600 = vand.u32 %v302, 4294901760
        %1601 = vmatpush.msra.mxu0 %v1600
        %v1602 = vand.u32 %v301, 4294901760
        %1603 = vmatpush.msra.mxu0 %v1602
        %v1604 = vand.u32 %v300, 4294901760
        %1605 = vmatpush.msra.mxu0 %v1604
        %v1606 = vand.u32 %v374, 4294901760
        %v1607 = vsub.f32 %v374, %v1606
        %v1608 = vand.u32 %v1607, 4294901760
        %1609 = vmatmul.f32.gmra.mxu0 %v1608
        %v1610 = vpop.f32.mrf.mxu0
        %v1611 = vadd.f32 %v1584, %v1610
        %1612 = vdwg.mxu0
        %1613 = vmatpush.msra.mxu0 0.0
        %1614 = vmatpush.msra.mxu0 0.0
        %1615 = vmatpush.msra.mxu0 0.0
        %1616 = vmatpush.msra.mxu0 0.0
        %1617 = vmatpush.msra.mxu0 0.0
        %1618 = vmatpush.msra.mxu0 0.0
        %1619 = vmatpush.msra.mxu0 0.0
        %1620 = vmatpush.msra.mxu0 0.0
        %1621 = vmatpush.msra.mxu0 0.0
        %1622 = vmatpush.msra.mxu0 0.0
        %1623 = vmatpush.msra.mxu0 0.0
        %1624 = vmatpush.msra.mxu0 0.0
        %v1625 = vand.u32 %v303, 4294901760
        %v1626 = vsub.f32 %v303, %v1625
        %v1627 = vand.u32 %v1626, 4294901760
        %1628 = vmatpush.msra.mxu0 %v1627
        %v1629 = vand.u32 %v302, 4294901760
        %v1630 = vsub.f32 %v302, %v1629
        %v1631 = vand.u32 %v1630, 4294901760
        %1632 = vmatpush.msra.mxu0 %v1631
        %v1633 = vand.u32 %v301, 4294901760
        %v1634 = vsub.f32 %v301, %v1633
        %v1635 = vand.u32 %v1634, 4294901760
        %1636 = vmatpush.msra.mxu0 %v1635
        %v1637 = vand.u32 %v300, 4294901760
        %v1638 = vsub.f32 %v300, %v1637
        %v1639 = vand.u32 %v1638, 4294901760
        %1640 = vmatpush.msra.mxu0 %v1639
        %v1641 = vand.u32 %v374, 4294901760
        %1642 = vmatmul.f32.gmra.mxu0 %v1641
        %v1643 = vpop.f32.mrf.mxu0
        %v1644 = vadd.f32 %v1611, %v1643
        %1645 = vdwg.mxu0
        %1646 = vmatpush.msra.mxu0 0.0
        %1647 = vmatpush.msra.mxu0 0.0
        %1648 = vmatpush.msra.mxu0 0.0
        %1649 = vmatpush.msra.mxu0 0.0
        %1650 = vmatpush.msra.mxu0 0.0
        %1651 = vmatpush.msra.mxu0 0.0
        %1652 = vmatpush.msra.mxu0 0.0
        %1653 = vmatpush.msra.mxu0 0.0
        %1654 = vmatpush.msra.mxu0 0.0
        %1655 = vmatpush.msra.mxu0 0.0
        %1656 = vmatpush.msra.mxu0 0.0
        %1657 = vmatpush.msra.mxu0 0.0
        %v1658 = vand.u32 %v303, 4294901760
        %1659 = vmatpush.msra.mxu0 %v1658
        %v1660 = vand.u32 %v302, 4294901760
        %1661 = vmatpush.msra.mxu0 %v1660
        %v1662 = vand.u32 %v301, 4294901760
        %1663 = vmatpush.msra.mxu0 %v1662
        %v1664 = vand.u32 %v300, 4294901760
        %1665 = vmatpush.msra.mxu0 %v1664
        %v1666 = vand.u32 %v374, 4294901760
        %1667 = vmatmul.f32.gmra.mxu0 %v1666
        %v1668 = vpop.f32.mrf.mxu0
        %v1669 = vadd.f32 %v1644, %v1668
        %1670 = vdwg.mxu0
        %1671 = vmatpush.msra.mxu0 0.0
        %1672 = vmatpush.msra.mxu0 0.0
        %1673 = vmatpush.msra.mxu0 0.0
        %1674 = vmatpush.msra.mxu0 0.0
        %1675 = vmatpush.msra.mxu0 0.0
        %1676 = vmatpush.msra.mxu0 0.0
        %1677 = vmatpush.msra.mxu0 0.0
        %1678 = vmatpush.msra.mxu0 0.0
        %1679 = vmatpush.msra.mxu0 0.0
        %1680 = vmatpush.msra.mxu0 0.0
        %1681 = vmatpush.msra.mxu0 0.0
        %1682 = vmatpush.msra.mxu0 0.0
        %v1683 = vand.u32 %v307, 4294901760
        %1684 = vmatpush.msra.mxu0 %v1683
        %v1685 = vand.u32 %v306, 4294901760
        %1686 = vmatpush.msra.mxu0 %v1685
        %v1687 = vand.u32 %v305, 4294901760
        %1688 = vmatpush.msra.mxu0 %v1687
        %v1689 = vand.u32 %v304, 4294901760
        %1690 = vmatpush.msra.mxu0 %v1689
        %v1691 = vand.u32 %v374, 4294901760
        %v1692 = vsub.f32 %v374, %v1691
        %v1693 = vand.u32 %v1692, 4294901760
        %v1694 = vsub.f32 %v1692, %v1693
        %v1695 = vand.u32 %v1694, 4294901760
        %1696 = vmatmul.f32.gmra.mxu0 %v1695
        %v1697 = vpop.f32.mrf.mxu0
        %v1698 = vadd.f32 %v355, %v1697
        %1699 = vdwg.mxu0
        %1700 = vmatpush.msra.mxu0 0.0
        %1701 = vmatpush.msra.mxu0 0.0
        %1702 = vmatpush.msra.mxu0 0.0
        %1703 = vmatpush.msra.mxu0 0.0
        %1704 = vmatpush.msra.mxu0 0.0
        %1705 = vmatpush.msra.mxu0 0.0
        %1706 = vmatpush.msra.mxu0 0.0
        %1707 = vmatpush.msra.mxu0 0.0
        %1708 = vmatpush.msra.mxu0 0.0
        %1709 = vmatpush.msra.mxu0 0.0
        %1710 = vmatpush.msra.mxu0 0.0
        %1711 = vmatpush.msra.mxu0 0.0
        %v1712 = vand.u32 %v307, 4294901760
        %v1713 = vsub.f32 %v307, %v1712
        %v1714 = vand.u32 %v1713, 4294901760
        %v1715 = vsub.f32 %v1713, %v1714
        %v1716 = vand.u32 %v1715, 4294901760
        %1717 = vmatpush.msra.mxu0 %v1716
        %v1718 = vand.u32 %v306, 4294901760
        %v1719 = vsub.f32 %v306, %v1718
        %v1720 = vand.u32 %v1719, 4294901760
        %v1721 = vsub.f32 %v1719, %v1720
        %v1722 = vand.u32 %v1721, 4294901760
        %1723 = vmatpush.msra.mxu0 %v1722
        %v1724 = vand.u32 %v305, 4294901760
        %v1725 = vsub.f32 %v305, %v1724
        %v1726 = vand.u32 %v1725, 4294901760
        %v1727 = vsub.f32 %v1725, %v1726
        %v1728 = vand.u32 %v1727, 4294901760
        %1729 = vmatpush.msra.mxu0 %v1728
        %v1730 = vand.u32 %v304, 4294901760
        %v1731 = vsub.f32 %v304, %v1730
        %v1732 = vand.u32 %v1731, 4294901760
        %v1733 = vsub.f32 %v1731, %v1732
        %v1734 = vand.u32 %v1733, 4294901760
        %1735 = vmatpush.msra.mxu0 %v1734
        %v1736 = vand.u32 %v374, 4294901760
        %1737 = vmatmul.f32.gmra.mxu0 %v1736
        %v1738 = vpop.f32.mrf.mxu0
        %v1739 = vadd.f32 %v1698, %v1738
        %1740 = vdwg.mxu0
        %1741 = vmatpush.msra.mxu0 0.0
        %1742 = vmatpush.msra.mxu0 0.0
        %1743 = vmatpush.msra.mxu0 0.0
        %1744 = vmatpush.msra.mxu0 0.0
        %1745 = vmatpush.msra.mxu0 0.0
        %1746 = vmatpush.msra.mxu0 0.0
        %1747 = vmatpush.msra.mxu0 0.0
        %1748 = vmatpush.msra.mxu0 0.0
        %1749 = vmatpush.msra.mxu0 0.0
        %1750 = vmatpush.msra.mxu0 0.0
        %1751 = vmatpush.msra.mxu0 0.0
        %1752 = vmatpush.msra.mxu0 0.0
        %v1753 = vand.u32 %v307, 4294901760
        %v1754 = vsub.f32 %v307, %v1753
        %1755 = vmatpush.msra.mxu0 %v1754
        %v1756 = vand.u32 %v306, 4294901760
        %v1757 = vsub.f32 %v306, %v1756
        %1758 = vmatpush.msra.mxu0 %v1757
        %v1759 = vand.u32 %v305, 4294901760
        %v1760 = vsub.f32 %v305, %v1759
        %1761 = vmatpush.msra.mxu0 %v1760
        %v1762 = vand.u32 %v304, 4294901760
        %v1763 = vsub.f32 %v304, %v1762
        %1764 = vmatpush.msra.mxu0 %v1763
        %v1765 = vand.u32 %v374, 4294901760
        %v1766 = vsub.f32 %v374, %v1765
        %1767 = vmatmul.f32.gmra.mxu0 %v1766
        %v1768 = vpop.f32.mrf.mxu0
        %v1769 = vadd.f32 %v1739, %v1768
        %1770 = vdwg.mxu0
        %1771 = vmatpush.msra.mxu0 0.0
        %1772 = vmatpush.msra.mxu0 0.0
        %1773 = vmatpush.msra.mxu0 0.0
        %1774 = vmatpush.msra.mxu0 0.0
        %1775 = vmatpush.msra.mxu0 0.0
        %1776 = vmatpush.msra.mxu0 0.0
        %1777 = vmatpush.msra.mxu0 0.0
        %1778 = vmatpush.msra.mxu0 0.0
        %1779 = vmatpush.msra.mxu0 0.0
        %1780 = vmatpush.msra.mxu0 0.0
        %1781 = vmatpush.msra.mxu0 0.0
        %1782 = vmatpush.msra.mxu0 0.0
        %v1783 = vand.u32 %v307, 4294901760
        %1784 = vmatpush.msra.mxu0 %v1783
        %v1785 = vand.u32 %v306, 4294901760
        %1786 = vmatpush.msra.mxu0 %v1785
        %v1787 = vand.u32 %v305, 4294901760
        %1788 = vmatpush.msra.mxu0 %v1787
        %v1789 = vand.u32 %v304, 4294901760
        %1790 = vmatpush.msra.mxu0 %v1789
        %v1791 = vand.u32 %v374, 4294901760
        %v1792 = vsub.f32 %v374, %v1791
        %v1793 = vand.u32 %v1792, 4294901760
        %1794 = vmatmul.f32.gmra.mxu0 %v1793
        %v1795 = vpop.f32.mrf.mxu0
        %v1796 = vadd.f32 %v1769, %v1795
        %1797 = vdwg.mxu0
        %1798 = vmatpush.msra.mxu0 0.0
        %1799 = vmatpush.msra.mxu0 0.0
        %1800 = vmatpush.msra.mxu0 0.0
        %1801 = vmatpush.msra.mxu0 0.0
        %1802 = vmatpush.msra.mxu0 0.0
        %1803 = vmatpush.msra.mxu0 0.0
        %1804 = vmatpush.msra.mxu0 0.0
        %1805 = vmatpush.msra.mxu0 0.0
        %1806 = vmatpush.msra.mxu0 0.0
        %1807 = vmatpush.msra.mxu0 0.0
        %1808 = vmatpush.msra.mxu0 0.0
        %1809 = vmatpush.msra.mxu0 0.0
        %v1810 = vand.u32 %v307, 4294901760
        %v1811 = vsub.f32 %v307, %v1810
        %v1812 = vand.u32 %v1811, 4294901760
        %1813 = vmatpush.msra.mxu0 %v1812
        %v1814 = vand.u32 %v306, 4294901760
        %v1815 = vsub.f32 %v306, %v1814
        %v1816 = vand.u32 %v1815, 4294901760
        %1817 = vmatpush.msra.mxu0 %v1816
        %v1818 = vand.u32 %v305, 4294901760
        %v1819 = vsub.f32 %v305, %v1818
        %v1820 = vand.u32 %v1819, 4294901760
        %1821 = vmatpush.msra.mxu0 %v1820
        %v1822 = vand.u32 %v304, 4294901760
        %v1823 = vsub.f32 %v304, %v1822
        %v1824 = vand.u32 %v1823, 4294901760
        %1825 = vmatpush.msra.mxu0 %v1824
        %v1826 = vand.u32 %v374, 4294901760
        %1827 = vmatmul.f32.gmra.mxu0 %v1826
        %v1828 = vpop.f32.mrf.mxu0
        %v1829 = vadd.f32 %v1796, %v1828
        %1830 = vdwg.mxu0
        %1831 = vmatpush.msra.mxu0 0.0
        %1832 = vmatpush.msra.mxu0 0.0
        %1833 = vmatpush.msra.mxu0 0.0
        %1834 = vmatpush.msra.mxu0 0.0
        %1835 = vmatpush.msra.mxu0 0.0
        %1836 = vmatpush.msra.mxu0 0.0
        %1837 = vmatpush.msra.mxu0 0.0
        %1838 = vmatpush.msra.mxu0 0.0
        %1839 = vmatpush.msra.mxu0 0.0
        %1840 = vmatpush.msra.mxu0 0.0
        %1841 = vmatpush.msra.mxu0 0.0
        %1842 = vmatpush.msra.mxu0 0.0
        %v1843 = vand.u32 %v307, 4294901760
        %1844 = vmatpush.msra.mxu0 %v1843
        %v1845 = vand.u32 %v306, 4294901760
        %1846 = vmatpush.msra.mxu0 %v1845
        %v1847 = vand.u32 %v305, 4294901760
        %1848 = vmatpush.msra.mxu0 %v1847
        %v1849 = vand.u32 %v304, 4294901760
        %1850 = vmatpush.msra.mxu0 %v1849
        %v1851 = vand.u32 %v374, 4294901760
        %1852 = vmatmul.f32.gmra.mxu0 %v1851
        %v1853 = vpop.f32.mrf.mxu0
        %v1854 = vadd.f32 %v1829, %v1853
        %1855 = vdwg.mxu0
        %1856 = vmatpush.msra.mxu0 0.0
        %1857 = vmatpush.msra.mxu0 0.0
        %1858 = vmatpush.msra.mxu0 0.0
        %1859 = vmatpush.msra.mxu0 0.0
        %1860 = vmatpush.msra.mxu0 0.0
        %1861 = vmatpush.msra.mxu0 0.0
        %1862 = vmatpush.msra.mxu0 0.0
        %1863 = vmatpush.msra.mxu0 0.0
        %1864 = vmatpush.msra.mxu0 0.0
        %1865 = vmatpush.msra.mxu0 0.0
        %1866 = vmatpush.msra.mxu0 0.0
        %1867 = vmatpush.msra.mxu0 0.0
        %v1868 = vand.u32 %v311, 4294901760
        %1869 = vmatpush.msra.mxu0 %v1868
        %v1870 = vand.u32 %v310, 4294901760
        %1871 = vmatpush.msra.mxu0 %v1870
        %v1872 = vand.u32 %v309, 4294901760
        %1873 = vmatpush.msra.mxu0 %v1872
        %v1874 = vand.u32 %v308, 4294901760
        %1875 = vmatpush.msra.mxu0 %v1874
        %v1876 = vand.u32 %v374, 4294901760
        %v1877 = vsub.f32 %v374, %v1876
        %v1878 = vand.u32 %v1877, 4294901760
        %v1879 = vsub.f32 %v1877, %v1878
        %v1880 = vand.u32 %v1879, 4294901760
        %1881 = vmatmul.f32.gmra.mxu0 %v1880
        %v1882 = vpop.f32.mrf.mxu0
        %v1883 = vadd.f32 %v356, %v1882
        %1884 = vdwg.mxu0
        %1885 = vmatpush.msra.mxu0 0.0
        %1886 = vmatpush.msra.mxu0 0.0
        %1887 = vmatpush.msra.mxu0 0.0
        %1888 = vmatpush.msra.mxu0 0.0
        %1889 = vmatpush.msra.mxu0 0.0
        %1890 = vmatpush.msra.mxu0 0.0
        %1891 = vmatpush.msra.mxu0 0.0
        %1892 = vmatpush.msra.mxu0 0.0
        %1893 = vmatpush.msra.mxu0 0.0
        %1894 = vmatpush.msra.mxu0 0.0
        %1895 = vmatpush.msra.mxu0 0.0
        %1896 = vmatpush.msra.mxu0 0.0
        %v1897 = vand.u32 %v311, 4294901760
        %v1898 = vsub.f32 %v311, %v1897
        %v1899 = vand.u32 %v1898, 4294901760
        %v1900 = vsub.f32 %v1898, %v1899
        %v1901 = vand.u32 %v1900, 4294901760
        %1902 = vmatpush.msra.mxu0 %v1901
        %v1903 = vand.u32 %v310, 4294901760
        %v1904 = vsub.f32 %v310, %v1903
        %v1905 = vand.u32 %v1904, 4294901760
        %v1906 = vsub.f32 %v1904, %v1905
        %v1907 = vand.u32 %v1906, 4294901760
        %1908 = vmatpush.msra.mxu0 %v1907
        %v1909 = vand.u32 %v309, 4294901760
        %v1910 = vsub.f32 %v309, %v1909
        %v1911 = vand.u32 %v1910, 4294901760
        %v1912 = vsub.f32 %v1910, %v1911
        %v1913 = vand.u32 %v1912, 4294901760
        %1914 = vmatpush.msra.mxu0 %v1913
        %v1915 = vand.u32 %v308, 4294901760
        %v1916 = vsub.f32 %v308, %v1915
        %v1917 = vand.u32 %v1916, 4294901760
        %v1918 = vsub.f32 %v1916, %v1917
        %v1919 = vand.u32 %v1918, 4294901760
        %1920 = vmatpush.msra.mxu0 %v1919
        %v1921 = vand.u32 %v374, 4294901760
        %1922 = vmatmul.f32.gmra.mxu0 %v1921
        %v1923 = vpop.f32.mrf.mxu0
        %v1924 = vadd.f32 %v1883, %v1923
        %1925 = vdwg.mxu0
        %1926 = vmatpush.msra.mxu0 0.0
        %1927 = vmatpush.msra.mxu0 0.0
        %1928 = vmatpush.msra.mxu0 0.0
        %1929 = vmatpush.msra.mxu0 0.0
        %1930 = vmatpush.msra.mxu0 0.0
        %1931 = vmatpush.msra.mxu0 0.0
        %1932 = vmatpush.msra.mxu0 0.0
        %1933 = vmatpush.msra.mxu0 0.0
        %1934 = vmatpush.msra.mxu0 0.0
        %1935 = vmatpush.msra.mxu0 0.0
        %1936 = vmatpush.msra.mxu0 0.0
        %1937 = vmatpush.msra.mxu0 0.0
        %v1938 = vand.u32 %v311, 4294901760
        %v1939 = vsub.f32 %v311, %v1938
        %1940 = vmatpush.msra.mxu0 %v1939
        %v1941 = vand.u32 %v310, 4294901760
        %v1942 = vsub.f32 %v310, %v1941
        %1943 = vmatpush.msra.mxu0 %v1942
        %v1944 = vand.u32 %v309, 4294901760
        %v1945 = vsub.f32 %v309, %v1944
        %1946 = vmatpush.msra.mxu0 %v1945
        %v1947 = vand.u32 %v308, 4294901760
        %v1948 = vsub.f32 %v308, %v1947
        %1949 = vmatpush.msra.mxu0 %v1948
        %v1950 = vand.u32 %v374, 4294901760
        %v1951 = vsub.f32 %v374, %v1950
        %1952 = vmatmul.f32.gmra.mxu0 %v1951
        %v1953 = vpop.f32.mrf.mxu0
        %v1954 = vadd.f32 %v1924, %v1953
        %1955 = vdwg.mxu0
        %1956 = vmatpush.msra.mxu0 0.0
        %1957 = vmatpush.msra.mxu0 0.0
        %1958 = vmatpush.msra.mxu0 0.0
        %1959 = vmatpush.msra.mxu0 0.0
        %1960 = vmatpush.msra.mxu0 0.0
        %1961 = vmatpush.msra.mxu0 0.0
        %1962 = vmatpush.msra.mxu0 0.0
        %1963 = vmatpush.msra.mxu0 0.0
        %1964 = vmatpush.msra.mxu0 0.0
        %1965 = vmatpush.msra.mxu0 0.0
        %1966 = vmatpush.msra.mxu0 0.0
        %1967 = vmatpush.msra.mxu0 0.0
        %v1968 = vand.u32 %v311, 4294901760
        %1969 = vmatpush.msra.mxu0 %v1968
        %v1970 = vand.u32 %v310, 4294901760
        %1971 = vmatpush.msra.mxu0 %v1970
        %v1972 = vand.u32 %v309, 4294901760
        %1973 = vmatpush.msra.mxu0 %v1972
        %v1974 = vand.u32 %v308, 4294901760
        %1975 = vmatpush.msra.mxu0 %v1974
        %v1976 = vand.u32 %v374, 4294901760
        %v1977 = vsub.f32 %v374, %v1976
        %v1978 = vand.u32 %v1977, 4294901760
        %1979 = vmatmul.f32.gmra.mxu0 %v1978
        %v1980 = vpop.f32.mrf.mxu0
        %v1981 = vadd.f32 %v1954, %v1980
        %1982 = vdwg.mxu0
        %1983 = vmatpush.msra.mxu0 0.0
        %1984 = vmatpush.msra.mxu0 0.0
        %1985 = vmatpush.msra.mxu0 0.0
        %1986 = vmatpush.msra.mxu0 0.0
        %1987 = vmatpush.msra.mxu0 0.0
        %1988 = vmatpush.msra.mxu0 0.0
        %1989 = vmatpush.msra.mxu0 0.0
        %1990 = vmatpush.msra.mxu0 0.0
        %1991 = vmatpush.msra.mxu0 0.0
        %1992 = vmatpush.msra.mxu0 0.0
        %1993 = vmatpush.msra.mxu0 0.0
        %1994 = vmatpush.msra.mxu0 0.0
        %v1995 = vand.u32 %v311, 4294901760
        %v1996 = vsub.f32 %v311, %v1995
        %v1997 = vand.u32 %v1996, 4294901760
        %1998 = vmatpush.msra.mxu0 %v1997
        %v1999 = vand.u32 %v310, 4294901760
        %v2000 = vsub.f32 %v310, %v1999
        %v2001 = vand.u32 %v2000, 4294901760
        %2002 = vmatpush.msra.mxu0 %v2001
        %v2003 = vand.u32 %v309, 4294901760
        %v2004 = vsub.f32 %v309, %v2003
        %v2005 = vand.u32 %v2004, 4294901760
        %2006 = vmatpush.msra.mxu0 %v2005
        %v2007 = vand.u32 %v308, 4294901760
        %v2008 = vsub.f32 %v308, %v2007
        %v2009 = vand.u32 %v2008, 4294901760
        %2010 = vmatpush.msra.mxu0 %v2009
        %v2011 = vand.u32 %v374, 4294901760
        %2012 = vmatmul.f32.gmra.mxu0 %v2011
        %v2013 = vpop.f32.mrf.mxu0
        %v2014 = vadd.f32 %v1981, %v2013
        %2015 = vdwg.mxu0
        %2016 = vmatpush.msra.mxu0 0.0
        %2017 = vmatpush.msra.mxu0 0.0
        %2018 = vmatpush.msra.mxu0 0.0
        %2019 = vmatpush.msra.mxu0 0.0
        %2020 = vmatpush.msra.mxu0 0.0
        %2021 = vmatpush.msra.mxu0 0.0
        %2022 = vmatpush.msra.mxu0 0.0
        %2023 = vmatpush.msra.mxu0 0.0
        %2024 = vmatpush.msra.mxu0 0.0
        %2025 = vmatpush.msra.mxu0 0.0
        %2026 = vmatpush.msra.mxu0 0.0
        %2027 = vmatpush.msra.mxu0 0.0
        %v2028 = vand.u32 %v311, 4294901760
        %2029 = vmatpush.msra.mxu0 %v2028
        %v2030 = vand.u32 %v310, 4294901760
        %2031 = vmatpush.msra.mxu0 %v2030
        %v2032 = vand.u32 %v309, 4294901760
        %2033 = vmatpush.msra.mxu0 %v2032
        %v2034 = vand.u32 %v308, 4294901760
        %2035 = vmatpush.msra.mxu0 %v2034
        %v2036 = vand.u32 %v374, 4294901760
        %2037 = vmatmul.f32.gmra.mxu0 %v2036
        %v2038 = vpop.f32.mrf.mxu0
        %v2039 = vadd.f32 %v2014, %v2038
        %2040 = vdwg.mxu0
        %2041 = vmatpush.msra.mxu0 0.0
        %2042 = vmatpush.msra.mxu0 0.0
        %2043 = vmatpush.msra.mxu0 0.0
        %2044 = vmatpush.msra.mxu0 0.0
        %2045 = vmatpush.msra.mxu0 0.0
        %2046 = vmatpush.msra.mxu0 0.0
        %2047 = vmatpush.msra.mxu0 0.0
        %2048 = vmatpush.msra.mxu0 0.0
        %2049 = vmatpush.msra.mxu0 0.0
        %2050 = vmatpush.msra.mxu0 0.0
        %2051 = vmatpush.msra.mxu0 0.0
        %2052 = vmatpush.msra.mxu0 0.0
        %v2053 = vand.u32 %v315, 4294901760
        %2054 = vmatpush.msra.mxu0 %v2053
        %v2055 = vand.u32 %v314, 4294901760
        %2056 = vmatpush.msra.mxu0 %v2055
        %v2057 = vand.u32 %v313, 4294901760
        %2058 = vmatpush.msra.mxu0 %v2057
        %v2059 = vand.u32 %v312, 4294901760
        %2060 = vmatpush.msra.mxu0 %v2059
        %v2061 = vand.u32 %v374, 4294901760
        %v2062 = vsub.f32 %v374, %v2061
        %v2063 = vand.u32 %v2062, 4294901760
        %v2064 = vsub.f32 %v2062, %v2063
        %v2065 = vand.u32 %v2064, 4294901760
        %2066 = vmatmul.f32.gmra.mxu0 %v2065
        %v2067 = vpop.f32.mrf.mxu0
        %v2068 = vadd.f32 %v357, %v2067
        %2069 = vdwg.mxu0
        %2070 = vmatpush.msra.mxu0 0.0
        %2071 = vmatpush.msra.mxu0 0.0
        %2072 = vmatpush.msra.mxu0 0.0
        %2073 = vmatpush.msra.mxu0 0.0
        %2074 = vmatpush.msra.mxu0 0.0
        %2075 = vmatpush.msra.mxu0 0.0
        %2076 = vmatpush.msra.mxu0 0.0
        %2077 = vmatpush.msra.mxu0 0.0
        %2078 = vmatpush.msra.mxu0 0.0
        %2079 = vmatpush.msra.mxu0 0.0
        %2080 = vmatpush.msra.mxu0 0.0
        %2081 = vmatpush.msra.mxu0 0.0
        %v2082 = vand.u32 %v315, 4294901760
        %v2083 = vsub.f32 %v315, %v2082
        %v2084 = vand.u32 %v2083, 4294901760
        %v2085 = vsub.f32 %v2083, %v2084
        %v2086 = vand.u32 %v2085, 4294901760
        %2087 = vmatpush.msra.mxu0 %v2086
        %v2088 = vand.u32 %v314, 4294901760
        %v2089 = vsub.f32 %v314, %v2088
        %v2090 = vand.u32 %v2089, 4294901760
        %v2091 = vsub.f32 %v2089, %v2090
        %v2092 = vand.u32 %v2091, 4294901760
        %2093 = vmatpush.msra.mxu0 %v2092
        %v2094 = vand.u32 %v313, 4294901760
        %v2095 = vsub.f32 %v313, %v2094
        %v2096 = vand.u32 %v2095, 4294901760
        %v2097 = vsub.f32 %v2095, %v2096
        %v2098 = vand.u32 %v2097, 4294901760
        %2099 = vmatpush.msra.mxu0 %v2098
        %v2100 = vand.u32 %v312, 4294901760
        %v2101 = vsub.f32 %v312, %v2100
        %v2102 = vand.u32 %v2101, 4294901760
        %v2103 = vsub.f32 %v2101, %v2102
        %v2104 = vand.u32 %v2103, 4294901760
        %2105 = vmatpush.msra.mxu0 %v2104
        %v2106 = vand.u32 %v374, 4294901760
        %2107 = vmatmul.f32.gmra.mxu0 %v2106
        %v2108 = vpop.f32.mrf.mxu0
        %v2109 = vadd.f32 %v2068, %v2108
        %2110 = vdwg.mxu0
        %2111 = vmatpush.msra.mxu0 0.0
        %2112 = vmatpush.msra.mxu0 0.0
        %2113 = vmatpush.msra.mxu0 0.0
        %2114 = vmatpush.msra.mxu0 0.0
        %2115 = vmatpush.msra.mxu0 0.0
        %2116 = vmatpush.msra.mxu0 0.0
        %2117 = vmatpush.msra.mxu0 0.0
        %2118 = vmatpush.msra.mxu0 0.0
        %2119 = vmatpush.msra.mxu0 0.0
        %2120 = vmatpush.msra.mxu0 0.0
        %2121 = vmatpush.msra.mxu0 0.0
        %2122 = vmatpush.msra.mxu0 0.0
        %v2123 = vand.u32 %v315, 4294901760
        %v2124 = vsub.f32 %v315, %v2123
        %2125 = vmatpush.msra.mxu0 %v2124
        %v2126 = vand.u32 %v314, 4294901760
        %v2127 = vsub.f32 %v314, %v2126
        %2128 = vmatpush.msra.mxu0 %v2127
        %v2129 = vand.u32 %v313, 4294901760
        %v2130 = vsub.f32 %v313, %v2129
        %2131 = vmatpush.msra.mxu0 %v2130
        %v2132 = vand.u32 %v312, 4294901760
        %v2133 = vsub.f32 %v312, %v2132
        %2134 = vmatpush.msra.mxu0 %v2133
        %v2135 = vand.u32 %v374, 4294901760
        %v2136 = vsub.f32 %v374, %v2135
        %2137 = vmatmul.f32.gmra.mxu0 %v2136
        %v2138 = vpop.f32.mrf.mxu0
        %v2139 = vadd.f32 %v2109, %v2138
        %2140 = vdwg.mxu0
        %2141 = vmatpush.msra.mxu0 0.0
        %2142 = vmatpush.msra.mxu0 0.0
        %2143 = vmatpush.msra.mxu0 0.0
        %2144 = vmatpush.msra.mxu0 0.0
        %2145 = vmatpush.msra.mxu0 0.0
        %2146 = vmatpush.msra.mxu0 0.0
        %2147 = vmatpush.msra.mxu0 0.0
        %2148 = vmatpush.msra.mxu0 0.0
        %2149 = vmatpush.msra.mxu0 0.0
        %2150 = vmatpush.msra.mxu0 0.0
        %2151 = vmatpush.msra.mxu0 0.0
        %2152 = vmatpush.msra.mxu0 0.0
        %v2153 = vand.u32 %v315, 4294901760
        %2154 = vmatpush.msra.mxu0 %v2153
        %v2155 = vand.u32 %v314, 4294901760
        %2156 = vmatpush.msra.mxu0 %v2155
        %v2157 = vand.u32 %v313, 4294901760
        %2158 = vmatpush.msra.mxu0 %v2157
        %v2159 = vand.u32 %v312, 4294901760
        %2160 = vmatpush.msra.mxu0 %v2159
        %v2161 = vand.u32 %v374, 4294901760
        %v2162 = vsub.f32 %v374, %v2161
        %v2163 = vand.u32 %v2162, 4294901760
        %2164 = vmatmul.f32.gmra.mxu0 %v2163
        %v2165 = vpop.f32.mrf.mxu0
        %v2166 = vadd.f32 %v2139, %v2165
        %2167 = vdwg.mxu0
        %2168 = vmatpush.msra.mxu0 0.0
        %2169 = vmatpush.msra.mxu0 0.0
        %2170 = vmatpush.msra.mxu0 0.0
        %2171 = vmatpush.msra.mxu0 0.0
        %2172 = vmatpush.msra.mxu0 0.0
        %2173 = vmatpush.msra.mxu0 0.0
        %2174 = vmatpush.msra.mxu0 0.0
        %2175 = vmatpush.msra.mxu0 0.0
        %2176 = vmatpush.msra.mxu0 0.0
        %2177 = vmatpush.msra.mxu0 0.0
        %2178 = vmatpush.msra.mxu0 0.0
        %2179 = vmatpush.msra.mxu0 0.0
        %v2180 = vand.u32 %v315, 4294901760
        %v2181 = vsub.f32 %v315, %v2180
        %v2182 = vand.u32 %v2181, 4294901760
        %2183 = vmatpush.msra.mxu0 %v2182
        %v2184 = vand.u32 %v314, 4294901760
        %v2185 = vsub.f32 %v314, %v2184
        %v2186 = vand.u32 %v2185, 4294901760
        %2187 = vmatpush.msra.mxu0 %v2186
        %v2188 = vand.u32 %v313, 4294901760
        %v2189 = vsub.f32 %v313, %v2188
        %v2190 = vand.u32 %v2189, 4294901760
        %2191 = vmatpush.msra.mxu0 %v2190
        %v2192 = vand.u32 %v312, 4294901760
        %v2193 = vsub.f32 %v312, %v2192
        %v2194 = vand.u32 %v2193, 4294901760
        %2195 = vmatpush.msra.mxu0 %v2194
        %v2196 = vand.u32 %v374, 4294901760
        %2197 = vmatmul.f32.gmra.mxu0 %v2196
        %v2198 = vpop.f32.mrf.mxu0
        %v2199 = vadd.f32 %v2166, %v2198
        %2200 = vdwg.mxu0
        %2201 = vmatpush.msra.mxu0 0.0
        %2202 = vmatpush.msra.mxu0 0.0
        %2203 = vmatpush.msra.mxu0 0.0
        %2204 = vmatpush.msra.mxu0 0.0
        %2205 = vmatpush.msra.mxu0 0.0
        %2206 = vmatpush.msra.mxu0 0.0
        %2207 = vmatpush.msra.mxu0 0.0
        %2208 = vmatpush.msra.mxu0 0.0
        %2209 = vmatpush.msra.mxu0 0.0
        %2210 = vmatpush.msra.mxu0 0.0
        %2211 = vmatpush.msra.mxu0 0.0
        %2212 = vmatpush.msra.mxu0 0.0
        %v2213 = vand.u32 %v315, 4294901760
        %2214 = vmatpush.msra.mxu0 %v2213
        %v2215 = vand.u32 %v314, 4294901760
        %2216 = vmatpush.msra.mxu0 %v2215
        %v2217 = vand.u32 %v313, 4294901760
        %2218 = vmatpush.msra.mxu0 %v2217
        %v2219 = vand.u32 %v312, 4294901760
        %2220 = vmatpush.msra.mxu0 %v2219
        %v2221 = vand.u32 %v374, 4294901760
        %2222 = vmatmul.f32.gmra.mxu0 %v2221
        %v2223 = vpop.f32.mrf.mxu0
        %v2224 = vadd.f32 %v2199, %v2223
        %2225 = vdwg.mxu0
        %2226 = vmatpush.msra.mxu0 0.0
        %2227 = vmatpush.msra.mxu0 0.0
        %2228 = vmatpush.msra.mxu0 0.0
        %2229 = vmatpush.msra.mxu0 0.0
        %2230 = vmatpush.msra.mxu0 0.0
        %2231 = vmatpush.msra.mxu0 0.0
        %2232 = vmatpush.msra.mxu0 0.0
        %2233 = vmatpush.msra.mxu0 0.0
        %2234 = vmatpush.msra.mxu0 0.0
        %2235 = vmatpush.msra.mxu0 0.0
        %2236 = vmatpush.msra.mxu0 0.0
        %2237 = vmatpush.msra.mxu0 0.0
        %v2238 = vand.u32 %v319, 4294901760
        %2239 = vmatpush.msra.mxu0 %v2238
        %v2240 = vand.u32 %v318, 4294901760
        %2241 = vmatpush.msra.mxu0 %v2240
        %v2242 = vand.u32 %v317, 4294901760
        %2243 = vmatpush.msra.mxu0 %v2242
        %v2244 = vand.u32 %v316, 4294901760
        %2245 = vmatpush.msra.mxu0 %v2244
        %v2246 = vand.u32 %v374, 4294901760
        %v2247 = vsub.f32 %v374, %v2246
        %v2248 = vand.u32 %v2247, 4294901760
        %v2249 = vsub.f32 %v2247, %v2248
        %v2250 = vand.u32 %v2249, 4294901760
        %2251 = vmatmul.f32.gmra.mxu0 %v2250
        %v2252 = vpop.f32.mrf.mxu0
        %v2253 = vadd.f32 %v358, %v2252
        %2254 = vdwg.mxu0
        %2255 = vmatpush.msra.mxu0 0.0
        %2256 = vmatpush.msra.mxu0 0.0
        %2257 = vmatpush.msra.mxu0 0.0
        %2258 = vmatpush.msra.mxu0 0.0
        %2259 = vmatpush.msra.mxu0 0.0
        %2260 = vmatpush.msra.mxu0 0.0
        %2261 = vmatpush.msra.mxu0 0.0
        %2262 = vmatpush.msra.mxu0 0.0
        %2263 = vmatpush.msra.mxu0 0.0
        %2264 = vmatpush.msra.mxu0 0.0
        %2265 = vmatpush.msra.mxu0 0.0
        %2266 = vmatpush.msra.mxu0 0.0
        %v2267 = vand.u32 %v319, 4294901760
        %v2268 = vsub.f32 %v319, %v2267
        %v2269 = vand.u32 %v2268, 4294901760
        %v2270 = vsub.f32 %v2268, %v2269
        %v2271 = vand.u32 %v2270, 4294901760
        %2272 = vmatpush.msra.mxu0 %v2271
        %v2273 = vand.u32 %v318, 4294901760
        %v2274 = vsub.f32 %v318, %v2273
        %v2275 = vand.u32 %v2274, 4294901760
        %v2276 = vsub.f32 %v2274, %v2275
        %v2277 = vand.u32 %v2276, 4294901760
        %2278 = vmatpush.msra.mxu0 %v2277
        %v2279 = vand.u32 %v317, 4294901760
        %v2280 = vsub.f32 %v317, %v2279
        %v2281 = vand.u32 %v2280, 4294901760
        %v2282 = vsub.f32 %v2280, %v2281
        %v2283 = vand.u32 %v2282, 4294901760
        %2284 = vmatpush.msra.mxu0 %v2283
        %v2285 = vand.u32 %v316, 4294901760
        %v2286 = vsub.f32 %v316, %v2285
        %v2287 = vand.u32 %v2286, 4294901760
        %v2288 = vsub.f32 %v2286, %v2287
        %v2289 = vand.u32 %v2288, 4294901760
        %2290 = vmatpush.msra.mxu0 %v2289
        %v2291 = vand.u32 %v374, 4294901760
        %2292 = vmatmul.f32.gmra.mxu0 %v2291
        %v2293 = vpop.f32.mrf.mxu0
        %v2294 = vadd.f32 %v2253, %v2293
        %2295 = vdwg.mxu0
        %2296 = vmatpush.msra.mxu0 0.0
        %2297 = vmatpush.msra.mxu0 0.0
        %2298 = vmatpush.msra.mxu0 0.0
        %2299 = vmatpush.msra.mxu0 0.0
        %2300 = vmatpush.msra.mxu0 0.0
        %2301 = vmatpush.msra.mxu0 0.0
        %2302 = vmatpush.msra.mxu0 0.0
        %2303 = vmatpush.msra.mxu0 0.0
        %2304 = vmatpush.msra.mxu0 0.0
        %2305 = vmatpush.msra.mxu0 0.0
        %2306 = vmatpush.msra.mxu0 0.0
        %2307 = vmatpush.msra.mxu0 0.0
        %v2308 = vand.u32 %v319, 4294901760
        %v2309 = vsub.f32 %v319, %v2308
        %2310 = vmatpush.msra.mxu0 %v2309
        %v2311 = vand.u32 %v318, 4294901760
        %v2312 = vsub.f32 %v318, %v2311
        %2313 = vmatpush.msra.mxu0 %v2312
        %v2314 = vand.u32 %v317, 4294901760
        %v2315 = vsub.f32 %v317, %v2314
        %2316 = vmatpush.msra.mxu0 %v2315
        %v2317 = vand.u32 %v316, 4294901760
        %v2318 = vsub.f32 %v316, %v2317
        %2319 = vmatpush.msra.mxu0 %v2318
        %v2320 = vand.u32 %v374, 4294901760
        %v2321 = vsub.f32 %v374, %v2320
        %2322 = vmatmul.f32.gmra.mxu0 %v2321
        %v2323 = vpop.f32.mrf.mxu0
        %v2324 = vadd.f32 %v2294, %v2323
        %2325 = vdwg.mxu0
        %2326 = vmatpush.msra.mxu0 0.0
        %2327 = vmatpush.msra.mxu0 0.0
        %2328 = vmatpush.msra.mxu0 0.0
        %2329 = vmatpush.msra.mxu0 0.0
        %2330 = vmatpush.msra.mxu0 0.0
        %2331 = vmatpush.msra.mxu0 0.0
        %2332 = vmatpush.msra.mxu0 0.0
        %2333 = vmatpush.msra.mxu0 0.0
        %2334 = vmatpush.msra.mxu0 0.0
        %2335 = vmatpush.msra.mxu0 0.0
        %2336 = vmatpush.msra.mxu0 0.0
        %2337 = vmatpush.msra.mxu0 0.0
        %v2338 = vand.u32 %v319, 4294901760
        %2339 = vmatpush.msra.mxu0 %v2338
        %v2340 = vand.u32 %v318, 4294901760
        %2341 = vmatpush.msra.mxu0 %v2340
        %v2342 = vand.u32 %v317, 4294901760
        %2343 = vmatpush.msra.mxu0 %v2342
        %v2344 = vand.u32 %v316, 4294901760
        %2345 = vmatpush.msra.mxu0 %v2344
        %v2346 = vand.u32 %v374, 4294901760
        %v2347 = vsub.f32 %v374, %v2346
        %v2348 = vand.u32 %v2347, 4294901760
        %2349 = vmatmul.f32.gmra.mxu0 %v2348
        %v2350 = vpop.f32.mrf.mxu0
        %v2351 = vadd.f32 %v2324, %v2350
        %2352 = vdwg.mxu0
        %2353 = vmatpush.msra.mxu0 0.0
        %2354 = vmatpush.msra.mxu0 0.0
        %2355 = vmatpush.msra.mxu0 0.0
        %2356 = vmatpush.msra.mxu0 0.0
        %2357 = vmatpush.msra.mxu0 0.0
        %2358 = vmatpush.msra.mxu0 0.0
        %2359 = vmatpush.msra.mxu0 0.0
        %2360 = vmatpush.msra.mxu0 0.0
        %2361 = vmatpush.msra.mxu0 0.0
        %2362 = vmatpush.msra.mxu0 0.0
        %2363 = vmatpush.msra.mxu0 0.0
        %2364 = vmatpush.msra.mxu0 0.0
        %v2365 = vand.u32 %v319, 4294901760
        %v2366 = vsub.f32 %v319, %v2365
        %v2367 = vand.u32 %v2366, 4294901760
        %2368 = vmatpush.msra.mxu0 %v2367
        %v2369 = vand.u32 %v318, 4294901760
        %v2370 = vsub.f32 %v318, %v2369
        %v2371 = vand.u32 %v2370, 4294901760
        %2372 = vmatpush.msra.mxu0 %v2371
        %v2373 = vand.u32 %v317, 4294901760
        %v2374 = vsub.f32 %v317, %v2373
        %v2375 = vand.u32 %v2374, 4294901760
        %2376 = vmatpush.msra.mxu0 %v2375
        %v2377 = vand.u32 %v316, 4294901760
        %v2378 = vsub.f32 %v316, %v2377
        %v2379 = vand.u32 %v2378, 4294901760
        %2380 = vmatpush.msra.mxu0 %v2379
        %v2381 = vand.u32 %v374, 4294901760
        %2382 = vmatmul.f32.gmra.mxu0 %v2381
        %v2383 = vpop.f32.mrf.mxu0
        %v2384 = vadd.f32 %v2351, %v2383
        %2385 = vdwg.mxu0
        %2386 = vmatpush.msra.mxu0 0.0
        %2387 = vmatpush.msra.mxu0 0.0
        %2388 = vmatpush.msra.mxu0 0.0
        %2389 = vmatpush.msra.mxu0 0.0
        %2390 = vmatpush.msra.mxu0 0.0
        %2391 = vmatpush.msra.mxu0 0.0
        %2392 = vmatpush.msra.mxu0 0.0
        %2393 = vmatpush.msra.mxu0 0.0
        %2394 = vmatpush.msra.mxu0 0.0
        %2395 = vmatpush.msra.mxu0 0.0
        %2396 = vmatpush.msra.mxu0 0.0
        %2397 = vmatpush.msra.mxu0 0.0
        %v2398 = vand.u32 %v319, 4294901760
        %2399 = vmatpush.msra.mxu0 %v2398
        %v2400 = vand.u32 %v318, 4294901760
        %2401 = vmatpush.msra.mxu0 %v2400
        %v2402 = vand.u32 %v317, 4294901760
        %2403 = vmatpush.msra.mxu0 %v2402
        %v2404 = vand.u32 %v316, 4294901760
        %2405 = vmatpush.msra.mxu0 %v2404
        %v2406 = vand.u32 %v374, 4294901760
        %2407 = vmatmul.f32.gmra.mxu0 %v2406
        %v2408 = vpop.f32.mrf.mxu0
        %v2409 = vadd.f32 %v2384, %v2408
        %2410 = vdwg.mxu0
        %2411 = vmatpush.msra.mxu0 0.0
        %2412 = vmatpush.msra.mxu0 0.0
        %2413 = vmatpush.msra.mxu0 0.0
        %2414 = vmatpush.msra.mxu0 0.0
        %2415 = vmatpush.msra.mxu0 0.0
        %2416 = vmatpush.msra.mxu0 0.0
        %2417 = vmatpush.msra.mxu0 0.0
        %2418 = vmatpush.msra.mxu0 0.0
        %2419 = vmatpush.msra.mxu0 0.0
        %2420 = vmatpush.msra.mxu0 0.0
        %2421 = vmatpush.msra.mxu0 0.0
        %2422 = vmatpush.msra.mxu0 0.0
        %v2423 = vand.u32 %v323, 4294901760
        %2424 = vmatpush.msra.mxu0 %v2423
        %v2425 = vand.u32 %v322, 4294901760
        %2426 = vmatpush.msra.mxu0 %v2425
        %v2427 = vand.u32 %v321, 4294901760
        %2428 = vmatpush.msra.mxu0 %v2427
        %v2429 = vand.u32 %v320, 4294901760
        %2430 = vmatpush.msra.mxu0 %v2429
        %v2431 = vand.u32 %v374, 4294901760
        %v2432 = vsub.f32 %v374, %v2431
        %v2433 = vand.u32 %v2432, 4294901760
        %v2434 = vsub.f32 %v2432, %v2433
        %v2435 = vand.u32 %v2434, 4294901760
        %2436 = vmatmul.f32.gmra.mxu0 %v2435
        %v2437 = vpop.f32.mrf.mxu0
        %v2438 = vadd.f32 %v359, %v2437
        %2439 = vdwg.mxu0
        %2440 = vmatpush.msra.mxu0 0.0
        %2441 = vmatpush.msra.mxu0 0.0
        %2442 = vmatpush.msra.mxu0 0.0
        %2443 = vmatpush.msra.mxu0 0.0
        %2444 = vmatpush.msra.mxu0 0.0
        %2445 = vmatpush.msra.mxu0 0.0
        %2446 = vmatpush.msra.mxu0 0.0
        %2447 = vmatpush.msra.mxu0 0.0
        %2448 = vmatpush.msra.mxu0 0.0
        %2449 = vmatpush.msra.mxu0 0.0
        %2450 = vmatpush.msra.mxu0 0.0
        %2451 = vmatpush.msra.mxu0 0.0
        %v2452 = vand.u32 %v323, 4294901760
        %v2453 = vsub.f32 %v323, %v2452
        %v2454 = vand.u32 %v2453, 4294901760
        %v2455 = vsub.f32 %v2453, %v2454
        %v2456 = vand.u32 %v2455, 4294901760
        %2457 = vmatpush.msra.mxu0 %v2456
        %v2458 = vand.u32 %v322, 4294901760
        %v2459 = vsub.f32 %v322, %v2458
        %v2460 = vand.u32 %v2459, 4294901760
        %v2461 = vsub.f32 %v2459, %v2460
        %v2462 = vand.u32 %v2461, 4294901760
        %2463 = vmatpush.msra.mxu0 %v2462
        %v2464 = vand.u32 %v321, 4294901760
        %v2465 = vsub.f32 %v321, %v2464
        %v2466 = vand.u32 %v2465, 4294901760
        %v2467 = vsub.f32 %v2465, %v2466
        %v2468 = vand.u32 %v2467, 4294901760
        %2469 = vmatpush.msra.mxu0 %v2468
        %v2470 = vand.u32 %v320, 4294901760
        %v2471 = vsub.f32 %v320, %v2470
        %v2472 = vand.u32 %v2471, 4294901760
        %v2473 = vsub.f32 %v2471, %v2472
        %v2474 = vand.u32 %v2473, 4294901760
        %2475 = vmatpush.msra.mxu0 %v2474
        %v2476 = vand.u32 %v374, 4294901760
        %2477 = vmatmul.f32.gmra.mxu0 %v2476
        %v2478 = vpop.f32.mrf.mxu0
        %v2479 = vadd.f32 %v2438, %v2478
        %2480 = vdwg.mxu0
        %2481 = vmatpush.msra.mxu0 0.0
        %2482 = vmatpush.msra.mxu0 0.0
        %2483 = vmatpush.msra.mxu0 0.0
        %2484 = vmatpush.msra.mxu0 0.0
        %2485 = vmatpush.msra.mxu0 0.0
        %2486 = vmatpush.msra.mxu0 0.0
        %2487 = vmatpush.msra.mxu0 0.0
        %2488 = vmatpush.msra.mxu0 0.0
        %2489 = vmatpush.msra.mxu0 0.0
        %2490 = vmatpush.msra.mxu0 0.0
        %2491 = vmatpush.msra.mxu0 0.0
        %2492 = vmatpush.msra.mxu0 0.0
        %v2493 = vand.u32 %v323, 4294901760
        %v2494 = vsub.f32 %v323, %v2493
        %2495 = vmatpush.msra.mxu0 %v2494
        %v2496 = vand.u32 %v322, 4294901760
        %v2497 = vsub.f32 %v322, %v2496
        %2498 = vmatpush.msra.mxu0 %v2497
        %v2499 = vand.u32 %v321, 4294901760
        %v2500 = vsub.f32 %v321, %v2499
        %2501 = vmatpush.msra.mxu0 %v2500
        %v2502 = vand.u32 %v320, 4294901760
        %v2503 = vsub.f32 %v320, %v2502
        %2504 = vmatpush.msra.mxu0 %v2503
        %v2505 = vand.u32 %v374, 4294901760
        %v2506 = vsub.f32 %v374, %v2505
        %2507 = vmatmul.f32.gmra.mxu0 %v2506
        %v2508 = vpop.f32.mrf.mxu0
        %v2509 = vadd.f32 %v2479, %v2508
        %2510 = vdwg.mxu0
        %2511 = vmatpush.msra.mxu0 0.0
        %2512 = vmatpush.msra.mxu0 0.0
        %2513 = vmatpush.msra.mxu0 0.0
        %2514 = vmatpush.msra.mxu0 0.0
        %2515 = vmatpush.msra.mxu0 0.0
        %2516 = vmatpush.msra.mxu0 0.0
        %2517 = vmatpush.msra.mxu0 0.0
        %2518 = vmatpush.msra.mxu0 0.0
        %2519 = vmatpush.msra.mxu0 0.0
        %2520 = vmatpush.msra.mxu0 0.0
        %2521 = vmatpush.msra.mxu0 0.0
        %2522 = vmatpush.msra.mxu0 0.0
        %v2523 = vand.u32 %v323, 4294901760
        %2524 = vmatpush.msra.mxu0 %v2523
        %v2525 = vand.u32 %v322, 4294901760
        %2526 = vmatpush.msra.mxu0 %v2525
        %v2527 = vand.u32 %v321, 4294901760
        %2528 = vmatpush.msra.mxu0 %v2527
        %v2529 = vand.u32 %v320, 4294901760
        %2530 = vmatpush.msra.mxu0 %v2529
        %v2531 = vand.u32 %v374, 4294901760
        %v2532 = vsub.f32 %v374, %v2531
        %v2533 = vand.u32 %v2532, 4294901760
        %2534 = vmatmul.f32.gmra.mxu0 %v2533
        %v2535 = vpop.f32.mrf.mxu0
        %v2536 = vadd.f32 %v2509, %v2535
        %2537 = vdwg.mxu0
        %2538 = vmatpush.msra.mxu0 0.0
        %2539 = vmatpush.msra.mxu0 0.0
        %2540 = vmatpush.msra.mxu0 0.0
        %2541 = vmatpush.msra.mxu0 0.0
        %2542 = vmatpush.msra.mxu0 0.0
        %2543 = vmatpush.msra.mxu0 0.0
        %2544 = vmatpush.msra.mxu0 0.0
        %2545 = vmatpush.msra.mxu0 0.0
        %2546 = vmatpush.msra.mxu0 0.0
        %2547 = vmatpush.msra.mxu0 0.0
        %2548 = vmatpush.msra.mxu0 0.0
        %2549 = vmatpush.msra.mxu0 0.0
        %v2550 = vand.u32 %v323, 4294901760
        %v2551 = vsub.f32 %v323, %v2550
        %v2552 = vand.u32 %v2551, 4294901760
        %2553 = vmatpush.msra.mxu0 %v2552
        %v2554 = vand.u32 %v322, 4294901760
        %v2555 = vsub.f32 %v322, %v2554
        %v2556 = vand.u32 %v2555, 4294901760
        %2557 = vmatpush.msra.mxu0 %v2556
        %v2558 = vand.u32 %v321, 4294901760
        %v2559 = vsub.f32 %v321, %v2558
        %v2560 = vand.u32 %v2559, 4294901760
        %2561 = vmatpush.msra.mxu0 %v2560
        %v2562 = vand.u32 %v320, 4294901760
        %v2563 = vsub.f32 %v320, %v2562
        %v2564 = vand.u32 %v2563, 4294901760
        %2565 = vmatpush.msra.mxu0 %v2564
        %v2566 = vand.u32 %v374, 4294901760
        %2567 = vmatmul.f32.gmra.mxu0 %v2566
        %v2568 = vpop.f32.mrf.mxu0
        %v2569 = vadd.f32 %v2536, %v2568
        %2570 = vdwg.mxu0
        %2571 = vmatpush.msra.mxu0 0.0
        %2572 = vmatpush.msra.mxu0 0.0
        %2573 = vmatpush.msra.mxu0 0.0
        %2574 = vmatpush.msra.mxu0 0.0
        %2575 = vmatpush.msra.mxu0 0.0
        %2576 = vmatpush.msra.mxu0 0.0
        %2577 = vmatpush.msra.mxu0 0.0
        %2578 = vmatpush.msra.mxu0 0.0
        %2579 = vmatpush.msra.mxu0 0.0
        %2580 = vmatpush.msra.mxu0 0.0
        %2581 = vmatpush.msra.mxu0 0.0
        %2582 = vmatpush.msra.mxu0 0.0
        %v2583 = vand.u32 %v323, 4294901760
        %2584 = vmatpush.msra.mxu0 %v2583
        %v2585 = vand.u32 %v322, 4294901760
        %2586 = vmatpush.msra.mxu0 %v2585
        %v2587 = vand.u32 %v321, 4294901760
        %2588 = vmatpush.msra.mxu0 %v2587
        %v2589 = vand.u32 %v320, 4294901760
        %2590 = vmatpush.msra.mxu0 %v2589
        %v2591 = vand.u32 %v374, 4294901760
        %2592 = vmatmul.f32.gmra.mxu0 %v2591
        %v2593 = vpop.f32.mrf.mxu0
        %v2594 = vadd.f32 %v2569, %v2593
        %2595 = vdwg.mxu0
        %vm2596 = vcmask 64512
        %v2598 = vsel %vm2596, %v559, 0
        %v2601 = vsel %vm2596, %v1299, 0
        %2603 = vmatpush.xpose.msra.mxu0 0.0
        %2604 = vmatpush.xpose.msra.mxu0 0.0
        %2605 = vmatpush.xpose.msra.mxu0 0.0
        %2606 = vmatpush.xpose.msra.mxu0 0.0
        %2607 = vmatpush.xpose.msra.mxu0 0.0
        %2608 = vmatpush.xpose.msra.mxu0 0.0
        %2609 = vmatpush.xpose.msra.mxu0 0.0
        %2610 = vmatpush.xpose.msra.mxu0 0.0
        %2611 = vmatpush.xpose.msra.mxu0 0.0
        %2612 = vmatpush.xpose.msra.mxu0 0.0
        %2613 = vmatpush.xpose.msra.mxu0 0.0
        %2614 = vmatpush.xpose.msra.mxu0 0.0
        %2615 = vmatpush.xpose.msra.mxu0 0.0
        %2616 = vmatpush.xpose.msra.mxu0 0.0
        %2617 = vmatpush.xpose.msra.mxu0 0.0
        %v2618 = vand.u32 %v2601, 4294901760
        %2619 = vmatpush.xpose.msra.mxu0 %v2618
        %v2620 = vand.u32 %v2598, 4294901760
        %v2621 = vsub.f32 %v2598, %v2620
        %v2622 = vand.u32 %v2621, 4294901760
        %v2623 = vsub.f32 %v2621, %v2622
        %v2624 = vand.u32 %v2623, 4294901760
        %2625 = vmatmul.f32.gmra.mxu0 %v2624
        %v2626 = vpop.f32.mrf.mxu0
        %v2627 = vadd.f32 0.0, %v2626
        %2628 = vdwg.mxu0
        %2629 = vmatpush.xpose.msra.mxu0 0.0
        %2630 = vmatpush.xpose.msra.mxu0 0.0
        %2631 = vmatpush.xpose.msra.mxu0 0.0
        %2632 = vmatpush.xpose.msra.mxu0 0.0
        %2633 = vmatpush.xpose.msra.mxu0 0.0
        %2634 = vmatpush.xpose.msra.mxu0 0.0
        %2635 = vmatpush.xpose.msra.mxu0 0.0
        %2636 = vmatpush.xpose.msra.mxu0 0.0
        %2637 = vmatpush.xpose.msra.mxu0 0.0
        %2638 = vmatpush.xpose.msra.mxu0 0.0
        %2639 = vmatpush.xpose.msra.mxu0 0.0
        %2640 = vmatpush.xpose.msra.mxu0 0.0
        %2641 = vmatpush.xpose.msra.mxu0 0.0
        %2642 = vmatpush.xpose.msra.mxu0 0.0
        %2643 = vmatpush.xpose.msra.mxu0 0.0
        %v2644 = vand.u32 %v2601, 4294901760
        %v2645 = vsub.f32 %v2601, %v2644
        %v2646 = vand.u32 %v2645, 4294901760
        %v2647 = vsub.f32 %v2645, %v2646
        %v2648 = vand.u32 %v2647, 4294901760
        %2649 = vmatpush.xpose.msra.mxu0 %v2648
        %v2650 = vand.u32 %v2598, 4294901760
        %2651 = vmatmul.f32.gmra.mxu0 %v2650
        %v2652 = vpop.f32.mrf.mxu0
        %v2653 = vadd.f32 %v2627, %v2652
        %2654 = vdwg.mxu0
        %2655 = vmatpush.xpose.msra.mxu0 0.0
        %2656 = vmatpush.xpose.msra.mxu0 0.0
        %2657 = vmatpush.xpose.msra.mxu0 0.0
        %2658 = vmatpush.xpose.msra.mxu0 0.0
        %2659 = vmatpush.xpose.msra.mxu0 0.0
        %2660 = vmatpush.xpose.msra.mxu0 0.0
        %2661 = vmatpush.xpose.msra.mxu0 0.0
        %2662 = vmatpush.xpose.msra.mxu0 0.0
        %2663 = vmatpush.xpose.msra.mxu0 0.0
        %2664 = vmatpush.xpose.msra.mxu0 0.0
        %2665 = vmatpush.xpose.msra.mxu0 0.0
        %2666 = vmatpush.xpose.msra.mxu0 0.0
        %2667 = vmatpush.xpose.msra.mxu0 0.0
        %2668 = vmatpush.xpose.msra.mxu0 0.0
        %2669 = vmatpush.xpose.msra.mxu0 0.0
        %v2670 = vand.u32 %v2601, 4294901760
        %v2671 = vsub.f32 %v2601, %v2670
        %2672 = vmatpush.xpose.msra.mxu0 %v2671
        %v2673 = vand.u32 %v2598, 4294901760
        %v2674 = vsub.f32 %v2598, %v2673
        %2675 = vmatmul.f32.gmra.mxu0 %v2674
        %v2676 = vpop.f32.mrf.mxu0
        %v2677 = vadd.f32 %v2653, %v2676
        %2678 = vdwg.mxu0
        %2679 = vmatpush.xpose.msra.mxu0 0.0
        %2680 = vmatpush.xpose.msra.mxu0 0.0
        %2681 = vmatpush.xpose.msra.mxu0 0.0
        %2682 = vmatpush.xpose.msra.mxu0 0.0
        %2683 = vmatpush.xpose.msra.mxu0 0.0
        %2684 = vmatpush.xpose.msra.mxu0 0.0
        %2685 = vmatpush.xpose.msra.mxu0 0.0
        %2686 = vmatpush.xpose.msra.mxu0 0.0
        %2687 = vmatpush.xpose.msra.mxu0 0.0
        %2688 = vmatpush.xpose.msra.mxu0 0.0
        %2689 = vmatpush.xpose.msra.mxu0 0.0
        %2690 = vmatpush.xpose.msra.mxu0 0.0
        %2691 = vmatpush.xpose.msra.mxu0 0.0
        %2692 = vmatpush.xpose.msra.mxu0 0.0
        %2693 = vmatpush.xpose.msra.mxu0 0.0
        %v2694 = vand.u32 %v2601, 4294901760
        %2695 = vmatpush.xpose.msra.mxu0 %v2694
        %v2696 = vand.u32 %v2598, 4294901760
        %v2697 = vsub.f32 %v2598, %v2696
        %v2698 = vand.u32 %v2697, 4294901760
        %2699 = vmatmul.f32.gmra.mxu0 %v2698
        %v2700 = vpop.f32.mrf.mxu0
        %v2701 = vadd.f32 %v2677, %v2700
        %2702 = vdwg.mxu0
        %2703 = vmatpush.xpose.msra.mxu0 0.0
        %2704 = vmatpush.xpose.msra.mxu0 0.0
        %2705 = vmatpush.xpose.msra.mxu0 0.0
        %2706 = vmatpush.xpose.msra.mxu0 0.0
        %2707 = vmatpush.xpose.msra.mxu0 0.0
        %2708 = vmatpush.xpose.msra.mxu0 0.0
        %2709 = vmatpush.xpose.msra.mxu0 0.0
        %2710 = vmatpush.xpose.msra.mxu0 0.0
        %2711 = vmatpush.xpose.msra.mxu0 0.0
        %2712 = vmatpush.xpose.msra.mxu0 0.0
        %2713 = vmatpush.xpose.msra.mxu0 0.0
        %2714 = vmatpush.xpose.msra.mxu0 0.0
        %2715 = vmatpush.xpose.msra.mxu0 0.0
        %2716 = vmatpush.xpose.msra.mxu0 0.0
        %2717 = vmatpush.xpose.msra.mxu0 0.0
        %v2718 = vand.u32 %v2601, 4294901760
        %v2719 = vsub.f32 %v2601, %v2718
        %v2720 = vand.u32 %v2719, 4294901760
        %2721 = vmatpush.xpose.msra.mxu0 %v2720
        %v2722 = vand.u32 %v2598, 4294901760
        %2723 = vmatmul.f32.gmra.mxu0 %v2722
        %v2724 = vpop.f32.mrf.mxu0
        %v2725 = vadd.f32 %v2701, %v2724
        %2726 = vdwg.mxu0
        %2727 = vmatpush.xpose.msra.mxu0 0.0
        %2728 = vmatpush.xpose.msra.mxu0 0.0
        %2729 = vmatpush.xpose.msra.mxu0 0.0
        %2730 = vmatpush.xpose.msra.mxu0 0.0
        %2731 = vmatpush.xpose.msra.mxu0 0.0
        %2732 = vmatpush.xpose.msra.mxu0 0.0
        %2733 = vmatpush.xpose.msra.mxu0 0.0
        %2734 = vmatpush.xpose.msra.mxu0 0.0
        %2735 = vmatpush.xpose.msra.mxu0 0.0
        %2736 = vmatpush.xpose.msra.mxu0 0.0
        %2737 = vmatpush.xpose.msra.mxu0 0.0
        %2738 = vmatpush.xpose.msra.mxu0 0.0
        %2739 = vmatpush.xpose.msra.mxu0 0.0
        %2740 = vmatpush.xpose.msra.mxu0 0.0
        %2741 = vmatpush.xpose.msra.mxu0 0.0
        %v2742 = vand.u32 %v2601, 4294901760
        %2743 = vmatpush.xpose.msra.mxu0 %v2742
        %v2744 = vand.u32 %v2598, 4294901760
        %2745 = vmatmul.f32.gmra.mxu0 %v2744
        %v2746 = vpop.f32.mrf.mxu0
        %v2747 = vadd.f32 %v2725, %v2746
        %2748 = vdwg.mxu0
        %v2750 = vsel %vm2596, %v744, 0
        %v2753 = vsel %vm2596, %v1484, 0
        %2755 = vmatpush.xpose.msra.mxu0 0.0
        %2756 = vmatpush.xpose.msra.mxu0 0.0
        %2757 = vmatpush.xpose.msra.mxu0 0.0
        %2758 = vmatpush.xpose.msra.mxu0 0.0
        %2759 = vmatpush.xpose.msra.mxu0 0.0
        %2760 = vmatpush.xpose.msra.mxu0 0.0
        %2761 = vmatpush.xpose.msra.mxu0 0.0
        %2762 = vmatpush.xpose.msra.mxu0 0.0
        %2763 = vmatpush.xpose.msra.mxu0 0.0
        %2764 = vmatpush.xpose.msra.mxu0 0.0
        %2765 = vmatpush.xpose.msra.mxu0 0.0
        %2766 = vmatpush.xpose.msra.mxu0 0.0
        %2767 = vmatpush.xpose.msra.mxu0 0.0
        %2768 = vmatpush.xpose.msra.mxu0 0.0
        %2769 = vmatpush.xpose.msra.mxu0 0.0
        %v2770 = vand.u32 %v2753, 4294901760
        %2771 = vmatpush.xpose.msra.mxu0 %v2770
        %v2772 = vand.u32 %v2750, 4294901760
        %v2773 = vsub.f32 %v2750, %v2772
        %v2774 = vand.u32 %v2773, 4294901760
        %v2775 = vsub.f32 %v2773, %v2774
        %v2776 = vand.u32 %v2775, 4294901760
        %2777 = vmatmul.f32.gmra.mxu0 %v2776
        %v2778 = vpop.f32.mrf.mxu0
        %v2779 = vadd.f32 0.0, %v2778
        %2780 = vdwg.mxu0
        %2781 = vmatpush.xpose.msra.mxu0 0.0
        %2782 = vmatpush.xpose.msra.mxu0 0.0
        %2783 = vmatpush.xpose.msra.mxu0 0.0
        %2784 = vmatpush.xpose.msra.mxu0 0.0
        %2785 = vmatpush.xpose.msra.mxu0 0.0
        %2786 = vmatpush.xpose.msra.mxu0 0.0
        %2787 = vmatpush.xpose.msra.mxu0 0.0
        %2788 = vmatpush.xpose.msra.mxu0 0.0
        %2789 = vmatpush.xpose.msra.mxu0 0.0
        %2790 = vmatpush.xpose.msra.mxu0 0.0
        %2791 = vmatpush.xpose.msra.mxu0 0.0
        %2792 = vmatpush.xpose.msra.mxu0 0.0
        %2793 = vmatpush.xpose.msra.mxu0 0.0
        %2794 = vmatpush.xpose.msra.mxu0 0.0
        %2795 = vmatpush.xpose.msra.mxu0 0.0
        %v2796 = vand.u32 %v2753, 4294901760
        %v2797 = vsub.f32 %v2753, %v2796
        %v2798 = vand.u32 %v2797, 4294901760
        %v2799 = vsub.f32 %v2797, %v2798
        %v2800 = vand.u32 %v2799, 4294901760
        %2801 = vmatpush.xpose.msra.mxu0 %v2800
        %v2802 = vand.u32 %v2750, 4294901760
        %2803 = vmatmul.f32.gmra.mxu0 %v2802
        %v2804 = vpop.f32.mrf.mxu0
        %v2805 = vadd.f32 %v2779, %v2804
        %2806 = vdwg.mxu0
        %2807 = vmatpush.xpose.msra.mxu0 0.0
        %2808 = vmatpush.xpose.msra.mxu0 0.0
        %2809 = vmatpush.xpose.msra.mxu0 0.0
        %2810 = vmatpush.xpose.msra.mxu0 0.0
        %2811 = vmatpush.xpose.msra.mxu0 0.0
        %2812 = vmatpush.xpose.msra.mxu0 0.0
        %2813 = vmatpush.xpose.msra.mxu0 0.0
        %2814 = vmatpush.xpose.msra.mxu0 0.0
        %2815 = vmatpush.xpose.msra.mxu0 0.0
        %2816 = vmatpush.xpose.msra.mxu0 0.0
        %2817 = vmatpush.xpose.msra.mxu0 0.0
        %2818 = vmatpush.xpose.msra.mxu0 0.0
        %2819 = vmatpush.xpose.msra.mxu0 0.0
        %2820 = vmatpush.xpose.msra.mxu0 0.0
        %2821 = vmatpush.xpose.msra.mxu0 0.0
        %v2822 = vand.u32 %v2753, 4294901760
        %v2823 = vsub.f32 %v2753, %v2822
        %2824 = vmatpush.xpose.msra.mxu0 %v2823
        %v2825 = vand.u32 %v2750, 4294901760
        %v2826 = vsub.f32 %v2750, %v2825
        %2827 = vmatmul.f32.gmra.mxu0 %v2826
        %v2828 = vpop.f32.mrf.mxu0
        %v2829 = vadd.f32 %v2805, %v2828
        %2830 = vdwg.mxu0
        %2831 = vmatpush.xpose.msra.mxu0 0.0
        %2832 = vmatpush.xpose.msra.mxu0 0.0
        %2833 = vmatpush.xpose.msra.mxu0 0.0
        %2834 = vmatpush.xpose.msra.mxu0 0.0
        %2835 = vmatpush.xpose.msra.mxu0 0.0
        %2836 = vmatpush.xpose.msra.mxu0 0.0
        %2837 = vmatpush.xpose.msra.mxu0 0.0
        %2838 = vmatpush.xpose.msra.mxu0 0.0
        %2839 = vmatpush.xpose.msra.mxu0 0.0
        %2840 = vmatpush.xpose.msra.mxu0 0.0
        %2841 = vmatpush.xpose.msra.mxu0 0.0
        %2842 = vmatpush.xpose.msra.mxu0 0.0
        %2843 = vmatpush.xpose.msra.mxu0 0.0
        %2844 = vmatpush.xpose.msra.mxu0 0.0
        %2845 = vmatpush.xpose.msra.mxu0 0.0
        %v2846 = vand.u32 %v2753, 4294901760
        %2847 = vmatpush.xpose.msra.mxu0 %v2846
        %v2848 = vand.u32 %v2750, 4294901760
        %v2849 = vsub.f32 %v2750, %v2848
        %v2850 = vand.u32 %v2849, 4294901760
        %2851 = vmatmul.f32.gmra.mxu0 %v2850
        %v2852 = vpop.f32.mrf.mxu0
        %v2853 = vadd.f32 %v2829, %v2852
        %2854 = vdwg.mxu0
        %2855 = vmatpush.xpose.msra.mxu0 0.0
        %2856 = vmatpush.xpose.msra.mxu0 0.0
        %2857 = vmatpush.xpose.msra.mxu0 0.0
        %2858 = vmatpush.xpose.msra.mxu0 0.0
        %2859 = vmatpush.xpose.msra.mxu0 0.0
        %2860 = vmatpush.xpose.msra.mxu0 0.0
        %2861 = vmatpush.xpose.msra.mxu0 0.0
        %2862 = vmatpush.xpose.msra.mxu0 0.0
        %2863 = vmatpush.xpose.msra.mxu0 0.0
        %2864 = vmatpush.xpose.msra.mxu0 0.0
        %2865 = vmatpush.xpose.msra.mxu0 0.0
        %2866 = vmatpush.xpose.msra.mxu0 0.0
        %2867 = vmatpush.xpose.msra.mxu0 0.0
        %2868 = vmatpush.xpose.msra.mxu0 0.0
        %2869 = vmatpush.xpose.msra.mxu0 0.0
        %v2870 = vand.u32 %v2753, 4294901760
        %v2871 = vsub.f32 %v2753, %v2870
        %v2872 = vand.u32 %v2871, 4294901760
        %2873 = vmatpush.xpose.msra.mxu0 %v2872
        %v2874 = vand.u32 %v2750, 4294901760
        %2875 = vmatmul.f32.gmra.mxu0 %v2874
        %v2876 = vpop.f32.mrf.mxu0
        %v2877 = vadd.f32 %v2853, %v2876
        %2878 = vdwg.mxu0
        %2879 = vmatpush.xpose.msra.mxu0 0.0
        %2880 = vmatpush.xpose.msra.mxu0 0.0
        %2881 = vmatpush.xpose.msra.mxu0 0.0
        %2882 = vmatpush.xpose.msra.mxu0 0.0
        %2883 = vmatpush.xpose.msra.mxu0 0.0
        %2884 = vmatpush.xpose.msra.mxu0 0.0
        %2885 = vmatpush.xpose.msra.mxu0 0.0
        %2886 = vmatpush.xpose.msra.mxu0 0.0
        %2887 = vmatpush.xpose.msra.mxu0 0.0
        %2888 = vmatpush.xpose.msra.mxu0 0.0
        %2889 = vmatpush.xpose.msra.mxu0 0.0
        %2890 = vmatpush.xpose.msra.mxu0 0.0
        %2891 = vmatpush.xpose.msra.mxu0 0.0
        %2892 = vmatpush.xpose.msra.mxu0 0.0
        %2893 = vmatpush.xpose.msra.mxu0 0.0
        %v2894 = vand.u32 %v2753, 4294901760
        %2895 = vmatpush.xpose.msra.mxu0 %v2894
        %v2896 = vand.u32 %v2750, 4294901760
        %2897 = vmatmul.f32.gmra.mxu0 %v2896
        %v2898 = vpop.f32.mrf.mxu0
        %v2899 = vadd.f32 %v2877, %v2898
        %2900 = vdwg.mxu0
        %v2902 = vsel %vm2596, %v929, 0
        %v2905 = vsel %vm2596, %v1669, 0
        %2907 = vmatpush.xpose.msra.mxu0 0.0
        %2908 = vmatpush.xpose.msra.mxu0 0.0
        %2909 = vmatpush.xpose.msra.mxu0 0.0
        %2910 = vmatpush.xpose.msra.mxu0 0.0
        %2911 = vmatpush.xpose.msra.mxu0 0.0
        %2912 = vmatpush.xpose.msra.mxu0 0.0
        %2913 = vmatpush.xpose.msra.mxu0 0.0
        %2914 = vmatpush.xpose.msra.mxu0 0.0
        %2915 = vmatpush.xpose.msra.mxu0 0.0
        %2916 = vmatpush.xpose.msra.mxu0 0.0
        %2917 = vmatpush.xpose.msra.mxu0 0.0
        %2918 = vmatpush.xpose.msra.mxu0 0.0
        %2919 = vmatpush.xpose.msra.mxu0 0.0
        %2920 = vmatpush.xpose.msra.mxu0 0.0
        %2921 = vmatpush.xpose.msra.mxu0 0.0
        %v2922 = vand.u32 %v2905, 4294901760
        %2923 = vmatpush.xpose.msra.mxu0 %v2922
        %v2924 = vand.u32 %v2902, 4294901760
        %v2925 = vsub.f32 %v2902, %v2924
        %v2926 = vand.u32 %v2925, 4294901760
        %v2927 = vsub.f32 %v2925, %v2926
        %v2928 = vand.u32 %v2927, 4294901760
        %2929 = vmatmul.f32.gmra.mxu0 %v2928
        %v2930 = vpop.f32.mrf.mxu0
        %v2931 = vadd.f32 0.0, %v2930
        %2932 = vdwg.mxu0
        %2933 = vmatpush.xpose.msra.mxu0 0.0
        %2934 = vmatpush.xpose.msra.mxu0 0.0
        %2935 = vmatpush.xpose.msra.mxu0 0.0
        %2936 = vmatpush.xpose.msra.mxu0 0.0
        %2937 = vmatpush.xpose.msra.mxu0 0.0
        %2938 = vmatpush.xpose.msra.mxu0 0.0
        %2939 = vmatpush.xpose.msra.mxu0 0.0
        %2940 = vmatpush.xpose.msra.mxu0 0.0
        %2941 = vmatpush.xpose.msra.mxu0 0.0
        %2942 = vmatpush.xpose.msra.mxu0 0.0
        %2943 = vmatpush.xpose.msra.mxu0 0.0
        %2944 = vmatpush.xpose.msra.mxu0 0.0
        %2945 = vmatpush.xpose.msra.mxu0 0.0
        %2946 = vmatpush.xpose.msra.mxu0 0.0
        %2947 = vmatpush.xpose.msra.mxu0 0.0
        %v2948 = vand.u32 %v2905, 4294901760
        %v2949 = vsub.f32 %v2905, %v2948
        %v2950 = vand.u32 %v2949, 4294901760
        %v2951 = vsub.f32 %v2949, %v2950
        %v2952 = vand.u32 %v2951, 4294901760
        %2953 = vmatpush.xpose.msra.mxu0 %v2952
        %v2954 = vand.u32 %v2902, 4294901760
        %2955 = vmatmul.f32.gmra.mxu0 %v2954
        %v2956 = vpop.f32.mrf.mxu0
        %v2957 = vadd.f32 %v2931, %v2956
        %2958 = vdwg.mxu0
        %2959 = vmatpush.xpose.msra.mxu0 0.0
        %2960 = vmatpush.xpose.msra.mxu0 0.0
        %2961 = vmatpush.xpose.msra.mxu0 0.0
        %2962 = vmatpush.xpose.msra.mxu0 0.0
        %2963 = vmatpush.xpose.msra.mxu0 0.0
        %2964 = vmatpush.xpose.msra.mxu0 0.0
        %2965 = vmatpush.xpose.msra.mxu0 0.0
        %2966 = vmatpush.xpose.msra.mxu0 0.0
        %2967 = vmatpush.xpose.msra.mxu0 0.0
        %2968 = vmatpush.xpose.msra.mxu0 0.0
        %2969 = vmatpush.xpose.msra.mxu0 0.0
        %2970 = vmatpush.xpose.msra.mxu0 0.0
        %2971 = vmatpush.xpose.msra.mxu0 0.0
        %2972 = vmatpush.xpose.msra.mxu0 0.0
        %2973 = vmatpush.xpose.msra.mxu0 0.0
        %v2974 = vand.u32 %v2905, 4294901760
        %v2975 = vsub.f32 %v2905, %v2974
        %2976 = vmatpush.xpose.msra.mxu0 %v2975
        %v2977 = vand.u32 %v2902, 4294901760
        %v2978 = vsub.f32 %v2902, %v2977
        %2979 = vmatmul.f32.gmra.mxu0 %v2978
        %v2980 = vpop.f32.mrf.mxu0
        %v2981 = vadd.f32 %v2957, %v2980
        %2982 = vdwg.mxu0
        %2983 = vmatpush.xpose.msra.mxu0 0.0
        %2984 = vmatpush.xpose.msra.mxu0 0.0
        %2985 = vmatpush.xpose.msra.mxu0 0.0
        %2986 = vmatpush.xpose.msra.mxu0 0.0
        %2987 = vmatpush.xpose.msra.mxu0 0.0
        %2988 = vmatpush.xpose.msra.mxu0 0.0
        %2989 = vmatpush.xpose.msra.mxu0 0.0
        %2990 = vmatpush.xpose.msra.mxu0 0.0
        %2991 = vmatpush.xpose.msra.mxu0 0.0
        %2992 = vmatpush.xpose.msra.mxu0 0.0
        %2993 = vmatpush.xpose.msra.mxu0 0.0
        %2994 = vmatpush.xpose.msra.mxu0 0.0
        %2995 = vmatpush.xpose.msra.mxu0 0.0
        %2996 = vmatpush.xpose.msra.mxu0 0.0
        %2997 = vmatpush.xpose.msra.mxu0 0.0
        %v2998 = vand.u32 %v2905, 4294901760
        %2999 = vmatpush.xpose.msra.mxu0 %v2998
        %v3000 = vand.u32 %v2902, 4294901760
        %v3001 = vsub.f32 %v2902, %v3000
        %v3002 = vand.u32 %v3001, 4294901760
        %3003 = vmatmul.f32.gmra.mxu0 %v3002
        %v3004 = vpop.f32.mrf.mxu0
        %v3005 = vadd.f32 %v2981, %v3004
        %3006 = vdwg.mxu0
        %3007 = vmatpush.xpose.msra.mxu0 0.0
        %3008 = vmatpush.xpose.msra.mxu0 0.0
        %3009 = vmatpush.xpose.msra.mxu0 0.0
        %3010 = vmatpush.xpose.msra.mxu0 0.0
        %3011 = vmatpush.xpose.msra.mxu0 0.0
        %3012 = vmatpush.xpose.msra.mxu0 0.0
        %3013 = vmatpush.xpose.msra.mxu0 0.0
        %3014 = vmatpush.xpose.msra.mxu0 0.0
        %3015 = vmatpush.xpose.msra.mxu0 0.0
        %3016 = vmatpush.xpose.msra.mxu0 0.0
        %3017 = vmatpush.xpose.msra.mxu0 0.0
        %3018 = vmatpush.xpose.msra.mxu0 0.0
        %3019 = vmatpush.xpose.msra.mxu0 0.0
        %3020 = vmatpush.xpose.msra.mxu0 0.0
        %3021 = vmatpush.xpose.msra.mxu0 0.0
        %v3022 = vand.u32 %v2905, 4294901760
        %v3023 = vsub.f32 %v2905, %v3022
        %v3024 = vand.u32 %v3023, 4294901760
        %3025 = vmatpush.xpose.msra.mxu0 %v3024
        %v3026 = vand.u32 %v2902, 4294901760
        %3027 = vmatmul.f32.gmra.mxu0 %v3026
        %v3028 = vpop.f32.mrf.mxu0
        %v3029 = vadd.f32 %v3005, %v3028
        %3030 = vdwg.mxu0
        %3031 = vmatpush.xpose.msra.mxu0 0.0
        %3032 = vmatpush.xpose.msra.mxu0 0.0
        %3033 = vmatpush.xpose.msra.mxu0 0.0
        %3034 = vmatpush.xpose.msra.mxu0 0.0
        %3035 = vmatpush.xpose.msra.mxu0 0.0
        %3036 = vmatpush.xpose.msra.mxu0 0.0
        %3037 = vmatpush.xpose.msra.mxu0 0.0
        %3038 = vmatpush.xpose.msra.mxu0 0.0
        %3039 = vmatpush.xpose.msra.mxu0 0.0
        %3040 = vmatpush.xpose.msra.mxu0 0.0
        %3041 = vmatpush.xpose.msra.mxu0 0.0
        %3042 = vmatpush.xpose.msra.mxu0 0.0
        %3043 = vmatpush.xpose.msra.mxu0 0.0
        %3044 = vmatpush.xpose.msra.mxu0 0.0
        %3045 = vmatpush.xpose.msra.mxu0 0.0
        %v3046 = vand.u32 %v2905, 4294901760
        %3047 = vmatpush.xpose.msra.mxu0 %v3046
        %v3048 = vand.u32 %v2902, 4294901760
        %3049 = vmatmul.f32.gmra.mxu0 %v3048
        %v3050 = vpop.f32.mrf.mxu0
        %v3051 = vadd.f32 %v3029, %v3050
        %3052 = vdwg.mxu0
        %v3054 = vsel %vm2596, %v1114, 0
        %v3057 = vsel %vm2596, %v1854, 0
        %3059 = vmatpush.xpose.msra.mxu0 0.0
        %3060 = vmatpush.xpose.msra.mxu0 0.0
        %3061 = vmatpush.xpose.msra.mxu0 0.0
        %3062 = vmatpush.xpose.msra.mxu0 0.0
        %3063 = vmatpush.xpose.msra.mxu0 0.0
        %3064 = vmatpush.xpose.msra.mxu0 0.0
        %3065 = vmatpush.xpose.msra.mxu0 0.0
        %3066 = vmatpush.xpose.msra.mxu0 0.0
        %3067 = vmatpush.xpose.msra.mxu0 0.0
        %3068 = vmatpush.xpose.msra.mxu0 0.0
        %3069 = vmatpush.xpose.msra.mxu0 0.0
        %3070 = vmatpush.xpose.msra.mxu0 0.0
        %3071 = vmatpush.xpose.msra.mxu0 0.0
        %3072 = vmatpush.xpose.msra.mxu0 0.0
        %3073 = vmatpush.xpose.msra.mxu0 0.0
        %v3074 = vand.u32 %v3057, 4294901760
        %3075 = vmatpush.xpose.msra.mxu0 %v3074
        %v3076 = vand.u32 %v3054, 4294901760
        %v3077 = vsub.f32 %v3054, %v3076
        %v3078 = vand.u32 %v3077, 4294901760
        %v3079 = vsub.f32 %v3077, %v3078
        %v3080 = vand.u32 %v3079, 4294901760
        %3081 = vmatmul.f32.gmra.mxu0 %v3080
        %v3082 = vpop.f32.mrf.mxu0
        %v3083 = vadd.f32 0.0, %v3082
        %3084 = vdwg.mxu0
        %3085 = vmatpush.xpose.msra.mxu0 0.0
        %3086 = vmatpush.xpose.msra.mxu0 0.0
        %3087 = vmatpush.xpose.msra.mxu0 0.0
        %3088 = vmatpush.xpose.msra.mxu0 0.0
        %3089 = vmatpush.xpose.msra.mxu0 0.0
        %3090 = vmatpush.xpose.msra.mxu0 0.0
        %3091 = vmatpush.xpose.msra.mxu0 0.0
        %3092 = vmatpush.xpose.msra.mxu0 0.0
        %3093 = vmatpush.xpose.msra.mxu0 0.0
        %3094 = vmatpush.xpose.msra.mxu0 0.0
        %3095 = vmatpush.xpose.msra.mxu0 0.0
        %3096 = vmatpush.xpose.msra.mxu0 0.0
        %3097 = vmatpush.xpose.msra.mxu0 0.0
        %3098 = vmatpush.xpose.msra.mxu0 0.0
        %3099 = vmatpush.xpose.msra.mxu0 0.0
        %v3100 = vand.u32 %v3057, 4294901760
        %v3101 = vsub.f32 %v3057, %v3100
        %v3102 = vand.u32 %v3101, 4294901760
        %v3103 = vsub.f32 %v3101, %v3102
        %v3104 = vand.u32 %v3103, 4294901760
        %3105 = vmatpush.xpose.msra.mxu0 %v3104
        %v3106 = vand.u32 %v3054, 4294901760
        %3107 = vmatmul.f32.gmra.mxu0 %v3106
        %v3108 = vpop.f32.mrf.mxu0
        %v3109 = vadd.f32 %v3083, %v3108
        %3110 = vdwg.mxu0
        %3111 = vmatpush.xpose.msra.mxu0 0.0
        %3112 = vmatpush.xpose.msra.mxu0 0.0
        %3113 = vmatpush.xpose.msra.mxu0 0.0
        %3114 = vmatpush.xpose.msra.mxu0 0.0
        %3115 = vmatpush.xpose.msra.mxu0 0.0
        %3116 = vmatpush.xpose.msra.mxu0 0.0
        %3117 = vmatpush.xpose.msra.mxu0 0.0
        %3118 = vmatpush.xpose.msra.mxu0 0.0
        %3119 = vmatpush.xpose.msra.mxu0 0.0
        %3120 = vmatpush.xpose.msra.mxu0 0.0
        %3121 = vmatpush.xpose.msra.mxu0 0.0
        %3122 = vmatpush.xpose.msra.mxu0 0.0
        %3123 = vmatpush.xpose.msra.mxu0 0.0
        %3124 = vmatpush.xpose.msra.mxu0 0.0
        %3125 = vmatpush.xpose.msra.mxu0 0.0
        %v3126 = vand.u32 %v3057, 4294901760
        %v3127 = vsub.f32 %v3057, %v3126
        %3128 = vmatpush.xpose.msra.mxu0 %v3127
        %v3129 = vand.u32 %v3054, 4294901760
        %v3130 = vsub.f32 %v3054, %v3129
        %3131 = vmatmul.f32.gmra.mxu0 %v3130
        %v3132 = vpop.f32.mrf.mxu0
        %v3133 = vadd.f32 %v3109, %v3132
        %3134 = vdwg.mxu0
        %3135 = vmatpush.xpose.msra.mxu0 0.0
        %3136 = vmatpush.xpose.msra.mxu0 0.0
        %3137 = vmatpush.xpose.msra.mxu0 0.0
        %3138 = vmatpush.xpose.msra.mxu0 0.0
        %3139 = vmatpush.xpose.msra.mxu0 0.0
        %3140 = vmatpush.xpose.msra.mxu0 0.0
        %3141 = vmatpush.xpose.msra.mxu0 0.0
        %3142 = vmatpush.xpose.msra.mxu0 0.0
        %3143 = vmatpush.xpose.msra.mxu0 0.0
        %3144 = vmatpush.xpose.msra.mxu0 0.0
        %3145 = vmatpush.xpose.msra.mxu0 0.0
        %3146 = vmatpush.xpose.msra.mxu0 0.0
        %3147 = vmatpush.xpose.msra.mxu0 0.0
        %3148 = vmatpush.xpose.msra.mxu0 0.0
        %3149 = vmatpush.xpose.msra.mxu0 0.0
        %v3150 = vand.u32 %v3057, 4294901760
        %3151 = vmatpush.xpose.msra.mxu0 %v3150
        %v3152 = vand.u32 %v3054, 4294901760
        %v3153 = vsub.f32 %v3054, %v3152
        %v3154 = vand.u32 %v3153, 4294901760
        %3155 = vmatmul.f32.gmra.mxu0 %v3154
        %v3156 = vpop.f32.mrf.mxu0
        %v3157 = vadd.f32 %v3133, %v3156
        %3158 = vdwg.mxu0
        %3159 = vmatpush.xpose.msra.mxu0 0.0
        %3160 = vmatpush.xpose.msra.mxu0 0.0
        %3161 = vmatpush.xpose.msra.mxu0 0.0
        %3162 = vmatpush.xpose.msra.mxu0 0.0
        %3163 = vmatpush.xpose.msra.mxu0 0.0
        %3164 = vmatpush.xpose.msra.mxu0 0.0
        %3165 = vmatpush.xpose.msra.mxu0 0.0
        %3166 = vmatpush.xpose.msra.mxu0 0.0
        %3167 = vmatpush.xpose.msra.mxu0 0.0
        %3168 = vmatpush.xpose.msra.mxu0 0.0
        %3169 = vmatpush.xpose.msra.mxu0 0.0
        %3170 = vmatpush.xpose.msra.mxu0 0.0
        %3171 = vmatpush.xpose.msra.mxu0 0.0
        %3172 = vmatpush.xpose.msra.mxu0 0.0
        %3173 = vmatpush.xpose.msra.mxu0 0.0
        %v3174 = vand.u32 %v3057, 4294901760
        %v3175 = vsub.f32 %v3057, %v3174
        %v3176 = vand.u32 %v3175, 4294901760
        %3177 = vmatpush.xpose.msra.mxu0 %v3176
        %v3178 = vand.u32 %v3054, 4294901760
        %3179 = vmatmul.f32.gmra.mxu0 %v3178
        %v3180 = vpop.f32.mrf.mxu0
        %v3181 = vadd.f32 %v3157, %v3180
        %3182 = vdwg.mxu0
        %3183 = vmatpush.xpose.msra.mxu0 0.0
        %3184 = vmatpush.xpose.msra.mxu0 0.0
        %3185 = vmatpush.xpose.msra.mxu0 0.0
        %3186 = vmatpush.xpose.msra.mxu0 0.0
        %3187 = vmatpush.xpose.msra.mxu0 0.0
        %3188 = vmatpush.xpose.msra.mxu0 0.0
        %3189 = vmatpush.xpose.msra.mxu0 0.0
        %3190 = vmatpush.xpose.msra.mxu0 0.0
        %3191 = vmatpush.xpose.msra.mxu0 0.0
        %3192 = vmatpush.xpose.msra.mxu0 0.0
        %3193 = vmatpush.xpose.msra.mxu0 0.0
        %3194 = vmatpush.xpose.msra.mxu0 0.0
        %3195 = vmatpush.xpose.msra.mxu0 0.0
        %3196 = vmatpush.xpose.msra.mxu0 0.0
        %3197 = vmatpush.xpose.msra.mxu0 0.0
        %v3198 = vand.u32 %v3057, 4294901760
        %3199 = vmatpush.xpose.msra.mxu0 %v3198
        %v3200 = vand.u32 %v3054, 4294901760
        %3201 = vmatmul.f32.gmra.mxu0 %v3200
        %v3202 = vpop.f32.mrf.mxu0
        %v3203 = vadd.f32 %v3181, %v3202
        %3204 = vdwg.mxu0
        %v3205 = vsel %vm2596, %v2747, -inf
        %3206 = vmax.xlane.f32.xlu0 %v3205
        %v3207 = vpop.xlane.xlu0 %3206
        %v3208 = vsel %vm2596, %v2899, -inf
        %3209 = vmax.xlane.f32.xlu0 %v3208
        %v3210 = vpop.xlane.xlu0 %3209
        %v3211 = vsel %vm2596, %v3051, -inf
        %3212 = vmax.xlane.f32.xlu0 %v3211
        %v3213 = vpop.xlane.xlu0 %3212
        %v3214 = vsel %vm2596, %v3203, -inf
        %3215 = vmax.xlane.f32.xlu0 %v3214
        %v3216 = vpop.xlane.xlu0 %3215
        %v3217 = vsub.f32 %v2747, %v3207
        %v3218 = vsub.f32 %v2899, %v3210
        %v3219 = vsub.f32 %v3051, %v3213
        %v3220 = vsub.f32 %v3203, %v3216
        %v3221 = vmul.f32 %v3217, 1.442695
        %v3222 = vpow.pop %v3221
        %v3223 = vmul.f32 %v3218, 1.442695
        %v3224 = vpow.pop %v3223
        %v3225 = vmul.f32 %v3219, 1.442695
        %v3226 = vpow.pop %v3225
        %v3227 = vmul.f32 %v3220, 1.442695
        %v3228 = vpow.pop %v3227
        %v3229 = vsel %vm2596, %v3222, 0.0
        %3230 = vadd.xlane.f32.xlu0 %v3229
        %v3231 = vpop.xlane.xlu0 %3230
        %v3232 = vsel %vm2596, %v3224, 0.0
        %3233 = vadd.xlane.f32.xlu0 %v3232
        %v3234 = vpop.xlane.xlu0 %3233
        %v3235 = vsel %vm2596, %v3226, 0.0
        %3236 = vadd.xlane.f32.xlu0 %v3235
        %v3237 = vpop.xlane.xlu0 %3236
        %v3238 = vsel %vm2596, %v3228, 0.0
        %3239 = vadd.xlane.f32.xlu0 %v3238
        %v3240 = vpop.xlane.xlu0 %3239
        %v3241 = vrcp.pop %v3231
        %v3242 = vmul.f32 %v3231, %v3241
        %v3243 = vsub.f32 1.0, %v3242
        %v3244 = vmul.f32 %v3241, %v3243
        %v3245 = vadd.f32 %v3241, %v3244
        %vm3246 = vweird.f32 %v3231
        %vm3247 = vweird.f32 %v3241
        %vm3248 = vmor %vm3246, %vm3247
        %v3249 = vsel %vm3248, %v3241, %v3245
        %v3250 = vand.u32 2147483647, %v3231
        %vm3251 = vcmp.eq.f32.partialorder %v3250, 8.507059e+37
        %v3252 = vand.u32 %v3231, 2147483648
        %v3253 = vor.u32 1.1754944e-38, %v3252
        %v3254 = vsel %vm3251, %v3253, %v3249
        %v3255 = vmul.f32 %v3222, %v3254
        %v3256 = vrcp.pop %v3234
        %v3257 = vmul.f32 %v3234, %v3256
        %v3258 = vsub.f32 1.0, %v3257
        %v3259 = vmul.f32 %v3256, %v3258
        %v3260 = vadd.f32 %v3256, %v3259
        %vm3261 = vweird.f32 %v3234
        %vm3262 = vweird.f32 %v3256
        %vm3263 = vmor %vm3261, %vm3262
        %v3264 = vsel %vm3263, %v3256, %v3260
        %v3265 = vand.u32 2147483647, %v3234
        %vm3266 = vcmp.eq.f32.partialorder %v3265, 8.507059e+37
        %v3267 = vand.u32 %v3234, 2147483648
        %v3268 = vor.u32 1.1754944e-38, %v3267
        %v3269 = vsel %vm3266, %v3268, %v3264
        %v3270 = vmul.f32 %v3224, %v3269
        %v3271 = vrcp.pop %v3237
        %v3272 = vmul.f32 %v3237, %v3271
        %v3273 = vsub.f32 1.0, %v3272
        %v3274 = vmul.f32 %v3271, %v3273
        %v3275 = vadd.f32 %v3271, %v3274
        %vm3276 = vweird.f32 %v3237
        %vm3277 = vweird.f32 %v3271
        %vm3278 = vmor %vm3276, %vm3277
        %v3279 = vsel %vm3278, %v3271, %v3275
        %v3280 = vand.u32 2147483647, %v3237
        %vm3281 = vcmp.eq.f32.partialorder %v3280, 8.507059e+37
        %v3282 = vand.u32 %v3237, 2147483648
        %v3283 = vor.u32 1.1754944e-38, %v3282
        %v3284 = vsel %vm3281, %v3283, %v3279
        %v3285 = vmul.f32 %v3226, %v3284
        %v3286 = vrcp.pop %v3240
        %v3287 = vmul.f32 %v3240, %v3286
        %v3288 = vsub.f32 1.0, %v3287
        %v3289 = vmul.f32 %v3286, %v3288
        %v3290 = vadd.f32 %v3286, %v3289
        %vm3291 = vweird.f32 %v3240
        %vm3292 = vweird.f32 %v3286
        %vm3293 = vmor %vm3291, %vm3292
        %v3294 = vsel %vm3293, %v3286, %v3290
        %v3295 = vand.u32 2147483647, %v3240
        %vm3296 = vcmp.eq.f32.partialorder %v3295, 8.507059e+37
        %v3297 = vand.u32 %v3240, 2147483648
        %v3298 = vor.u32 1.1754944e-38, %v3297
        %v3299 = vsel %vm3296, %v3298, %v3294
        %v3300 = vmul.f32 %v3228, %v3299
        %v3302 = vsel %vm2596, %v3255, 0
        %3304 = vmatpush.msra.mxu0 0.0
        %3305 = vmatpush.msra.mxu0 0.0
        %3306 = vmatpush.msra.mxu0 0.0
        %3307 = vmatpush.msra.mxu0 0.0
        %3308 = vmatpush.msra.mxu0 0.0
        %3309 = vmatpush.msra.mxu0 0.0
        %3310 = vmatpush.msra.mxu0 0.0
        %3311 = vmatpush.msra.mxu0 0.0
        %3312 = vmatpush.msra.mxu0 0.0
        %3313 = vmatpush.msra.mxu0 0.0
        %3314 = vmatpush.msra.mxu0 0.0
        %3315 = vmatpush.msra.mxu0 0.0
        %3316 = vmatpush.msra.mxu0 0.0
        %3317 = vmatpush.msra.mxu0 0.0
        %3318 = vmatpush.msra.mxu0 0.0
        %v3319 = vand.u32 %v2039, 4294901760
        %3320 = vmatpush.msra.mxu0 %v3319
        %v3321 = vand.u32 %v3302, 4294901760
        %v3322 = vsub.f32 %v3302, %v3321
        %v3323 = vand.u32 %v3322, 4294901760
        %v3324 = vsub.f32 %v3322, %v3323
        %v3325 = vand.u32 %v3324, 4294901760
        %3326 = vmatmul.f32.gmra.mxu0 %v3325
        %v3327 = vpop.f32.mrf.mxu0
        %v3328 = vadd.f32 0.0, %v3327
        %3329 = vdwg.mxu0
        %3330 = vmatpush.msra.mxu0 0.0
        %3331 = vmatpush.msra.mxu0 0.0
        %3332 = vmatpush.msra.mxu0 0.0
        %3333 = vmatpush.msra.mxu0 0.0
        %3334 = vmatpush.msra.mxu0 0.0
        %3335 = vmatpush.msra.mxu0 0.0
        %3336 = vmatpush.msra.mxu0 0.0
        %3337 = vmatpush.msra.mxu0 0.0
        %3338 = vmatpush.msra.mxu0 0.0
        %3339 = vmatpush.msra.mxu0 0.0
        %3340 = vmatpush.msra.mxu0 0.0
        %3341 = vmatpush.msra.mxu0 0.0
        %3342 = vmatpush.msra.mxu0 0.0
        %3343 = vmatpush.msra.mxu0 0.0
        %3344 = vmatpush.msra.mxu0 0.0
        %v3345 = vand.u32 %v2039, 4294901760
        %v3346 = vsub.f32 %v2039, %v3345
        %v3347 = vand.u32 %v3346, 4294901760
        %v3348 = vsub.f32 %v3346, %v3347
        %v3349 = vand.u32 %v3348, 4294901760
        %3350 = vmatpush.msra.mxu0 %v3349
        %v3351 = vand.u32 %v3302, 4294901760
        %3352 = vmatmul.f32.gmra.mxu0 %v3351
        %v3353 = vpop.f32.mrf.mxu0
        %v3354 = vadd.f32 %v3328, %v3353
        %3355 = vdwg.mxu0
        %3356 = vmatpush.msra.mxu0 0.0
        %3357 = vmatpush.msra.mxu0 0.0
        %3358 = vmatpush.msra.mxu0 0.0
        %3359 = vmatpush.msra.mxu0 0.0
        %3360 = vmatpush.msra.mxu0 0.0
        %3361 = vmatpush.msra.mxu0 0.0
        %3362 = vmatpush.msra.mxu0 0.0
        %3363 = vmatpush.msra.mxu0 0.0
        %3364 = vmatpush.msra.mxu0 0.0
        %3365 = vmatpush.msra.mxu0 0.0
        %3366 = vmatpush.msra.mxu0 0.0
        %3367 = vmatpush.msra.mxu0 0.0
        %3368 = vmatpush.msra.mxu0 0.0
        %3369 = vmatpush.msra.mxu0 0.0
        %3370 = vmatpush.msra.mxu0 0.0
        %v3371 = vand.u32 %v2039, 4294901760
        %v3372 = vsub.f32 %v2039, %v3371
        %3373 = vmatpush.msra.mxu0 %v3372
        %v3374 = vand.u32 %v3302, 4294901760
        %v3375 = vsub.f32 %v3302, %v3374
        %3376 = vmatmul.f32.gmra.mxu0 %v3375
        %v3377 = vpop.f32.mrf.mxu0
        %v3378 = vadd.f32 %v3354, %v3377
        %3379 = vdwg.mxu0
        %3380 = vmatpush.msra.mxu0 0.0
        %3381 = vmatpush.msra.mxu0 0.0
        %3382 = vmatpush.msra.mxu0 0.0
        %3383 = vmatpush.msra.mxu0 0.0
        %3384 = vmatpush.msra.mxu0 0.0
        %3385 = vmatpush.msra.mxu0 0.0
        %3386 = vmatpush.msra.mxu0 0.0
        %3387 = vmatpush.msra.mxu0 0.0
        %3388 = vmatpush.msra.mxu0 0.0
        %3389 = vmatpush.msra.mxu0 0.0
        %3390 = vmatpush.msra.mxu0 0.0
        %3391 = vmatpush.msra.mxu0 0.0
        %3392 = vmatpush.msra.mxu0 0.0
        %3393 = vmatpush.msra.mxu0 0.0
        %3394 = vmatpush.msra.mxu0 0.0
        %v3395 = vand.u32 %v2039, 4294901760
        %3396 = vmatpush.msra.mxu0 %v3395
        %v3397 = vand.u32 %v3302, 4294901760
        %v3398 = vsub.f32 %v3302, %v3397
        %v3399 = vand.u32 %v3398, 4294901760
        %3400 = vmatmul.f32.gmra.mxu0 %v3399
        %v3401 = vpop.f32.mrf.mxu0
        %v3402 = vadd.f32 %v3378, %v3401
        %3403 = vdwg.mxu0
        %3404 = vmatpush.msra.mxu0 0.0
        %3405 = vmatpush.msra.mxu0 0.0
        %3406 = vmatpush.msra.mxu0 0.0
        %3407 = vmatpush.msra.mxu0 0.0
        %3408 = vmatpush.msra.mxu0 0.0
        %3409 = vmatpush.msra.mxu0 0.0
        %3410 = vmatpush.msra.mxu0 0.0
        %3411 = vmatpush.msra.mxu0 0.0
        %3412 = vmatpush.msra.mxu0 0.0
        %3413 = vmatpush.msra.mxu0 0.0
        %3414 = vmatpush.msra.mxu0 0.0
        %3415 = vmatpush.msra.mxu0 0.0
        %3416 = vmatpush.msra.mxu0 0.0
        %3417 = vmatpush.msra.mxu0 0.0
        %3418 = vmatpush.msra.mxu0 0.0
        %v3419 = vand.u32 %v2039, 4294901760
        %v3420 = vsub.f32 %v2039, %v3419
        %v3421 = vand.u32 %v3420, 4294901760
        %3422 = vmatpush.msra.mxu0 %v3421
        %v3423 = vand.u32 %v3302, 4294901760
        %3424 = vmatmul.f32.gmra.mxu0 %v3423
        %v3425 = vpop.f32.mrf.mxu0
        %v3426 = vadd.f32 %v3402, %v3425
        %3427 = vdwg.mxu0
        %3428 = vmatpush.msra.mxu0 0.0
        %3429 = vmatpush.msra.mxu0 0.0
        %3430 = vmatpush.msra.mxu0 0.0
        %3431 = vmatpush.msra.mxu0 0.0
        %3432 = vmatpush.msra.mxu0 0.0
        %3433 = vmatpush.msra.mxu0 0.0
        %3434 = vmatpush.msra.mxu0 0.0
        %3435 = vmatpush.msra.mxu0 0.0
        %3436 = vmatpush.msra.mxu0 0.0
        %3437 = vmatpush.msra.mxu0 0.0
        %3438 = vmatpush.msra.mxu0 0.0
        %3439 = vmatpush.msra.mxu0 0.0
        %3440 = vmatpush.msra.mxu0 0.0
        %3441 = vmatpush.msra.mxu0 0.0
        %3442 = vmatpush.msra.mxu0 0.0
        %v3443 = vand.u32 %v2039, 4294901760
        %3444 = vmatpush.msra.mxu0 %v3443
        %v3445 = vand.u32 %v3302, 4294901760
        %3446 = vmatmul.f32.gmra.mxu0 %v3445
        %v3447 = vpop.f32.mrf.mxu0
        %v3448 = vadd.f32 %v3426, %v3447
        %3449 = vdwg.mxu0
        %v3451 = vsel %vm2596, %v3270, 0
        %3453 = vmatpush.msra.mxu0 0.0
        %3454 = vmatpush.msra.mxu0 0.0
        %3455 = vmatpush.msra.mxu0 0.0
        %3456 = vmatpush.msra.mxu0 0.0
        %3457 = vmatpush.msra.mxu0 0.0
        %3458 = vmatpush.msra.mxu0 0.0
        %3459 = vmatpush.msra.mxu0 0.0
        %3460 = vmatpush.msra.mxu0 0.0
        %3461 = vmatpush.msra.mxu0 0.0
        %3462 = vmatpush.msra.mxu0 0.0
        %3463 = vmatpush.msra.mxu0 0.0
        %3464 = vmatpush.msra.mxu0 0.0
        %3465 = vmatpush.msra.mxu0 0.0
        %3466 = vmatpush.msra.mxu0 0.0
        %3467 = vmatpush.msra.mxu0 0.0
        %v3468 = vand.u32 %v2224, 4294901760
        %3469 = vmatpush.msra.mxu0 %v3468
        %v3470 = vand.u32 %v3451, 4294901760
        %v3471 = vsub.f32 %v3451, %v3470
        %v3472 = vand.u32 %v3471, 4294901760
        %v3473 = vsub.f32 %v3471, %v3472
        %v3474 = vand.u32 %v3473, 4294901760
        %3475 = vmatmul.f32.gmra.mxu0 %v3474
        %v3476 = vpop.f32.mrf.mxu0
        %v3477 = vadd.f32 0.0, %v3476
        %3478 = vdwg.mxu0
        %3479 = vmatpush.msra.mxu0 0.0
        %3480 = vmatpush.msra.mxu0 0.0
        %3481 = vmatpush.msra.mxu0 0.0
        %3482 = vmatpush.msra.mxu0 0.0
        %3483 = vmatpush.msra.mxu0 0.0
        %3484 = vmatpush.msra.mxu0 0.0
        %3485 = vmatpush.msra.mxu0 0.0
        %3486 = vmatpush.msra.mxu0 0.0
        %3487 = vmatpush.msra.mxu0 0.0
        %3488 = vmatpush.msra.mxu0 0.0
        %3489 = vmatpush.msra.mxu0 0.0
        %3490 = vmatpush.msra.mxu0 0.0
        %3491 = vmatpush.msra.mxu0 0.0
        %3492 = vmatpush.msra.mxu0 0.0
        %3493 = vmatpush.msra.mxu0 0.0
        %v3494 = vand.u32 %v2224, 4294901760
        %v3495 = vsub.f32 %v2224, %v3494
        %v3496 = vand.u32 %v3495, 4294901760
        %v3497 = vsub.f32 %v3495, %v3496
        %v3498 = vand.u32 %v3497, 4294901760
        %3499 = vmatpush.msra.mxu0 %v3498
        %v3500 = vand.u32 %v3451, 4294901760
        %3501 = vmatmul.f32.gmra.mxu0 %v3500
        %v3502 = vpop.f32.mrf.mxu0
        %v3503 = vadd.f32 %v3477, %v3502
        %3504 = vdwg.mxu0
        %3505 = vmatpush.msra.mxu0 0.0
        %3506 = vmatpush.msra.mxu0 0.0
        %3507 = vmatpush.msra.mxu0 0.0
        %3508 = vmatpush.msra.mxu0 0.0
        %3509 = vmatpush.msra.mxu0 0.0
        %3510 = vmatpush.msra.mxu0 0.0
        %3511 = vmatpush.msra.mxu0 0.0
        %3512 = vmatpush.msra.mxu0 0.0
        %3513 = vmatpush.msra.mxu0 0.0
        %3514 = vmatpush.msra.mxu0 0.0
        %3515 = vmatpush.msra.mxu0 0.0
        %3516 = vmatpush.msra.mxu0 0.0
        %3517 = vmatpush.msra.mxu0 0.0
        %3518 = vmatpush.msra.mxu0 0.0
        %3519 = vmatpush.msra.mxu0 0.0
        %v3520 = vand.u32 %v2224, 4294901760
        %v3521 = vsub.f32 %v2224, %v3520
        %3522 = vmatpush.msra.mxu0 %v3521
        %v3523 = vand.u32 %v3451, 4294901760
        %v3524 = vsub.f32 %v3451, %v3523
        %3525 = vmatmul.f32.gmra.mxu0 %v3524
        %v3526 = vpop.f32.mrf.mxu0
        %v3527 = vadd.f32 %v3503, %v3526
        %3528 = vdwg.mxu0
        %3529 = vmatpush.msra.mxu0 0.0
        %3530 = vmatpush.msra.mxu0 0.0
        %3531 = vmatpush.msra.mxu0 0.0
        %3532 = vmatpush.msra.mxu0 0.0
        %3533 = vmatpush.msra.mxu0 0.0
        %3534 = vmatpush.msra.mxu0 0.0
        %3535 = vmatpush.msra.mxu0 0.0
        %3536 = vmatpush.msra.mxu0 0.0
        %3537 = vmatpush.msra.mxu0 0.0
        %3538 = vmatpush.msra.mxu0 0.0
        %3539 = vmatpush.msra.mxu0 0.0
        %3540 = vmatpush.msra.mxu0 0.0
        %3541 = vmatpush.msra.mxu0 0.0
        %3542 = vmatpush.msra.mxu0 0.0
        %3543 = vmatpush.msra.mxu0 0.0
        %v3544 = vand.u32 %v2224, 4294901760
        %3545 = vmatpush.msra.mxu0 %v3544
        %v3546 = vand.u32 %v3451, 4294901760
        %v3547 = vsub.f32 %v3451, %v3546
        %v3548 = vand.u32 %v3547, 4294901760
        %3549 = vmatmul.f32.gmra.mxu0 %v3548
        %v3550 = vpop.f32.mrf.mxu0
        %v3551 = vadd.f32 %v3527, %v3550
        %3552 = vdwg.mxu0
        %3553 = vmatpush.msra.mxu0 0.0
        %3554 = vmatpush.msra.mxu0 0.0
        %3555 = vmatpush.msra.mxu0 0.0
        %3556 = vmatpush.msra.mxu0 0.0
        %3557 = vmatpush.msra.mxu0 0.0
        %3558 = vmatpush.msra.mxu0 0.0
        %3559 = vmatpush.msra.mxu0 0.0
        %3560 = vmatpush.msra.mxu0 0.0
        %3561 = vmatpush.msra.mxu0 0.0
        %3562 = vmatpush.msra.mxu0 0.0
        %3563 = vmatpush.msra.mxu0 0.0
        %3564 = vmatpush.msra.mxu0 0.0
        %3565 = vmatpush.msra.mxu0 0.0
        %3566 = vmatpush.msra.mxu0 0.0
        %3567 = vmatpush.msra.mxu0 0.0
        %v3568 = vand.u32 %v2224, 4294901760
        %v3569 = vsub.f32 %v2224, %v3568
        %v3570 = vand.u32 %v3569, 4294901760
        %3571 = vmatpush.msra.mxu0 %v3570
        %v3572 = vand.u32 %v3451, 4294901760
        %3573 = vmatmul.f32.gmra.mxu0 %v3572
        %v3574 = vpop.f32.mrf.mxu0
        %v3575 = vadd.f32 %v3551, %v3574
        %3576 = vdwg.mxu0
        %3577 = vmatpush.msra.mxu0 0.0
        %3578 = vmatpush.msra.mxu0 0.0
        %3579 = vmatpush.msra.mxu0 0.0
        %3580 = vmatpush.msra.mxu0 0.0
        %3581 = vmatpush.msra.mxu0 0.0
        %3582 = vmatpush.msra.mxu0 0.0
        %3583 = vmatpush.msra.mxu0 0.0
        %3584 = vmatpush.msra.mxu0 0.0
        %3585 = vmatpush.msra.mxu0 0.0
        %3586 = vmatpush.msra.mxu0 0.0
        %3587 = vmatpush.msra.mxu0 0.0
        %3588 = vmatpush.msra.mxu0 0.0
        %3589 = vmatpush.msra.mxu0 0.0
        %3590 = vmatpush.msra.mxu0 0.0
        %3591 = vmatpush.msra.mxu0 0.0
        %v3592 = vand.u32 %v2224, 4294901760
        %3593 = vmatpush.msra.mxu0 %v3592
        %v3594 = vand.u32 %v3451, 4294901760
        %3595 = vmatmul.f32.gmra.mxu0 %v3594
        %v3596 = vpop.f32.mrf.mxu0
        %v3597 = vadd.f32 %v3575, %v3596
        %3598 = vdwg.mxu0
        %v3600 = vsel %vm2596, %v3285, 0
        %3602 = vmatpush.msra.mxu0 0.0
        %3603 = vmatpush.msra.mxu0 0.0
        %3604 = vmatpush.msra.mxu0 0.0
        %3605 = vmatpush.msra.mxu0 0.0
        %3606 = vmatpush.msra.mxu0 0.0
        %3607 = vmatpush.msra.mxu0 0.0
        %3608 = vmatpush.msra.mxu0 0.0
        %3609 = vmatpush.msra.mxu0 0.0
        %3610 = vmatpush.msra.mxu0 0.0
        %3611 = vmatpush.msra.mxu0 0.0
        %3612 = vmatpush.msra.mxu0 0.0
        %3613 = vmatpush.msra.mxu0 0.0
        %3614 = vmatpush.msra.mxu0 0.0
        %3615 = vmatpush.msra.mxu0 0.0
        %3616 = vmatpush.msra.mxu0 0.0
        %v3617 = vand.u32 %v2409, 4294901760
        %3618 = vmatpush.msra.mxu0 %v3617
        %v3619 = vand.u32 %v3600, 4294901760
        %v3620 = vsub.f32 %v3600, %v3619
        %v3621 = vand.u32 %v3620, 4294901760
        %v3622 = vsub.f32 %v3620, %v3621
        %v3623 = vand.u32 %v3622, 4294901760
        %3624 = vmatmul.f32.gmra.mxu0 %v3623
        %v3625 = vpop.f32.mrf.mxu0
        %v3626 = vadd.f32 0.0, %v3625
        %3627 = vdwg.mxu0
        %3628 = vmatpush.msra.mxu0 0.0
        %3629 = vmatpush.msra.mxu0 0.0
        %3630 = vmatpush.msra.mxu0 0.0
        %3631 = vmatpush.msra.mxu0 0.0
        %3632 = vmatpush.msra.mxu0 0.0
        %3633 = vmatpush.msra.mxu0 0.0
        %3634 = vmatpush.msra.mxu0 0.0
        %3635 = vmatpush.msra.mxu0 0.0
        %3636 = vmatpush.msra.mxu0 0.0
        %3637 = vmatpush.msra.mxu0 0.0
        %3638 = vmatpush.msra.mxu0 0.0
        %3639 = vmatpush.msra.mxu0 0.0
        %3640 = vmatpush.msra.mxu0 0.0
        %3641 = vmatpush.msra.mxu0 0.0
        %3642 = vmatpush.msra.mxu0 0.0
        %v3643 = vand.u32 %v2409, 4294901760
        %v3644 = vsub.f32 %v2409, %v3643
        %v3645 = vand.u32 %v3644, 4294901760
        %v3646 = vsub.f32 %v3644, %v3645
        %v3647 = vand.u32 %v3646, 4294901760
        %3648 = vmatpush.msra.mxu0 %v3647
        %v3649 = vand.u32 %v3600, 4294901760
        %3650 = vmatmul.f32.gmra.mxu0 %v3649
        %v3651 = vpop.f32.mrf.mxu0
        %v3652 = vadd.f32 %v3626, %v3651
        %3653 = vdwg.mxu0
        %3654 = vmatpush.msra.mxu0 0.0
        %3655 = vmatpush.msra.mxu0 0.0
        %3656 = vmatpush.msra.mxu0 0.0
        %3657 = vmatpush.msra.mxu0 0.0
        %3658 = vmatpush.msra.mxu0 0.0
        %3659 = vmatpush.msra.mxu0 0.0
        %3660 = vmatpush.msra.mxu0 0.0
        %3661 = vmatpush.msra.mxu0 0.0
        %3662 = vmatpush.msra.mxu0 0.0
        %3663 = vmatpush.msra.mxu0 0.0
        %3664 = vmatpush.msra.mxu0 0.0
        %3665 = vmatpush.msra.mxu0 0.0
        %3666 = vmatpush.msra.mxu0 0.0
        %3667 = vmatpush.msra.mxu0 0.0
        %3668 = vmatpush.msra.mxu0 0.0
        %v3669 = vand.u32 %v2409, 4294901760
        %v3670 = vsub.f32 %v2409, %v3669
        %3671 = vmatpush.msra.mxu0 %v3670
        %v3672 = vand.u32 %v3600, 4294901760
        %v3673 = vsub.f32 %v3600, %v3672
        %3674 = vmatmul.f32.gmra.mxu0 %v3673
        %v3675 = vpop.f32.mrf.mxu0
        %v3676 = vadd.f32 %v3652, %v3675
        %3677 = vdwg.mxu0
        %3678 = vmatpush.msra.mxu0 0.0
        %3679 = vmatpush.msra.mxu0 0.0
        %3680 = vmatpush.msra.mxu0 0.0
        %3681 = vmatpush.msra.mxu0 0.0
        %3682 = vmatpush.msra.mxu0 0.0
        %3683 = vmatpush.msra.mxu0 0.0
        %3684 = vmatpush.msra.mxu0 0.0
        %3685 = vmatpush.msra.mxu0 0.0
        %3686 = vmatpush.msra.mxu0 0.0
        %3687 = vmatpush.msra.mxu0 0.0
        %3688 = vmatpush.msra.mxu0 0.0
        %3689 = vmatpush.msra.mxu0 0.0
        %3690 = vmatpush.msra.mxu0 0.0
        %3691 = vmatpush.msra.mxu0 0.0
        %3692 = vmatpush.msra.mxu0 0.0
        %v3693 = vand.u32 %v2409, 4294901760
        %3694 = vmatpush.msra.mxu0 %v3693
        %v3695 = vand.u32 %v3600, 4294901760
        %v3696 = vsub.f32 %v3600, %v3695
        %v3697 = vand.u32 %v3696, 4294901760
        %3698 = vmatmul.f32.gmra.mxu0 %v3697
        %v3699 = vpop.f32.mrf.mxu0
        %v3700 = vadd.f32 %v3676, %v3699
        %3701 = vdwg.mxu0
        %3702 = vmatpush.msra.mxu0 0.0
        %3703 = vmatpush.msra.mxu0 0.0
        %3704 = vmatpush.msra.mxu0 0.0
        %3705 = vmatpush.msra.mxu0 0.0
        %3706 = vmatpush.msra.mxu0 0.0
        %3707 = vmatpush.msra.mxu0 0.0
        %3708 = vmatpush.msra.mxu0 0.0
        %3709 = vmatpush.msra.mxu0 0.0
        %3710 = vmatpush.msra.mxu0 0.0
        %3711 = vmatpush.msra.mxu0 0.0
        %3712 = vmatpush.msra.mxu0 0.0
        %3713 = vmatpush.msra.mxu0 0.0
        %3714 = vmatpush.msra.mxu0 0.0
        %3715 = vmatpush.msra.mxu0 0.0
        %3716 = vmatpush.msra.mxu0 0.0
        %v3717 = vand.u32 %v2409, 4294901760
        %v3718 = vsub.f32 %v2409, %v3717
        %v3719 = vand.u32 %v3718, 4294901760
        %3720 = vmatpush.msra.mxu0 %v3719
        %v3721 = vand.u32 %v3600, 4294901760
        %3722 = vmatmul.f32.gmra.mxu0 %v3721
        %v3723 = vpop.f32.mrf.mxu0
        %v3724 = vadd.f32 %v3700, %v3723
        %3725 = vdwg.mxu0
        %3726 = vmatpush.msra.mxu0 0.0
        %3727 = vmatpush.msra.mxu0 0.0
        %3728 = vmatpush.msra.mxu0 0.0
        %3729 = vmatpush.msra.mxu0 0.0
        %3730 = vmatpush.msra.mxu0 0.0
        %3731 = vmatpush.msra.mxu0 0.0
        %3732 = vmatpush.msra.mxu0 0.0
        %3733 = vmatpush.msra.mxu0 0.0
        %3734 = vmatpush.msra.mxu0 0.0
        %3735 = vmatpush.msra.mxu0 0.0
        %3736 = vmatpush.msra.mxu0 0.0
        %3737 = vmatpush.msra.mxu0 0.0
        %3738 = vmatpush.msra.mxu0 0.0
        %3739 = vmatpush.msra.mxu0 0.0
        %3740 = vmatpush.msra.mxu0 0.0
        %v3741 = vand.u32 %v2409, 4294901760
        %3742 = vmatpush.msra.mxu0 %v3741
        %v3743 = vand.u32 %v3600, 4294901760
        %3744 = vmatmul.f32.gmra.mxu0 %v3743
        %v3745 = vpop.f32.mrf.mxu0
        %v3746 = vadd.f32 %v3724, %v3745
        %3747 = vdwg.mxu0
        %v3749 = vsel %vm2596, %v3300, 0
        %3751 = vmatpush.msra.mxu0 0.0
        %3752 = vmatpush.msra.mxu0 0.0
        %3753 = vmatpush.msra.mxu0 0.0
        %3754 = vmatpush.msra.mxu0 0.0
        %3755 = vmatpush.msra.mxu0 0.0
        %3756 = vmatpush.msra.mxu0 0.0
        %3757 = vmatpush.msra.mxu0 0.0
        %3758 = vmatpush.msra.mxu0 0.0
        %3759 = vmatpush.msra.mxu0 0.0
        %3760 = vmatpush.msra.mxu0 0.0
        %3761 = vmatpush.msra.mxu0 0.0
        %3762 = vmatpush.msra.mxu0 0.0
        %3763 = vmatpush.msra.mxu0 0.0
        %3764 = vmatpush.msra.mxu0 0.0
        %3765 = vmatpush.msra.mxu0 0.0
        %v3766 = vand.u32 %v2594, 4294901760
        %3767 = vmatpush.msra.mxu0 %v3766
        %v3768 = vand.u32 %v3749, 4294901760
        %v3769 = vsub.f32 %v3749, %v3768
        %v3770 = vand.u32 %v3769, 4294901760
        %v3771 = vsub.f32 %v3769, %v3770
        %v3772 = vand.u32 %v3771, 4294901760
        %3773 = vmatmul.f32.gmra.mxu0 %v3772
        %v3774 = vpop.f32.mrf.mxu0
        %v3775 = vadd.f32 0.0, %v3774
        %3776 = vdwg.mxu0
        %3777 = vmatpush.msra.mxu0 0.0
        %3778 = vmatpush.msra.mxu0 0.0
        %3779 = vmatpush.msra.mxu0 0.0
        %3780 = vmatpush.msra.mxu0 0.0
        %3781 = vmatpush.msra.mxu0 0.0
        %3782 = vmatpush.msra.mxu0 0.0
        %3783 = vmatpush.msra.mxu0 0.0
        %3784 = vmatpush.msra.mxu0 0.0
        %3785 = vmatpush.msra.mxu0 0.0
        %3786 = vmatpush.msra.mxu0 0.0
        %3787 = vmatpush.msra.mxu0 0.0
        %3788 = vmatpush.msra.mxu0 0.0
        %3789 = vmatpush.msra.mxu0 0.0
        %3790 = vmatpush.msra.mxu0 0.0
        %3791 = vmatpush.msra.mxu0 0.0
        %v3792 = vand.u32 %v2594, 4294901760
        %v3793 = vsub.f32 %v2594, %v3792
        %v3794 = vand.u32 %v3793, 4294901760
        %v3795 = vsub.f32 %v3793, %v3794
        %v3796 = vand.u32 %v3795, 4294901760
        %3797 = vmatpush.msra.mxu0 %v3796
        %v3798 = vand.u32 %v3749, 4294901760
        %3799 = vmatmul.f32.gmra.mxu0 %v3798
        %v3800 = vpop.f32.mrf.mxu0
        %v3801 = vadd.f32 %v3775, %v3800
        %3802 = vdwg.mxu0
        %3803 = vmatpush.msra.mxu0 0.0
        %3804 = vmatpush.msra.mxu0 0.0
        %3805 = vmatpush.msra.mxu0 0.0
        %3806 = vmatpush.msra.mxu0 0.0
        %3807 = vmatpush.msra.mxu0 0.0
        %3808 = vmatpush.msra.mxu0 0.0
        %3809 = vmatpush.msra.mxu0 0.0
        %3810 = vmatpush.msra.mxu0 0.0
        %3811 = vmatpush.msra.mxu0 0.0
        %3812 = vmatpush.msra.mxu0 0.0
        %3813 = vmatpush.msra.mxu0 0.0
        %3814 = vmatpush.msra.mxu0 0.0
        %3815 = vmatpush.msra.mxu0 0.0
        %3816 = vmatpush.msra.mxu0 0.0
        %3817 = vmatpush.msra.mxu0 0.0
        %v3818 = vand.u32 %v2594, 4294901760
        %v3819 = vsub.f32 %v2594, %v3818
        %3820 = vmatpush.msra.mxu0 %v3819
        %v3821 = vand.u32 %v3749, 4294901760
        %v3822 = vsub.f32 %v3749, %v3821
        %3823 = vmatmul.f32.gmra.mxu0 %v3822
        %v3824 = vpop.f32.mrf.mxu0
        %v3825 = vadd.f32 %v3801, %v3824
        %3826 = vdwg.mxu0
        %3827 = vmatpush.msra.mxu0 0.0
        %3828 = vmatpush.msra.mxu0 0.0
        %3829 = vmatpush.msra.mxu0 0.0
        %3830 = vmatpush.msra.mxu0 0.0
        %3831 = vmatpush.msra.mxu0 0.0
        %3832 = vmatpush.msra.mxu0 0.0
        %3833 = vmatpush.msra.mxu0 0.0
        %3834 = vmatpush.msra.mxu0 0.0
        %3835 = vmatpush.msra.mxu0 0.0
        %3836 = vmatpush.msra.mxu0 0.0
        %3837 = vmatpush.msra.mxu0 0.0
        %3838 = vmatpush.msra.mxu0 0.0
        %3839 = vmatpush.msra.mxu0 0.0
        %3840 = vmatpush.msra.mxu0 0.0
        %3841 = vmatpush.msra.mxu0 0.0
        %v3842 = vand.u32 %v2594, 4294901760
        %3843 = vmatpush.msra.mxu0 %v3842
        %v3844 = vand.u32 %v3749, 4294901760
        %v3845 = vsub.f32 %v3749, %v3844
        %v3846 = vand.u32 %v3845, 4294901760
        %3847 = vmatmul.f32.gmra.mxu0 %v3846
        %v3848 = vpop.f32.mrf.mxu0
        %v3849 = vadd.f32 %v3825, %v3848
        %3850 = vdwg.mxu0
        %3851 = vmatpush.msra.mxu0 0.0
        %3852 = vmatpush.msra.mxu0 0.0
        %3853 = vmatpush.msra.mxu0 0.0
        %3854 = vmatpush.msra.mxu0 0.0
        %3855 = vmatpush.msra.mxu0 0.0
        %3856 = vmatpush.msra.mxu0 0.0
        %3857 = vmatpush.msra.mxu0 0.0
        %3858 = vmatpush.msra.mxu0 0.0
        %3859 = vmatpush.msra.mxu0 0.0
        %3860 = vmatpush.msra.mxu0 0.0
        %3861 = vmatpush.msra.mxu0 0.0
        %3862 = vmatpush.msra.mxu0 0.0
        %3863 = vmatpush.msra.mxu0 0.0
        %3864 = vmatpush.msra.mxu0 0.0
        %3865 = vmatpush.msra.mxu0 0.0
        %v3866 = vand.u32 %v2594, 4294901760
        %v3867 = vsub.f32 %v2594, %v3866
        %v3868 = vand.u32 %v3867, 4294901760
        %3869 = vmatpush.msra.mxu0 %v3868
        %v3870 = vand.u32 %v3749, 4294901760
        %3871 = vmatmul.f32.gmra.mxu0 %v3870
        %v3872 = vpop.f32.mrf.mxu0
        %v3873 = vadd.f32 %v3849, %v3872
        %3874 = vdwg.mxu0
        %3875 = vmatpush.msra.mxu0 0.0
        %3876 = vmatpush.msra.mxu0 0.0
        %3877 = vmatpush.msra.mxu0 0.0
        %3878 = vmatpush.msra.mxu0 0.0
        %3879 = vmatpush.msra.mxu0 0.0
        %3880 = vmatpush.msra.mxu0 0.0
        %3881 = vmatpush.msra.mxu0 0.0
        %3882 = vmatpush.msra.mxu0 0.0
        %3883 = vmatpush.msra.mxu0 0.0
        %3884 = vmatpush.msra.mxu0 0.0
        %3885 = vmatpush.msra.mxu0 0.0
        %3886 = vmatpush.msra.mxu0 0.0
        %3887 = vmatpush.msra.mxu0 0.0
        %3888 = vmatpush.msra.mxu0 0.0
        %3889 = vmatpush.msra.mxu0 0.0
        %v3890 = vand.u32 %v2594, 4294901760
        %3891 = vmatpush.msra.mxu0 %v3890
        %v3892 = vand.u32 %v3749, 4294901760
        %3893 = vmatmul.f32.gmra.mxu0 %v3892
        %v3894 = vpop.f32.mrf.mxu0
        %v3895 = vadd.f32 %v3873, %v3894
        %3896 = vdwg.mxu0
        %3898 = vrot.lane.b32.xlu0 %v3597, 8
        %v3899 = vpop.permute.xlu0 %3898
        %3902 = vrot.lane.b32.xlu0 %v3746, 16
        %v3903 = vpop.permute.xlu0 %3902
        %3906 = vrot.lane.b32.xlu0 %v3895, 24
        %v3907 = vpop.permute.xlu0 %3906
        %v3909 = vsel %vm2596, %v3448, %v3899
        %vm3910 = vcmask 130048
        %v3911 = vsel %vm3910, %v3909, %v3903
        %vm3912 = vcmask 195584
        %v3913 = vsel %vm3912, %v3911, %v3907
        %v3914 = vld [vmem:[%s3] sm:$0xff]
        %v3915 = vld [vmem:[%s3 + $0x8] sm:$0xff]
        %v3916 = vld [vmem:[%s3 + $0x10] sm:$0xff]
        %v3917 = vld [vmem:[%s3 + $0x18] sm:$0xff]
        %v3918 = vperm.slane %v275, 0
        %v3920 = vsel %vm372, %v3913, 0
        %3922 = vmatpush.msra.mxu0 0.0
        %3923 = vmatpush.msra.mxu0 0.0
        %3924 = vmatpush.msra.mxu0 0.0
        %3925 = vmatpush.msra.mxu0 0.0
        %3926 = vmatpush.msra.mxu0 0.0
        %3927 = vmatpush.msra.mxu0 0.0
        %3928 = vmatpush.msra.mxu0 0.0
        %3929 = vmatpush.msra.mxu0 0.0
        %3930 = vmatpush.msra.mxu0 0.0
        %3931 = vmatpush.msra.mxu0 0.0
        %3932 = vmatpush.msra.mxu0 0.0
        %3933 = vmatpush.msra.mxu0 0.0
        %v3934 = vand.u32 %v3917, 4294901760
        %3935 = vmatpush.msra.mxu0 %v3934
        %v3936 = vand.u32 %v3916, 4294901760
        %3937 = vmatpush.msra.mxu0 %v3936
        %v3938 = vand.u32 %v3915, 4294901760
        %3939 = vmatpush.msra.mxu0 %v3938
        %v3940 = vand.u32 %v3914, 4294901760
        %3941 = vmatpush.msra.mxu0 %v3940
        %v3942 = vand.u32 %v3920, 4294901760
        %v3943 = vsub.f32 %v3920, %v3942
        %v3944 = vand.u32 %v3943, 4294901760
        %v3945 = vsub.f32 %v3943, %v3944
        %v3946 = vand.u32 %v3945, 4294901760
        %3947 = vmatmul.f32.gmra.mxu0 %v3946
        %v3948 = vpop.f32.mrf.mxu0
        %v3949 = vadd.f32 %v3918, %v3948
        %3950 = vdwg.mxu0
        %3951 = vmatpush.msra.mxu0 0.0
        %3952 = vmatpush.msra.mxu0 0.0
        %3953 = vmatpush.msra.mxu0 0.0
        %3954 = vmatpush.msra.mxu0 0.0
        %3955 = vmatpush.msra.mxu0 0.0
        %3956 = vmatpush.msra.mxu0 0.0
        %3957 = vmatpush.msra.mxu0 0.0
        %3958 = vmatpush.msra.mxu0 0.0
        %3959 = vmatpush.msra.mxu0 0.0
        %3960 = vmatpush.msra.mxu0 0.0
        %3961 = vmatpush.msra.mxu0 0.0
        %3962 = vmatpush.msra.mxu0 0.0
        %v3963 = vand.u32 %v3917, 4294901760
        %v3964 = vsub.f32 %v3917, %v3963
        %v3965 = vand.u32 %v3964, 4294901760
        %v3966 = vsub.f32 %v3964, %v3965
        %v3967 = vand.u32 %v3966, 4294901760
        %3968 = vmatpush.msra.mxu0 %v3967
        %v3969 = vand.u32 %v3916, 4294901760
        %v3970 = vsub.f32 %v3916, %v3969
        %v3971 = vand.u32 %v3970, 4294901760
        %v3972 = vsub.f32 %v3970, %v3971
        %v3973 = vand.u32 %v3972, 4294901760
        %3974 = vmatpush.msra.mxu0 %v3973
        %v3975 = vand.u32 %v3915, 4294901760
        %v3976 = vsub.f32 %v3915, %v3975
        %v3977 = vand.u32 %v3976, 4294901760
        %v3978 = vsub.f32 %v3976, %v3977
        %v3979 = vand.u32 %v3978, 4294901760
        %3980 = vmatpush.msra.mxu0 %v3979
        %v3981 = vand.u32 %v3914, 4294901760
        %v3982 = vsub.f32 %v3914, %v3981
        %v3983 = vand.u32 %v3982, 4294901760
        %v3984 = vsub.f32 %v3982, %v3983
        %v3985 = vand.u32 %v3984, 4294901760
        %3986 = vmatpush.msra.mxu0 %v3985
        %v3987 = vand.u32 %v3920, 4294901760
        %3988 = vmatmul.f32.gmra.mxu0 %v3987
        %v3989 = vpop.f32.mrf.mxu0
        %v3990 = vadd.f32 %v3949, %v3989
        %3991 = vdwg.mxu0
        %3992 = vmatpush.msra.mxu0 0.0
        %3993 = vmatpush.msra.mxu0 0.0
        %3994 = vmatpush.msra.mxu0 0.0
        %3995 = vmatpush.msra.mxu0 0.0
        %3996 = vmatpush.msra.mxu0 0.0
        %3997 = vmatpush.msra.mxu0 0.0
        %3998 = vmatpush.msra.mxu0 0.0
        %3999 = vmatpush.msra.mxu0 0.0
        %4000 = vmatpush.msra.mxu0 0.0
        %4001 = vmatpush.msra.mxu0 0.0
        %4002 = vmatpush.msra.mxu0 0.0
        %4003 = vmatpush.msra.mxu0 0.0
        %v4004 = vand.u32 %v3917, 4294901760
        %v4005 = vsub.f32 %v3917, %v4004
        %4006 = vmatpush.msra.mxu0 %v4005
        %v4007 = vand.u32 %v3916, 4294901760
        %v4008 = vsub.f32 %v3916, %v4007
        %4009 = vmatpush.msra.mxu0 %v4008
        %v4010 = vand.u32 %v3915, 4294901760
        %v4011 = vsub.f32 %v3915, %v4010
        %4012 = vmatpush.msra.mxu0 %v4011
        %v4013 = vand.u32 %v3914, 4294901760
        %v4014 = vsub.f32 %v3914, %v4013
        %4015 = vmatpush.msra.mxu0 %v4014
        %v4016 = vand.u32 %v3920, 4294901760
        %v4017 = vsub.f32 %v3920, %v4016
        %4018 = vmatmul.f32.gmra.mxu0 %v4017
        %v4019 = vpop.f32.mrf.mxu0
        %v4020 = vadd.f32 %v3990, %v4019
        %4021 = vdwg.mxu0
        %4022 = vmatpush.msra.mxu0 0.0
        %4023 = vmatpush.msra.mxu0 0.0
        %4024 = vmatpush.msra.mxu0 0.0
        %4025 = vmatpush.msra.mxu0 0.0
        %4026 = vmatpush.msra.mxu0 0.0
        %4027 = vmatpush.msra.mxu0 0.0
        %4028 = vmatpush.msra.mxu0 0.0
        %4029 = vmatpush.msra.mxu0 0.0
        %4030 = vmatpush.msra.mxu0 0.0
        %4031 = vmatpush.msra.mxu0 0.0
        %4032 = vmatpush.msra.mxu0 0.0
        %4033 = vmatpush.msra.mxu0 0.0
        %v4034 = vand.u32 %v3917, 4294901760
        %4035 = vmatpush.msra.mxu0 %v4034
        %v4036 = vand.u32 %v3916, 4294901760
        %4037 = vmatpush.msra.mxu0 %v4036
        %v4038 = vand.u32 %v3915, 4294901760
        %4039 = vmatpush.msra.mxu0 %v4038
        %v4040 = vand.u32 %v3914, 4294901760
        %4041 = vmatpush.msra.mxu0 %v4040
        %v4042 = vand.u32 %v3920, 4294901760
        %v4043 = vsub.f32 %v3920, %v4042
        %v4044 = vand.u32 %v4043, 4294901760
        %4045 = vmatmul.f32.gmra.mxu0 %v4044
        %v4046 = vpop.f32.mrf.mxu0
        %v4047 = vadd.f32 %v4020, %v4046
        %4048 = vdwg.mxu0
        %4049 = vmatpush.msra.mxu0 0.0
        %4050 = vmatpush.msra.mxu0 0.0
        %4051 = vmatpush.msra.mxu0 0.0
        %4052 = vmatpush.msra.mxu0 0.0
        %4053 = vmatpush.msra.mxu0 0.0
        %4054 = vmatpush.msra.mxu0 0.0
        %4055 = vmatpush.msra.mxu0 0.0
        %4056 = vmatpush.msra.mxu0 0.0
        %4057 = vmatpush.msra.mxu0 0.0
        %4058 = vmatpush.msra.mxu0 0.0
        %4059 = vmatpush.msra.mxu0 0.0
        %4060 = vmatpush.msra.mxu0 0.0
        %v4061 = vand.u32 %v3917, 4294901760
        %v4062 = vsub.f32 %v3917, %v4061
        %v4063 = vand.u32 %v4062, 4294901760
        %4064 = vmatpush.msra.mxu0 %v4063
        %v4065 = vand.u32 %v3916, 4294901760
        %v4066 = vsub.f32 %v3916, %v4065
        %v4067 = vand.u32 %v4066, 4294901760
        %4068 = vmatpush.msra.mxu0 %v4067
        %v4069 = vand.u32 %v3915, 4294901760
        %v4070 = vsub.f32 %v3915, %v4069
        %v4071 = vand.u32 %v4070, 4294901760
        %4072 = vmatpush.msra.mxu0 %v4071
        %v4073 = vand.u32 %v3914, 4294901760
        %v4074 = vsub.f32 %v3914, %v4073
        %v4075 = vand.u32 %v4074, 4294901760
        %4076 = vmatpush.msra.mxu0 %v4075
        %v4077 = vand.u32 %v3920, 4294901760
        %4078 = vmatmul.f32.gmra.mxu0 %v4077
        %v4079 = vpop.f32.mrf.mxu0
        %v4080 = vadd.f32 %v4047, %v4079
        %4081 = vdwg.mxu0
        %4082 = vmatpush.msra.mxu0 0.0
        %4083 = vmatpush.msra.mxu0 0.0
        %4084 = vmatpush.msra.mxu0 0.0
        %4085 = vmatpush.msra.mxu0 0.0
        %4086 = vmatpush.msra.mxu0 0.0
        %4087 = vmatpush.msra.mxu0 0.0
        %4088 = vmatpush.msra.mxu0 0.0
        %4089 = vmatpush.msra.mxu0 0.0
        %4090 = vmatpush.msra.mxu0 0.0
        %4091 = vmatpush.msra.mxu0 0.0
        %4092 = vmatpush.msra.mxu0 0.0
        %4093 = vmatpush.msra.mxu0 0.0
        %v4094 = vand.u32 %v3917, 4294901760
        %4095 = vmatpush.msra.mxu0 %v4094
        %v4096 = vand.u32 %v3916, 4294901760
        %4097 = vmatpush.msra.mxu0 %v4096
        %v4098 = vand.u32 %v3915, 4294901760
        %4099 = vmatpush.msra.mxu0 %v4098
        %v4100 = vand.u32 %v3914, 4294901760
        %4101 = vmatpush.msra.mxu0 %v4100
        %v4102 = vand.u32 %v3920, 4294901760
        %4103 = vmatmul.f32.gmra.mxu0 %v4102
        %v4104 = vpop.f32.mrf.mxu0
        %v4105 = vadd.f32 %v4080, %v4104
        %4106 = vdwg.mxu0
        %v4107 = vadd.f32 %v274, %v4105
        %v4108 = vsel %vm372, %v4107, 0.0
        %4109 = vadd.xlane.f32.xlu0 %v4108
        %v4110 = vpop.xlane.xlu0 %4109
        %v4111 = vrcp.pop 32.0
        %v4112 = vmul.f32 32.0, %v4111
        %v4113 = vsub.f32 1.0, %v4112
        %v4114 = vmul.f32 %v4111, %v4113
        %v4115 = vadd.f32 %v4111, %v4114
        %vm4116 = vweird.f32 %v4111
        %v4117 = vsel %vm4116, %v4111, %v4115
        %v4118 = vmul.f32 %v4110, %v4117
        %v4119 = vsub.f32 %v4107, %v4118
        %v4120 = vmul.f32 %v4119, %v4119
        %v4121 = vsel %vm372, %v4120, 0.0
        %4122 = vadd.xlane.f32.xlu0 %v4121
        %v4123 = vpop.xlane.xlu0 %4122
        %v4124 = vmul.f32 %v4123, %v4117
        %v4125 = vadd.f32 %v4124, 1e-05
        %v4126 = vrsqrt.pop %v4125
        %v4127 = vmul.f32 %v4126, %v4125
        %v4128 = vmul.f32 %v4127, %v4126
        %v4129 = vmul.f32 0.5, %v4128
        %v4130 = vsub.f32 1.5, %v4129
        %v4131 = vmul.f32 %v4126, %v4130
        %vm4132 = vweird.f32 %v4125
        %vm4133 = vweird.f32 %v4126
        %vm4134 = vmor %vm4132, %vm4133
        %v4135 = vsel %vm4134, %v4126, %v4131
        %v4136 = vmul.f32 %v4119, %v4135
        %v4137 = vperm.slane %v275, 3
        %v4138 = vmul.f32 %v4136, %v4137
        %v4139 = vperm.slane %v275, 4
        %v4140 = vadd.f32 %v4138, %v4139
        %v4141 = vld [vmem:[%s4] sm:$0xff]
        %v4142 = vld [vmem:[%s4 + $0x8] sm:$0xff]
        %v4143 = vld [vmem:[%s4 + $0x10] sm:$0xff]
        %v4144 = vld [vmem:[%s4 + $0x18] sm:$0xff]
        %v4145 = vperm.slane %v275, 1
        %v4147 = vsel %vm372, %v4140, 0
        %4149 = vmatpush.msra.mxu0 0.0
        %4150 = vmatpush.msra.mxu0 0.0
        %4151 = vmatpush.msra.mxu0 0.0
        %4152 = vmatpush.msra.mxu0 0.0
        %4153 = vmatpush.msra.mxu0 0.0
        %4154 = vmatpush.msra.mxu0 0.0
        %4155 = vmatpush.msra.mxu0 0.0
        %4156 = vmatpush.msra.mxu0 0.0
        %4157 = vmatpush.msra.mxu0 0.0
        %4158 = vmatpush.msra.mxu0 0.0
        %4159 = vmatpush.msra.mxu0 0.0
        %4160 = vmatpush.msra.mxu0 0.0
        %v4161 = vand.u32 %v4144, 4294901760
        %4162 = vmatpush.msra.mxu0 %v4161
        %v4163 = vand.u32 %v4143, 4294901760
        %4164 = vmatpush.msra.mxu0 %v4163
        %v4165 = vand.u32 %v4142, 4294901760
        %4166 = vmatpush.msra.mxu0 %v4165
        %v4167 = vand.u32 %v4141, 4294901760
        %4168 = vmatpush.msra.mxu0 %v4167
        %v4169 = vand.u32 %v4147, 4294901760
        %v4170 = vsub.f32 %v4147, %v4169
        %v4171 = vand.u32 %v4170, 4294901760
        %v4172 = vsub.f32 %v4170, %v4171
        %v4173 = vand.u32 %v4172, 4294901760
        %4174 = vmatmul.f32.gmra.mxu0 %v4173
        %v4175 = vpop.f32.mrf.mxu0
        %v4176 = vadd.f32 %v4145, %v4175
        %4177 = vdwg.mxu0
        %4178 = vmatpush.msra.mxu0 0.0
        %4179 = vmatpush.msra.mxu0 0.0
        %4180 = vmatpush.msra.mxu0 0.0
        %4181 = vmatpush.msra.mxu0 0.0
        %4182 = vmatpush.msra.mxu0 0.0
        %4183 = vmatpush.msra.mxu0 0.0
        %4184 = vmatpush.msra.mxu0 0.0
        %4185 = vmatpush.msra.mxu0 0.0
        %4186 = vmatpush.msra.mxu0 0.0
        %4187 = vmatpush.msra.mxu0 0.0
        %4188 = vmatpush.msra.mxu0 0.0
        %4189 = vmatpush.msra.mxu0 0.0
        %v4190 = vand.u32 %v4144, 4294901760
        %v4191 = vsub.f32 %v4144, %v4190
        %v4192 = vand.u32 %v4191, 4294901760
        %v4193 = vsub.f32 %v4191, %v4192
        %v4194 = vand.u32 %v4193, 4294901760
        %4195 = vmatpush.msra.mxu0 %v4194
        %v4196 = vand.u32 %v4143, 4294901760
        %v4197 = vsub.f32 %v4143, %v4196
        %v4198 = vand.u32 %v4197, 4294901760
        %v4199 = vsub.f32 %v4197, %v4198
        %v4200 = vand.u32 %v4199, 4294901760
        %4201 = vmatpush.msra.mxu0 %v4200
        %v4202 = vand.u32 %v4142, 4294901760
        %v4203 = vsub.f32 %v4142, %v4202
        %v4204 = vand.u32 %v4203, 4294901760
        %v4205 = vsub.f32 %v4203, %v4204
        %v4206 = vand.u32 %v4205, 4294901760
        %4207 = vmatpush.msra.mxu0 %v4206
        %v4208 = vand.u32 %v4141, 4294901760
        %v4209 = vsub.f32 %v4141, %v4208
        %v4210 = vand.u32 %v4209, 4294901760
        %v4211 = vsub.f32 %v4209, %v4210
        %v4212 = vand.u32 %v4211, 4294901760
        %4213 = vmatpush.msra.mxu0 %v4212
        %v4214 = vand.u32 %v4147, 4294901760
        %4215 = vmatmul.f32.gmra.mxu0 %v4214
        %v4216 = vpop.f32.mrf.mxu0
        %v4217 = vadd.f32 %v4176, %v4216
        %4218 = vdwg.mxu0
        %4219 = vmatpush.msra.mxu0 0.0
        %4220 = vmatpush.msra.mxu0 0.0
        %4221 = vmatpush.msra.mxu0 0.0
        %4222 = vmatpush.msra.mxu0 0.0
        %4223 = vmatpush.msra.mxu0 0.0
        %4224 = vmatpush.msra.mxu0 0.0
        %4225 = vmatpush.msra.mxu0 0.0
        %4226 = vmatpush.msra.mxu0 0.0
        %4227 = vmatpush.msra.mxu0 0.0
        %4228 = vmatpush.msra.mxu0 0.0
        %4229 = vmatpush.msra.mxu0 0.0
        %4230 = vmatpush.msra.mxu0 0.0
        %v4231 = vand.u32 %v4144, 4294901760
        %v4232 = vsub.f32 %v4144, %v4231
        %4233 = vmatpush.msra.mxu0 %v4232
        %v4234 = vand.u32 %v4143, 4294901760
        %v4235 = vsub.f32 %v4143, %v4234
        %4236 = vmatpush.msra.mxu0 %v4235
        %v4237 = vand.u32 %v4142, 4294901760
        %v4238 = vsub.f32 %v4142, %v4237
        %4239 = vmatpush.msra.mxu0 %v4238
        %v4240 = vand.u32 %v4141, 4294901760
        %v4241 = vsub.f32 %v4141, %v4240
        %4242 = vmatpush.msra.mxu0 %v4241
        %v4243 = vand.u32 %v4147, 4294901760
        %v4244 = vsub.f32 %v4147, %v4243
        %4245 = vmatmul.f32.gmra.mxu0 %v4244
        %v4246 = vpop.f32.mrf.mxu0
        %v4247 = vadd.f32 %v4217, %v4246
        %4248 = vdwg.mxu0
        %4249 = vmatpush.msra.mxu0 0.0
        %4250 = vmatpush.msra.mxu0 0.0
        %4251 = vmatpush.msra.mxu0 0.0
        %4252 = vmatpush.msra.mxu0 0.0
        %4253 = vmatpush.msra.mxu0 0.0
        %4254 = vmatpush.msra.mxu0 0.0
        %4255 = vmatpush.msra.mxu0 0.0
        %4256 = vmatpush.msra.mxu0 0.0
        %4257 = vmatpush.msra.mxu0 0.0
        %4258 = vmatpush.msra.mxu0 0.0
        %4259 = vmatpush.msra.mxu0 0.0
        %4260 = vmatpush.msra.mxu0 0.0
        %v4261 = vand.u32 %v4144, 4294901760
        %4262 = vmatpush.msra.mxu0 %v4261
        %v4263 = vand.u32 %v4143, 4294901760
        %4264 = vmatpush.msra.mxu0 %v4263
        %v4265 = vand.u32 %v4142, 4294901760
        %4266 = vmatpush.msra.mxu0 %v4265
        %v4267 = vand.u32 %v4141, 4294901760
        %4268 = vmatpush.msra.mxu0 %v4267
        %v4269 = vand.u32 %v4147, 4294901760
        %v4270 = vsub.f32 %v4147, %v4269
        %v4271 = vand.u32 %v4270, 4294901760
        %4272 = vmatmul.f32.gmra.mxu0 %v4271
        %v4273 = vpop.f32.mrf.mxu0
        %v4274 = vadd.f32 %v4247, %v4273
        %4275 = vdwg.mxu0
        %4276 = vmatpush.msra.mxu0 0.0
        %4277 = vmatpush.msra.mxu0 0.0
        %4278 = vmatpush.msra.mxu0 0.0
        %4279 = vmatpush.msra.mxu0 0.0
        %4280 = vmatpush.msra.mxu0 0.0
        %4281 = vmatpush.msra.mxu0 0.0
        %4282 = vmatpush.msra.mxu0 0.0
        %4283 = vmatpush.msra.mxu0 0.0
        %4284 = vmatpush.msra.mxu0 0.0
        %4285 = vmatpush.msra.mxu0 0.0
        %4286 = vmatpush.msra.mxu0 0.0
        %4287 = vmatpush.msra.mxu0 0.0
        %v4288 = vand.u32 %v4144, 4294901760
        %v4289 = vsub.f32 %v4144, %v4288
        %v4290 = vand.u32 %v4289, 4294901760
        %4291 = vmatpush.msra.mxu0 %v4290
        %v4292 = vand.u32 %v4143, 4294901760
        %v4293 = vsub.f32 %v4143, %v4292
        %v4294 = vand.u32 %v4293, 4294901760
        %4295 = vmatpush.msra.mxu0 %v4294
        %v4296 = vand.u32 %v4142, 4294901760
        %v4297 = vsub.f32 %v4142, %v4296
        %v4298 = vand.u32 %v4297, 4294901760
        %4299 = vmatpush.msra.mxu0 %v4298
        %v4300 = vand.u32 %v4141, 4294901760
        %v4301 = vsub.f32 %v4141, %v4300
        %v4302 = vand.u32 %v4301, 4294901760
        %4303 = vmatpush.msra.mxu0 %v4302
        %v4304 = vand.u32 %v4147, 4294901760
        %4305 = vmatmul.f32.gmra.mxu0 %v4304
        %v4306 = vpop.f32.mrf.mxu0
        %v4307 = vadd.f32 %v4274, %v4306
        %4308 = vdwg.mxu0
        %4309 = vmatpush.msra.mxu0 0.0
        %4310 = vmatpush.msra.mxu0 0.0
        %4311 = vmatpush.msra.mxu0 0.0
        %4312 = vmatpush.msra.mxu0 0.0
        %4313 = vmatpush.msra.mxu0 0.0
        %4314 = vmatpush.msra.mxu0 0.0
        %4315 = vmatpush.msra.mxu0 0.0
        %4316 = vmatpush.msra.mxu0 0.0
        %4317 = vmatpush.msra.mxu0 0.0
        %4318 = vmatpush.msra.mxu0 0.0
        %4319 = vmatpush.msra.mxu0 0.0
        %4320 = vmatpush.msra.mxu0 0.0
        %v4321 = vand.u32 %v4144, 4294901760
        %4322 = vmatpush.msra.mxu0 %v4321
        %v4323 = vand.u32 %v4143, 4294901760
        %4324 = vmatpush.msra.mxu0 %v4323
        %v4325 = vand.u32 %v4142, 4294901760
        %4326 = vmatpush.msra.mxu0 %v4325
        %v4327 = vand.u32 %v4141, 4294901760
        %4328 = vmatpush.msra.mxu0 %v4327
        %v4329 = vand.u32 %v4147, 4294901760
        %4330 = vmatmul.f32.gmra.mxu0 %v4329
        %v4331 = vpop.f32.mrf.mxu0
        %v4332 = vadd.f32 %v4307, %v4331
        %4333 = vdwg.mxu0
        %v4334 = vmax.f32 %v4332, 0.0
        %v4335 = vld [vmem:[%s5] sm:$0xff]
        %v4336 = vld [vmem:[%s5 + $0x8] sm:$0xff]
        %v4337 = vld [vmem:[%s5 + $0x10] sm:$0xff]
        %v4338 = vld [vmem:[%s5 + $0x18] sm:$0xff]
        %v4339 = vld [vmem:[%s5 + $0x20] sm:$0xff]
        %v4340 = vld [vmem:[%s5 + $0x28] sm:$0xff]
        %v4341 = vld [vmem:[%s5 + $0x30] sm:$0xff]
        %v4342 = vld [vmem:[%s5 + $0x38] sm:$0xff]
        %v4343 = vperm.slane %v275, 2
        %vm4344 = vcmask 523264
        %v4346 = vsel %vm4344, %v4334, 0
        %4348 = vmatpush.msra.mxu0 0.0
        %4349 = vmatpush.msra.mxu0 0.0
        %4350 = vmatpush.msra.mxu0 0.0
        %4351 = vmatpush.msra.mxu0 0.0
        %4352 = vmatpush.msra.mxu0 0.0
        %4353 = vmatpush.msra.mxu0 0.0
        %4354 = vmatpush.msra.mxu0 0.0
        %4355 = vmatpush.msra.mxu0 0.0
        %v4356 = vand.u32 %v4342, 4294901760
        %4357 = vmatpush.msra.mxu0 %v4356
        %v4358 = vand.u32 %v4341, 4294901760
        %4359 = vmatpush.msra.mxu0 %v4358
        %v4360 = vand.u32 %v4340, 4294901760
        %4361 = vmatpush.msra.mxu0 %v4360
        %v4362 = vand.u32 %v4339, 4294901760
        %4363 = vmatpush.msra.mxu0 %v4362
        %v4364 = vand.u32 %v4338, 4294901760
        %4365 = vmatpush.msra.mxu0 %v4364
        %v4366 = vand.u32 %v4337, 4294901760
        %4367 = vmatpush.msra.mxu0 %v4366
        %v4368 = vand.u32 %v4336, 4294901760
        %4369 = vmatpush.msra.mxu0 %v4368
        %v4370 = vand.u32 %v4335, 4294901760
        %4371 = vmatpush.msra.mxu0 %v4370
        %v4372 = vand.u32 %v4346, 4294901760
        %v4373 = vsub.f32 %v4346, %v4372
        %v4374 = vand.u32 %v4373, 4294901760
        %v4375 = vsub.f32 %v4373, %v4374
        %v4376 = vand.u32 %v4375, 4294901760
        %4377 = vmatmul.f32.gmra.mxu0 %v4376
        %v4378 = vpop.f32.mrf.mxu0
        %v4379 = vadd.f32 %v4343, %v4378
        %4380 = vdwg.mxu0
        %4381 = vmatpush.msra.mxu0 0.0
        %4382 = vmatpush.msra.mxu0 0.0
        %4383 = vmatpush.msra.mxu0 0.0
        %4384 = vmatpush.msra.mxu0 0.0
        %4385 = vmatpush.msra.mxu0 0.0
        %4386 = vmatpush.msra.mxu0 0.0
        %4387 = vmatpush.msra.mxu0 0.0
        %4388 = vmatpush.msra.mxu0 0.0
        %v4389 = vand.u32 %v4342, 4294901760
        %v4390 = vsub.f32 %v4342, %v4389
        %v4391 = vand.u32 %v4390, 4294901760
        %v4392 = vsub.f32 %v4390, %v4391
        %v4393 = vand.u32 %v4392, 4294901760
        %4394 = vmatpush.msra.mxu0 %v4393
        %v4395 = vand.u32 %v4341, 4294901760
        %v4396 = vsub.f32 %v4341, %v4395
        %v4397 = vand.u32 %v4396, 4294901760
        %v4398 = vsub.f32 %v4396, %v4397
        %v4399 = vand.u32 %v4398, 4294901760
        %4400 = vmatpush.msra.mxu0 %v4399
        %v4401 = vand.u32 %v4340, 4294901760
        %v4402 = vsub.f32 %v4340, %v4401
        %v4403 = vand.u32 %v4402, 4294901760
        %v4404 = vsub.f32 %v4402, %v4403
        %v4405 = vand.u32 %v4404, 4294901760
        %4406 = vmatpush.msra.mxu0 %v4405
        %v4407 = vand.u32 %v4339, 4294901760
        %v4408 = vsub.f32 %v4339, %v4407
        %v4409 = vand.u32 %v4408, 4294901760
        %v4410 = vsub.f32 %v4408, %v4409
        %v4411 = vand.u32 %v4410, 4294901760
        %4412 = vmatpush.msra.mxu0 %v4411
        %v4413 = vand.u32 %v4338, 4294901760
        %v4414 = vsub.f32 %v4338, %v4413
        %v4415 = vand.u32 %v4414, 4294901760
        %v4416 = vsub.f32 %v4414, %v4415
        %v4417 = vand.u32 %v4416, 4294901760
        %4418 = vmatpush.msra.mxu0 %v4417
        %v4419 = vand.u32 %v4337, 4294901760
        %v4420 = vsub.f32 %v4337, %v4419
        %v4421 = vand.u32 %v4420, 4294901760
        %v4422 = vsub.f32 %v4420, %v4421
        %v4423 = vand.u32 %v4422, 4294901760
        %4424 = vmatpush.msra.mxu0 %v4423
        %v4425 = vand.u32 %v4336, 4294901760
        %v4426 = vsub.f32 %v4336, %v4425
        %v4427 = vand.u32 %v4426, 4294901760
        %v4428 = vsub.f32 %v4426, %v4427
        %v4429 = vand.u32 %v4428, 4294901760
        %4430 = vmatpush.msra.mxu0 %v4429
        %v4431 = vand.u32 %v4335, 4294901760
        %v4432 = vsub.f32 %v4335, %v4431
        %v4433 = vand.u32 %v4432, 4294901760
        %v4434 = vsub.f32 %v4432, %v4433
        %v4435 = vand.u32 %v4434, 4294901760
        %4436 = vmatpush.msra.mxu0 %v4435
        %v4437 = vand.u32 %v4346, 4294901760
        %4438 = vmatmul.f32.gmra.mxu0 %v4437
        %v4439 = vpop.f32.mrf.mxu0
        %v4440 = vadd.f32 %v4379, %v4439
        %4441 = vdwg.mxu0
        %4442 = vmatpush.msra.mxu0 0.0
        %4443 = vmatpush.msra.mxu0 0.0
        %4444 = vmatpush.msra.mxu0 0.0
        %4445 = vmatpush.msra.mxu0 0.0
        %4446 = vmatpush.msra.mxu0 0.0
        %4447 = vmatpush.msra.mxu0 0.0
        %4448 = vmatpush.msra.mxu0 0.0
        %4449 = vmatpush.msra.mxu0 0.0
        %v4450 = vand.u32 %v4342, 4294901760
        %v4451 = vsub.f32 %v4342, %v4450
        %4452 = vmatpush.msra.mxu0 %v4451
        %v4453 = vand.u32 %v4341, 4294901760
        %v4454 = vsub.f32 %v4341, %v4453
        %4455 = vmatpush.msra.mxu0 %v4454
        %v4456 = vand.u32 %v4340, 4294901760
        %v4457 = vsub.f32 %v4340, %v4456
        %4458 = vmatpush.msra.mxu0 %v4457
        %v4459 = vand.u32 %v4339, 4294901760
        %v4460 = vsub.f32 %v4339, %v4459
        %4461 = vmatpush.msra.mxu0 %v4460
        %v4462 = vand.u32 %v4338, 4294901760
        %v4463 = vsub.f32 %v4338, %v4462
        %4464 = vmatpush.msra.mxu0 %v4463
        %v4465 = vand.u32 %v4337, 4294901760
        %v4466 = vsub.f32 %v4337, %v4465
        %4467 = vmatpush.msra.mxu0 %v4466
        %v4468 = vand.u32 %v4336, 4294901760
        %v4469 = vsub.f32 %v4336, %v4468
        %4470 = vmatpush.msra.mxu0 %v4469
        %v4471 = vand.u32 %v4335, 4294901760
        %v4472 = vsub.f32 %v4335, %v4471
        %4473 = vmatpush.msra.mxu0 %v4472
        %v4474 = vand.u32 %v4346, 4294901760
        %v4475 = vsub.f32 %v4346, %v4474
        %4476 = vmatmul.f32.gmra.mxu0 %v4475
        %v4477 = vpop.f32.mrf.mxu0
        %v4478 = vadd.f32 %v4440, %v4477
        %4479 = vdwg.mxu0
        %4480 = vmatpush.msra.mxu0 0.0
        %4481 = vmatpush.msra.mxu0 0.0
        %4482 = vmatpush.msra.mxu0 0.0
        %4483 = vmatpush.msra.mxu0 0.0
        %4484 = vmatpush.msra.mxu0 0.0
        %4485 = vmatpush.msra.mxu0 0.0
        %4486 = vmatpush.msra.mxu0 0.0
        %4487 = vmatpush.msra.mxu0 0.0
        %v4488 = vand.u32 %v4342, 4294901760
        %4489 = vmatpush.msra.mxu0 %v4488
        %v4490 = vand.u32 %v4341, 4294901760
        %4491 = vmatpush.msra.mxu0 %v4490
        %v4492 = vand.u32 %v4340, 4294901760
        %4493 = vmatpush.msra.mxu0 %v4492
        %v4494 = vand.u32 %v4339, 4294901760
        %4495 = vmatpush.msra.mxu0 %v4494
        %v4496 = vand.u32 %v4338, 4294901760
        %4497 = vmatpush.msra.mxu0 %v4496
        %v4498 = vand.u32 %v4337, 4294901760
        %4499 = vmatpush.msra.mxu0 %v4498
        %v4500 = vand.u32 %v4336, 4294901760
        %4501 = vmatpush.msra.mxu0 %v4500
        %v4502 = vand.u32 %v4335, 4294901760
        %4503 = vmatpush.msra.mxu0 %v4502
        %v4504 = vand.u32 %v4346, 4294901760
        %v4505 = vsub.f32 %v4346, %v4504
        %v4506 = vand.u32 %v4505, 4294901760
        %4507 = vmatmul.f32.gmra.mxu0 %v4506
        %v4508 = vpop.f32.mrf.mxu0
        %v4509 = vadd.f32 %v4478, %v4508
        %4510 = vdwg.mxu0
        %4511 = vmatpush.msra.mxu0 0.0
        %4512 = vmatpush.msra.mxu0 0.0
        %4513 = vmatpush.msra.mxu0 0.0
        %4514 = vmatpush.msra.mxu0 0.0
        %4515 = vmatpush.msra.mxu0 0.0
        %4516 = vmatpush.msra.mxu0 0.0
        %4517 = vmatpush.msra.mxu0 0.0
        %4518 = vmatpush.msra.mxu0 0.0
        %v4519 = vand.u32 %v4342, 4294901760
        %v4520 = vsub.f32 %v4342, %v4519
        %v4521 = vand.u32 %v4520, 4294901760
        %4522 = vmatpush.msra.mxu0 %v4521
        %v4523 = vand.u32 %v4341, 4294901760
        %v4524 = vsub.f32 %v4341, %v4523
        %v4525 = vand.u32 %v4524, 4294901760
        %4526 = vmatpush.msra.mxu0 %v4525
        %v4527 = vand.u32 %v4340, 4294901760
        %v4528 = vsub.f32 %v4340, %v4527
        %v4529 = vand.u32 %v4528, 4294901760
        %4530 = vmatpush.msra.mxu0 %v4529
        %v4531 = vand.u32 %v4339, 4294901760
        %v4532 = vsub.f32 %v4339, %v4531
        %v4533 = vand.u32 %v4532, 4294901760
        %4534 = vmatpush.msra.mxu0 %v4533
        %v4535 = vand.u32 %v4338, 4294901760
        %v4536 = vsub.f32 %v4338, %v4535
        %v4537 = vand.u32 %v4536, 4294901760
        %4538 = vmatpush.msra.mxu0 %v4537
        %v4539 = vand.u32 %v4337, 4294901760
        %v4540 = vsub.f32 %v4337, %v4539
        %v4541 = vand.u32 %v4540, 4294901760
        %4542 = vmatpush.msra.mxu0 %v4541
        %v4543 = vand.u32 %v4336, 4294901760
        %v4544 = vsub.f32 %v4336, %v4543
        %v4545 = vand.u32 %v4544, 4294901760
        %4546 = vmatpush.msra.mxu0 %v4545
        %v4547 = vand.u32 %v4335, 4294901760
        %v4548 = vsub.f32 %v4335, %v4547
        %v4549 = vand.u32 %v4548, 4294901760
        %4550 = vmatpush.msra.mxu0 %v4549
        %v4551 = vand.u32 %v4346, 4294901760
        %4552 = vmatmul.f32.gmra.mxu0 %v4551
        %v4553 = vpop.f32.mrf.mxu0
        %v4554 = vadd.f32 %v4509, %v4553
        %4555 = vdwg.mxu0
        %4556 = vmatpush.msra.mxu0 0.0
        %4557 = vmatpush.msra.mxu0 0.0
        %4558 = vmatpush.msra.mxu0 0.0
        %4559 = vmatpush.msra.mxu0 0.0
        %4560 = vmatpush.msra.mxu0 0.0
        %4561 = vmatpush.msra.mxu0 0.0
        %4562 = vmatpush.msra.mxu0 0.0
        %4563 = vmatpush.msra.mxu0 0.0
        %v4564 = vand.u32 %v4342, 4294901760
        %4565 = vmatpush.msra.mxu0 %v4564
        %v4566 = vand.u32 %v4341, 4294901760
        %4567 = vmatpush.msra.mxu0 %v4566
        %v4568 = vand.u32 %v4340, 4294901760
        %4569 = vmatpush.msra.mxu0 %v4568
        %v4570 = vand.u32 %v4339, 4294901760
        %4571 = vmatpush.msra.mxu0 %v4570
        %v4572 = vand.u32 %v4338, 4294901760
        %4573 = vmatpush.msra.mxu0 %v4572
        %v4574 = vand.u32 %v4337, 4294901760
        %4575 = vmatpush.msra.mxu0 %v4574
        %v4576 = vand.u32 %v4336, 4294901760
        %4577 = vmatpush.msra.mxu0 %v4576
        %v4578 = vand.u32 %v4335, 4294901760
        %4579 = vmatpush.msra.mxu0 %v4578
        %v4580 = vand.u32 %v4346, 4294901760
        %4581 = vmatmul.f32.gmra.mxu0 %v4580
        %v4582 = vpop.f32.mrf.mxu0
        %v4583 = vadd.f32 %v4554, %v4582
        %4584 = vdwg.mxu0
        %v4585 = vadd.f32 %v4140, %v4583
        %v4586 = vsel %vm372, %v4585, 0.0
        %4587 = vadd.xlane.f32.xlu0 %v4586
        %v4588 = vpop.xlane.xlu0 %4587
        %v4589 = vmul.f32 %v4588, %v4117
        %v4590 = vsub.f32 %v4585, %v4589
        %v4591 = vmul.f32 %v4590, %v4590
        %v4592 = vsel %vm372, %v4591, 0.0
        %4593 = vadd.xlane.f32.xlu0 %v4592
        %v4594 = vpop.xlane.xlu0 %4593
        %v4595 = vmul.f32 %v4594, %v4117
        %v4596 = vadd.f32 %v4595, 1e-05
        %v4597 = vrsqrt.pop %v4596
        %v4598 = vmul.f32 %v4597, %v4596
        %v4599 = vmul.f32 %v4598, %v4597
        %v4600 = vmul.f32 0.5, %v4599
        %v4601 = vsub.f32 1.5, %v4600
        %v4602 = vmul.f32 %v4597, %v4601
        %vm4603 = vweird.f32 %v4596
        %vm4604 = vweird.f32 %v4597
        %vm4605 = vmor %vm4603, %vm4604
        %v4606 = vsel %vm4605, %v4597, %v4602
        %v4607 = vmul.f32 %v4590, %v4606
        %v4608 = vperm.slane %v275, 5
        %v4609 = vmul.f32 %v4607, %v4608
        %v4610 = vperm.slane %v275, 6
        %v4611 = vadd.f32 %v4609, %v4610
        %4612 = vst.msk [vmem:[%s269] sm:$0xff] %vm372, %v4611
        %s4613 = sand.u32 %s181, 1
        %s4614 = scalar_lea.sflag [#allocation3], %s4613
        %s4615 = sand.u32 %s181, 1
        %s4616 = smul.addr %s4615, 8
        %s4617 = scalar_lea.vmem [#allocation2], %s4616
        // Predicated region
        $region49: #{tpu_custom_call.1} parent=47 // pred_check
          %p4618 = pneg %p191
        $region50: #{tpu_custom_call.1} parent=47 // pred_check_branch
          %4620 = sbr.rel (%p4618) target = $region52
        $region51: #{tpu_custom_call.1} parent=47 // pred_region
          %4622 = vsyncadd %s4614, 0
          %s4623 = smul.addr %s21, 8
          %s4624 = scalar_lea.hbm %s7, %s4623
          %s4626 = sshll.u32 %s4617, 4
          %s4627 = int_to_ptr.vmem [resolvable:$true] %s4626
          %s4628 = sshll.u32 %s4624, 4
          %s4629 = int_to_ptr.hbm [resolvable:$true] %s4628
          %4631 = dma.vmem_to_hbm [thread:$0]  %s4627, 128, %s4629, %s4614
        $region52: #{tpu_custom_call.1} parent=47 // pred_fallthru
          _
      $region48: #{tpu_custom_call.1} parent=5 // pred_fallthru
        _
      %p4632 = scmp.le.s32.totalorder 2, %s16
      // Predicated region
      $region53: #{tpu_custom_call.1} parent=5 // pred_check
        %p4633 = pneg %p4632
      $region54: #{tpu_custom_call.1} parent=5 // pred_check_branch
        %4635 = sbr.rel (%p4633) target = $region56
      $region55: #{tpu_custom_call.1} parent=5 // pred_region
        %s4636 = ssub.s32 %s16, 2
        // Predicated region
        $region57: #{tpu_custom_call.1} parent=55 // pred_check
          %p4637 = pneg %p197
        $region58: #{tpu_custom_call.1} parent=55 // pred_check_branch
          %4639 = sbr.rel (%p4637) target = $region60
        $region59: #{tpu_custom_call.1} parent=55 // pred_region
          %s4640 = sand.u32 %s182, 1
          %s4641 = scalar_lea.sflag [#allocation3], %s4640
          %s4642 = sand.u32 %s182, 1
          %s4643 = smul.addr %s4642, 8
          %s4644 = scalar_lea.vmem [#allocation2], %s4643
          %4646 = dma.done %s4641, 128
        $region60: #{tpu_custom_call.1} parent=55 // pred_fallthru
          _
      $region56: #{tpu_custom_call.1} parent=5 // pred_fallthru
        _
    $region6: #{tpu_custom_call.1} parent=1 // loop_footer
      %s20 = sadd.s32 1, %s16
    $region7: #{tpu_custom_call.1} parent=1 // loop_footer_branch
      %15 = sbr.rel target = $region3
    $region8: #{tpu_custom_call.1} parent=1 // loop_exit
      _
    %4647 = vsyncpa [#allocation3], 1
    %s4648 = scalar_lea.sflag [#allocation3], 1
    %4649 = vsyncpa %s4648, 1

</llo_original>
